<compile_context>
chip_gen: v7x
topology: tpu7x:2x2x1
jax: 0.10.0
libtpu: 0.0.40
codegen_flags: <defaults>
</compile_context>

<pallas_src>
import functools

import jax
import jax.numpy as jnp
from jax.experimental import pallas as pl
from jax.experimental.pallas import tpu as pltpu

COMPUTE_DTYPE = jnp.bfloat16       # matmul-input dtype (f32 accumulation)
LN_EPS = 1e-5                      # PyTorch LayerNorm default

_CPARAMS = pltpu.CompilerParams(
    dimension_semantics=("parallel",),
    vmem_limit_bytes=48 * 1024 * 1024,
)


# --------------------------------------------------------------- helpers ----
def _full_spec(arr):
    """BlockSpec that keeps a (small) weight resident as one full VMEM block."""
    shape = tuple(arr.shape)
    nd = len(shape)
    return pl.BlockSpec(shape, lambda i, _nd=nd: (0,) * _nd)


def _row_tile(n, max_tile=512):
    """Largest row tile <= max_tile that is a multiple of 8 and divides n."""
    if n % 8 != 0:
        return n
    t = min(max_tile, n)
    t -= t % 8
    while n % t != 0:
        t -= 8
    return t


def _layernorm(x, g, b):
    # f32 statistics, eps = 1e-5 (PyTorch default).
    mean = jnp.mean(x, axis=-1, keepdims=True)
    var = jnp.mean(jnp.square(x - mean), axis=-1, keepdims=True)
    return (x - mean) * jax.lax.rsqrt(var + LN_EPS) * g + b


def _attention_heads(q, kv, wo_t, nhead, dk, d_model):
    """Per-head scaled-dot-product attention with fused output projection.

    q     : [Sq, D]   bf16 (heads packed along lanes)
    kv    : [Sk, 2D]  bf16 (K in [:, :D], V in [:, D:2D])
    wo_t  : [D, D]    bf16 (pre-transposed out_proj weight)
    returns f32 [Sq, D] = concat_heads(softmax(qk^T/sqrt(dk)) v) @ wo_t
    """
    sq = q.shape[0]
    scale = 1.0 / (dk ** 0.5)
    out = jnp.zeros((sq, d_model), jnp.float32)
    for h in range(nhead):                      # small static loop (unrolled)
        q_h = q[:, h * dk:(h + 1) * dk]
        k_h = kv[:, h * dk:(h + 1) * dk]
        v_h = kv[:, d_model + h * dk: d_model + (h + 1) * dk]
        s = jax.lax.dot_general(
            q_h, k_h, (((1,), (1,)), ((), ())),
            preferred_element_type=jnp.float32) * scale
        m = jnp.max(s, axis=-1, keepdims=True)
        p = jnp.exp(s - m)
        p = p * pl.reciprocal(jnp.sum(p, axis=-1, keepdims=True), approx=True)
        o_h = jnp.dot(p.astype(COMPUTE_DTYPE), v_h,
                      preferred_element_type=jnp.float32)
        out = out + jnp.dot(o_h.astype(COMPUTE_DTYPE),
                            wo_t[h * dk:(h + 1) * dk, :],
                            preferred_element_type=jnp.float32)
    return out


# ---------------------------------------------------------------- kernels ---
def _self_attn_block_kernel(x_ref, wqkv_ref, bqkv_ref, wo_ref, bo_ref,
                            g1_ref, b1_ref, o_ref, *, nhead):
    """Fused: QKV proj -> MHA -> out proj -> residual add -> LayerNorm1."""
    x = x_ref[...]                                       # [S, D] f32
    d = x.shape[-1]
    dk = d // nhead
    qkv = jnp.dot(x.astype(COMPUTE_DTYPE), wqkv_ref[...],
                  preferred_element_type=jnp.float32) + bqkv_ref[...]
    qkv = qkv.astype(COMPUTE_DTYPE)                      # [S, 3D]
    attn = _attention_heads(qkv[:, :d], qkv[:, d:], wo_ref[...],
                            nhead, dk, d) + bo_ref[...]
    o_ref[...] = _layernorm(x + attn, g1_ref[...], b1_ref[...])


def _cross_attn_block_kernel(x_ref, kv_ref, wq_ref, bq_ref, wo_ref, bo_ref,
                             g2_ref, b2_ref, o_ref, *, nhead):
    """Fused: Q proj -> MHA vs pre-projected memory K/V -> out proj -> add+LN2."""
    x = x_ref[...]                                       # [Sq, D] f32
    d = x.shape[-1]
    dk = d // nhead
    q = jnp.dot(x.astype(COMPUTE_DTYPE), wq_ref[...],
                preferred_element_type=jnp.float32) + bq_ref[...]
    attn = _attention_heads(q.astype(COMPUTE_DTYPE), kv_ref[...],
                            wo_ref[...], nhead, dk, d) + bo_ref[...]
    o_ref[...] = _layernorm(x + attn, g2_ref[...], b2_ref[...])


def _kv_proj_kernel(mem_ref, wkv_ref, bkv_ref, o_ref):
    """Memory K/V projection (hoisted out of the layer loop)."""
    kv = jnp.dot(mem_ref[...].astype(COMPUTE_DTYPE), wkv_ref[...],
                 preferred_element_type=jnp.float32) + bkv_ref[...]
    o_ref[...] = kv.astype(o_ref.dtype)


def _ffn_block_kernel(x_ref, w1_ref, b1_ref, w2_ref, b2_ref, g3_ref, b3_ref,
                      *rest, has_final_norm):
    """Fused: linear1 -> ReLU -> linear2 -> residual add -> LayerNorm3
    (-> shared decoder norm, which the spec applies after every layer)."""
    o_ref = rest[-1]
    x = x_ref[...]                                       # [tile, D] f32
    h = jnp.dot(x.astype(COMPUTE_DTYPE), w1_ref[...],
                preferred_element_type=jnp.float32) + b1_ref[...]
    h = jnp.maximum(h, 0.0)
    y = jnp.dot(h.astype(COMPUTE_DTYPE), w2_ref[...],
                preferred_element_type=jnp.float32) + b2_ref[...]
    y = _layernorm(x + y, g3_ref[...], b3_ref[...])
    if has_final_norm:
        y = _layernorm(y, rest[0][...], rest[1][...])
    o_ref[...] = y


# --------------------------------------------------------------- wrappers ---
def self_attn_block(x_bsd, pa, ln_g, ln_b, nhead):
    b, s, d = x_bsd.shape
    args = (x_bsd, pa["wqkv_t"], pa["bqkv"], pa["wo_t"], pa["bo"], ln_g, ln_b)
    in_specs = [pl.BlockSpec((None, s, d), lambda i: (i, 0, 0))] + \
               [_full_spec(a) for a in args[1:]]
    return pl.pallas_call(
        functools.partial(_self_attn_block_kernel, nhead=nhead),
        out_shape=jax.ShapeDtypeStruct((b, s, d), jnp.float32),
        grid=(b,),
        in_specs=in_specs,
        out_specs=pl.BlockSpec((None, s, d), lambda i: (i, 0, 0)),
        compiler_params=_CPARAMS,
    )(*args)


def cross_attn_block(x_bsd, kv_mem, pa, ln_g, ln_b, nhead):
    b, s, d = x_bsd.shape
    sk = kv_mem.shape[1]
    args = (x_bsd, kv_mem, pa["wq_t"], pa["bq"], pa["wo_t"], pa["bo"],
            ln_g, ln_b)
    in_specs = [pl.BlockSpec((None, s, d), lambda i: (i, 0, 0)),
                pl.BlockSpec((None, sk, 2 * d), lambda i: (i, 0, 0))] + \
               [_full_spec(a) for a in args[2:]]
    return pl.pallas_call(
        functools.partial(_cross_attn_block_kernel, nhead=nhead),
        out_shape=jax.ShapeDtypeStruct((b, s, d), jnp.float32),
        grid=(b,),
        in_specs=in_specs,
        out_specs=pl.BlockSpec((None, s, d), lambda i: (i, 0, 0)),
        compiler_params=_CPARAMS,
    )(*args)


def kv_project(mem_bsd, pa):
    b, sk, d = mem_bsd.shape
    return pl.pallas_call(
        _kv_proj_kernel,
        out_shape=jax.ShapeDtypeStruct((b, sk, 2 * d), COMPUTE_DTYPE),
        grid=(b,),
        in_specs=[pl.BlockSpec((None, sk, d), lambda i: (i, 0, 0)),
                  _full_spec(pa["wkv_t"]), _full_spec(pa["bkv"])],
        out_specs=pl.BlockSpec((None, sk, 2 * d), lambda i: (i, 0, 0)),
        compiler_params=_CPARAMS,
    )(mem_bsd, pa["wkv_t"], pa["bkv"])


def ffn_block(x_bsd, p, final_norm):
    b, s, d = x_bsd.shape
    n = b * s
    x2 = x_bsd.reshape(n, d)
    tile = _row_tile(n)                       # row-tiled grid -> DMA pipeline;
    # also bounds the [tile, DFF] f32 intermediate (v7x 64 MiB VMEM budget).
    args = [x2, p["w1_t"], p["b1"], p["w2_t"], p["b2"], p["ln3_g"], p["ln3_b"]]
    in_specs = [pl.BlockSpec((tile, d), lambda i: (i, 0))] + \
               [_full_spec(a) for a in args[1:]]
    has_final = final_norm is not None
    if has_final:
        args += [final_norm["g"], final_norm["b"]]
        in_specs += [_full_spec(final_norm["g"]), _full_spec(final_norm["b"])]
    out = pl.pallas_call(
        functools.partial(_ffn_block_kernel, has_final_norm=has_final),
        out_shape=jax.ShapeDtypeStruct((n, d), jnp.float32),
        grid=(n // tile,),
        in_specs=in_specs,
        out_specs=pl.BlockSpec((tile, d), lambda i: (i, 0)),
        compiler_params=_CPARAMS,
    )(*args)
    return out.reshape(b, s, d)


# --------------------------------------------------- parameter preparation ---
def _prepare_attn(raw, cross):
    """Pre-transpose / fuse PyTorch-layout MHA params at trace time (bf16)."""
    wq, wk, wv = jnp.split(raw["in_proj_w"], 3, axis=0)       # each [D, D]
    bq, bk, bv = jnp.split(raw["in_proj_b"], 3, axis=0)
    out = {
        "wo_t": raw["out_proj_w"].T.astype(COMPUTE_DTYPE),    # [D, D]
        "bo": raw["out_proj_b"].reshape(1, -1).astype(jnp.float32),
    }
    if cross:
        out["wq_t"] = wq.T.astype(COMPUTE_DTYPE)                           # [D, D]
        out["bq"] = bq.reshape(1, -1).astype(jnp.float32)
        out["wkv_t"] = jnp.concatenate([wk, wv], 0).T.astype(COMPUTE_DTYPE)  # [D, 2D]
        out["bkv"] = jnp.concatenate([bk, bv]).reshape(1, -1).astype(jnp.float32)
    else:
        out["wqkv_t"] = raw["in_proj_w"].T.astype(COMPUTE_DTYPE)           # [D, 3D]
        out["bqkv"] = raw["in_proj_b"].reshape(1, -1).astype(jnp.float32)
    return out


def prepare_layer(raw):
    return {
        "self": _prepare_attn(raw["self_attn"], cross=False),
        "cross": _prepare_attn(raw["cross_attn"], cross=True),
        "w1_t": raw["linear1_w"].T.astype(COMPUTE_DTYPE),     # [D, DFF]
        "b1": raw["linear1_b"].reshape(1, -1).astype(jnp.float32),
        "w2_t": raw["linear2_w"].T.astype(COMPUTE_DTYPE),     # [DFF, D]
        "b2": raw["linear2_b"].reshape(1, -1).astype(jnp.float32),
        "ln1_g": raw["norm1_w"].reshape(1, -1), "ln1_b": raw["norm1_b"].reshape(1, -1),
        "ln2_g": raw["norm2_w"].reshape(1, -1), "ln2_b": raw["norm2_b"].reshape(1, -1),
        "ln3_g": raw["norm3_w"].reshape(1, -1), "ln3_b": raw["norm3_b"].reshape(1, -1),
    }


# ------------------------------------------------------------------ forward ---
def transformer_decoder_fwd(tgt, memory, layer_params, final_norm_raw, nhead):
    """tgt: [S, B, D], memory: [Sk, B, D]  ->  [1, S, B, D] (matches spec)."""
    # One-time layout change to batch-first so every kernel block is a
    # contiguous, lane-dense [S, D] slab (no per-layer XLA reshuffles).
    x = jnp.transpose(tgt, (1, 0, 2))          # [B, S, D]
    mem = jnp.transpose(memory, (1, 0, 2))     # [B, Sk, D]

    final_norm = None
    if final_norm_raw is not None:
        final_norm = {"g": final_norm_raw["w"].reshape(1, -1),
                      "b": final_norm_raw["b"].reshape(1, -1)}

    # Prepare params once per unique layer (clones share one weight set).
    prep_cache, kv_cache, prepared = {}, {}, []
    for raw in layer_params:
        pid = id(raw)
        if pid not in prep_cache:
            prep_cache[pid] = prepare_layer(raw)
        prepared.append(prep_cache[pid])

    # Hoist the loop-invariant memory K/V projection: computed once per unique
    # cross-attn weight set (exactly once, since _get_clones deep-copies).
    for raw, p in zip(layer_params, prepared):
        cid = id(raw["cross_attn"])
        if cid not in kv_cache:
            kv_cache[cid] = kv_project(mem, p["cross"])

    for raw, p in zip(layer_params, prepared):
        kv_mem = kv_cache[id(raw["cross_attn"])]
        x = self_attn_block(x, p["self"], p["ln1_g"], p["ln1_b"], nhead)
        x = cross_attn_block(x, kv_mem, p["cross"], p["ln2_g"], p["ln2_b"], nhead)
        # FFN block fuses LN3 and the decoder's shared norm; the spec applies
        # the shared norm *inside* the layer loop (custom TransformerDecoder).
        x = ffn_block(x, p, final_norm)

    out = jnp.transpose(x, (1, 0, 2))          # back to [S, B, D]
    return out[None]                           # .unsqueeze(0)


# ------------------------------------------------------------------- params ---
def make_params(key, d_model, nhead, dim_ff, num_layers, with_norm=True):
    del nhead  # shapes don't depend on head count
    ks = iter(jax.random.split(key, 16))

    def w(shape):
        return jax.random.normal(next(ks), shape, dtype=jnp.float32) * 0.02

    def attn_p():
        return {
            "in_proj_w": w((3 * d_model, d_model)),
            "in_proj_b": jnp.zeros((3 * d_model,), jnp.float32),
            "out_proj_w": w((d_model, d_model)),
            "out_proj_b": jnp.zeros((d_model,), jnp.float32),
        }

    one_layer = {
        "self_attn": attn_p(),
        "cross_attn": attn_p(),
        "linear1_w": w((dim_ff, d_model)),
        "linear1_b": jnp.zeros((dim_ff,), jnp.float32),
        "linear2_w": w((d_model, dim_ff)),
        "linear2_b": jnp.zeros((d_model,), jnp.float32),
        "norm1_w": jnp.ones((d_model,), jnp.float32),
        "norm1_b": jnp.zeros((d_model,), jnp.float32),
        "norm2_w": jnp.ones((d_model,), jnp.float32),
        "norm2_b": jnp.zeros((d_model,), jnp.float32),
        "norm3_w": jnp.ones((d_model,), jnp.float32),
        "norm3_b": jnp.zeros((d_model,), jnp.float32),
    }
    # _get_clones deepcopies one layer -> all layers share identical params.
    layer_params = [one_layer for _ in range(num_layers)]
    final_norm = (
        {"w": jnp.ones((d_model,), jnp.float32),
         "b": jnp.zeros((d_model,), jnp.float32)}
        if with_norm else None
    )
    return layer_params, final_norm


# --------------------------------------------------------------------- main ---
if __name__ == "__main__":
    # D chosen as 128 so every lane dimension (D, 2D, 3D, DFF) is lane-dense.
    S_TGT, S_MEM, B, D, NHEAD, DFF, NLAYERS = 8, 16, 2, 128, 4, 256, 2

    key = jax.random.PRNGKey(0)
    k_tgt, k_mem, k_par = jax.random.split(key, 3)

    tgt = jax.random.normal(k_tgt, (S_TGT, B, D), dtype=jnp.float32)
    memory = jax.random.normal(k_mem, (S_MEM, B, D), dtype=jnp.float32)
    layer_params, final_norm = make_params(k_par, D, NHEAD, DFF, NLAYERS)

    fwd = jax.jit(
        lambda t, m: transformer_decoder_fwd(t, m, layer_params, final_norm, NHEAD)
    )
    out = fwd(tgt, memory)
    jax.block_until_ready(out)

    assert out.shape == (1, S_TGT, B, D), out.shape
    assert out.dtype == jnp.float32
    print("KERNEL_OK")
</pallas_src>

<mosaic_0001>
module attributes {stable_mosaic.version = 11 : i64} {
  func.func @_kv_proj_kernel(%arg0: i32, %arg1: memref<1x16x128xf32, #tpu.memory_space<vmem>>, %arg2: memref<128x256xbf16, #tpu.memory_space<vmem>>, %arg3: memref<1x256xf32, #tpu.memory_space<vmem>>, %arg4: memref<1x16x256xbf16, #tpu.memory_space<vmem>>) attributes {dimension_semantics = [#tpu.dimension_semantics<parallel>], iteration_bounds = array<i64: 2>, scalar_prefetch = 0 : i64, scratch_operands = 0 : i64, tpu.core_type = #tpu.core_type<tc>, window_params = [{transform_indices = @transform_0, window_bounds = array<i64: 1, 16, 128>}, {pipeline_mode = #tpu.pipeline_mode<synchronous>, transform_indices = @transform_1, window_bounds = array<i64: 128, 256>}, {pipeline_mode = #tpu.pipeline_mode<synchronous>, transform_indices = @transform_2, window_bounds = array<i64: 1, 256>}, {transform_indices = @transform_3, window_bounds = array<i64: 1, 16, 256>}]} {
    %c0 = arith.constant 0 : index
    %c0_0 = arith.constant 0 : index
    %c0_1 = arith.constant 0 : index
    %0 = vector.load %arg1[%c0, %c0_0, %c0_1] : memref<1x16x128xf32, #tpu.memory_space<vmem>>, vector<1x16x128xf32>
    %1 = vector.shape_cast %0 : vector<1x16x128xf32> to vector<16x128xf32>
    %2 = arith.truncf %1 : vector<16x128xf32> to vector<16x128xbf16>
    %c0_2 = arith.constant 0 : index
    %c0_3 = arith.constant 0 : index
    %3 = vector.load %arg2[%c0_2, %c0_3] : memref<128x256xbf16, #tpu.memory_space<vmem>>, vector<128x256xbf16>
    %cst = arith.constant dense<0.000000e+00> : vector<16x256xf32>
    %4 = tpu.matmul %2, %3, %cst {dimension_numbers = #tpu.dot_dimension_numbers<[1], [0], [0], [1], [0, 0, 1, 1], [], []>} : vector<16x128xbf16>, vector<128x256xbf16>, vector<16x256xf32> -> vector<16x256xf32>
    %c0_4 = arith.constant 0 : index
    %c0_5 = arith.constant 0 : index
    %5 = vector.load %arg3[%c0_4, %c0_5] : memref<1x256xf32, #tpu.memory_space<vmem>>, vector<1x256xf32>
    %6 = vector.broadcast %5 : vector<1x256xf32> to vector<16x256xf32>
    %7 = arith.addf %4, %6 : vector<16x256xf32>
    %8 = arith.truncf %7 : vector<16x256xf32> to vector<16x256xbf16>
    %c0_6 = arith.constant 0 : index
    %c0_7 = arith.constant 0 : index
    %c0_8 = arith.constant 0 : index
    %9 = vector.load %arg4[%c0_6, %c0_7, %c0_8] : memref<1x16x256xbf16, #tpu.memory_space<vmem>>, vector<1x16x256xbf16>
    %10 = vector.shape_cast %9 : vector<1x16x256xbf16> to vector<16x256xbf16>
    %11 = vector.shape_cast %8 : vector<16x256xbf16> to vector<1x16x256xbf16>
    tpu.vector_store %arg4[%c0_6, %c0_7, %c0_8], %11 {strides = array<i32>} : memref<1x16x256xbf16, #tpu.memory_space<vmem>>, vector<1x16x256xbf16>,
    return
  }
  func.func @transform_0(%arg0: i32) -> (i32, i32, i32) {
    %c0_i32 = arith.constant 0 : i32
    %c0_i32_0 = arith.constant 0 : i32
    %c0_i32_1 = arith.constant 0 : i32
    return %arg0, %c0_i32, %c0_i32_0 : i32, i32, i32
  }
  func.func @transform_1(%arg0: i32) -> (i32, i32) {
    %c0_i32 = arith.constant 0 : i32
    %c0_i32_0 = arith.constant 0 : i32
    %c0_i32_1 = arith.constant 0 : i32
    return %c0_i32, %c0_i32_0 : i32, i32
  }
  func.func @transform_2(%arg0: i32) -> (i32, i32) {
    %c0_i32 = arith.constant 0 : i32
    %c0_i32_0 = arith.constant 0 : i32
    %c0_i32_1 = arith.constant 0 : i32
    return %c0_i32, %c0_i32_0 : i32, i32
  }
  func.func @transform_3(%arg0: i32) -> (i32, i32, i32) {
    %c0_i32 = arith.constant 0 : i32
    %c0_i32_0 = arith.constant 0 : i32
    %c0_i32_1 = arith.constant 0 : i32
    return %arg0, %c0_i32, %c0_i32_0 : i32, i32, i32
  }
}

module attributes {stable_mosaic.version = 11 : i64} {
  func.func @_cross_attn_block_kernel(%arg0: i32, %arg1: memref<1x8x128xf32, #tpu.memory_space<vmem>>, %arg2: memref<1x16x256xbf16, #tpu.memory_space<vmem>>, %arg3: memref<128x128xbf16, #tpu.memory_space<vmem>>, %arg4: memref<1x128xf32, #tpu.memory_space<vmem>>, %arg5: memref<128x128xbf16, #tpu.memory_space<vmem>>, %arg6: memref<1x128xf32, #tpu.memory_space<vmem>>, %arg7: memref<1x128xf32, #tpu.memory_space<vmem>>, %arg8: memref<1x128xf32, #tpu.memory_space<vmem>>, %arg9: memref<1x8x128xf32, #tpu.memory_space<vmem>>) attributes {dimension_semantics = [#tpu.dimension_semantics<parallel>], iteration_bounds = array<i64: 2>, scalar_prefetch = 0 : i64, scratch_operands = 0 : i64, tpu.core_type = #tpu.core_type<tc>, window_params = [{transform_indices = @transform_0, window_bounds = array<i64: 1, 8, 128>}, {transform_indices = @transform_1, window_bounds = array<i64: 1, 16, 256>}, {pipeline_mode = #tpu.pipeline_mode<synchronous>, transform_indices = @transform_2, window_bounds = array<i64: 128, 128>}, {pipeline_mode = #tpu.pipeline_mode<synchronous>, transform_indices = @transform_3, window_bounds = array<i64: 1, 128>}, {pipeline_mode = #tpu.pipeline_mode<synchronous>, transform_indices = @transform_4, window_bounds = array<i64: 128, 128>}, {pipeline_mode = #tpu.pipeline_mode<synchronous>, transform_indices = @transform_5, window_bounds = array<i64: 1, 128>}, {pipeline_mode = #tpu.pipeline_mode<synchronous>, transform_indices = @transform_6, window_bounds = array<i64: 1, 128>}, {pipeline_mode = #tpu.pipeline_mode<synchronous>, transform_indices = @transform_7, window_bounds = array<i64: 1, 128>}, {transform_indices = @transform_8, window_bounds = array<i64: 1, 8, 128>}]} {
    %c0 = arith.constant 0 : index
    %c0_0 = arith.constant 0 : index
    %c0_1 = arith.constant 0 : index
    %0 = vector.load %arg1[%c0, %c0_0, %c0_1] : memref<1x8x128xf32, #tpu.memory_space<vmem>>, vector<1x8x128xf32>
    %1 = vector.shape_cast %0 : vector<1x8x128xf32> to vector<8x128xf32>
    %2 = arith.truncf %1 : vector<8x128xf32> to vector<8x128xbf16>
    %c0_2 = arith.constant 0 : index
    %c0_3 = arith.constant 0 : index
    %3 = vector.load %arg3[%c0_2, %c0_3] : memref<128x128xbf16, #tpu.memory_space<vmem>>, vector<128x128xbf16>
    %cst = arith.constant dense<0.000000e+00> : vector<8x128xf32>
    %4 = tpu.matmul %2, %3, %cst {dimension_numbers = #tpu.dot_dimension_numbers<[1], [0], [0], [1], [0, 0, 1, 1], [], []>} : vector<8x128xbf16>, vector<128x128xbf16>, vector<8x128xf32> -> vector<8x128xf32>
    %c0_4 = arith.constant 0 : index
    %c0_5 = arith.constant 0 : index
    %5 = vector.load %arg4[%c0_4, %c0_5] : memref<1x128xf32, #tpu.memory_space<vmem>>, vector<1x128xf32>
    %6 = vector.broadcast %5 : vector<1x128xf32> to vector<8x128xf32>
    %7 = arith.addf %4, %6 : vector<8x128xf32>
    %8 = arith.truncf %7 : vector<8x128xf32> to vector<8x128xbf16>
    %c0_6 = arith.constant 0 : index
    %c0_7 = arith.constant 0 : index
    %c0_8 = arith.constant 0 : index
    %9 = vector.load %arg2[%c0_6, %c0_7, %c0_8] : memref<1x16x256xbf16, #tpu.memory_space<vmem>>, vector<1x16x256xbf16>
    %10 = vector.shape_cast %9 : vector<1x16x256xbf16> to vector<16x256xbf16>
    %c0_9 = arith.constant 0 : index
    %c0_10 = arith.constant 0 : index
    %11 = vector.load %arg5[%c0_9, %c0_10] : memref<128x128xbf16, #tpu.memory_space<vmem>>, vector<128x128xbf16>
    %cst_11 = arith.constant 0.000000e+00 : f32
    %12 = vector.broadcast %cst_11 : f32 to vector<8x128xf32>
    %13 = vector.extract_strided_slice %8 {offsets = [0, 0], sizes = [8, 32], strides = [1, 1]} : vector<8x128xbf16> to vector<8x32xbf16>
    %14 = vector.extract_strided_slice %10 {offsets = [0, 0], sizes = [16, 32], strides = [1, 1]} : vector<16x256xbf16> to vector<16x32xbf16>
    %15 = vector.extract_strided_slice %10 {offsets = [0, 128], sizes = [16, 32], strides = [1, 1]} : vector<16x256xbf16> to vector<16x32xbf16>
    %cst_12 = arith.constant dense<0.000000e+00> : vector<8x16xf32>
    %16 = tpu.matmul %13, %14, %cst_12 {dimension_numbers = #tpu.dot_dimension_numbers<[1], [1], [0], [0], [0, 0, 1, 0], [], []>} : vector<8x32xbf16>, vector<16x32xbf16>, vector<8x16xf32> -> vector<8x16xf32>
    %cst_13 = arith.constant 0.176776692 : f32
    %17 = vector.broadcast %cst_13 : f32 to vector<8x16xf32>
    %18 = arith.mulf %16, %17 : vector<8x16xf32>
    %cst_14 = arith.constant dense<0xFF800000> : vector<8xf32>
    %19 = vector.multi_reduction <maximumf>, %18, %cst_14 [1] : vector<8x16xf32> to vector<8xf32>
    %20 = vector.shape_cast %19 : vector<8xf32> to vector<8x1xf32>
    %21 = vector.broadcast %20 : vector<8x1xf32> to vector<8x16xf32>
    %22 = arith.subf %18, %21 : vector<8x16xf32>
    %23 = math.exp %22 : vector<8x16xf32>
    %cst_15 = arith.constant dense<0.000000e+00> : vector<8xf32>
    %24 = vector.multi_reduction <add>, %23, %cst_15 [1] : vector<8x16xf32> to vector<8xf32>
    %25 = vector.shape_cast %24 : vector<8xf32> to vector<8x1xf32>
    %26 = tpu.reciprocal %25 {approx = true} : vector<8x1xf32> -> vector<8x1xf32>
    %27 = vector.broadcast %26 : vector<8x1xf32> to vector<8x16xf32>
    %28 = arith.mulf %23, %27 : vector<8x16xf32>
    %29 = arith.truncf %28 : vector<8x16xf32> to vector<8x16xbf16>
    %cst_16 = arith.constant dense<0.000000e+00> : vector<8x32xf32>
    %30 = tpu.matmul %29, %15, %cst_16 {dimension_numbers = #tpu.dot_dimension_numbers<[1], [0], [0], [1], [0, 0, 1, 1], [], []>} : vector<8x16xbf16>, vector<16x32xbf16>, vector<8x32xf32> -> vector<8x32xf32>
    %31 = arith.truncf %30 : vector<8x32xf32> to vector<8x32xbf16>
    %32 = vector.extract_strided_slice %11 {offsets = [0, 0], sizes = [32, 128], strides = [1, 1]} : vector<128x128xbf16> to vector<32x128xbf16>
    %cst_17 = arith.constant dense<0.000000e+00> : vector<8x128xf32>
    %33 = tpu.matmul %31, %32, %cst_17 {dimension_numbers = #tpu.dot_dimension_numbers<[1], [0], [0], [1], [0, 0, 1, 1], [], []>} : vector<8x32xbf16>, vector<32x128xbf16>, vector<8x128xf32> -> vector<8x128xf32>
    %34 = arith.addf %12, %33 : vector<8x128xf32>
    %35 = vector.extract_strided_slice %8 {offsets = [0, 32], sizes = [8, 32], strides = [1, 1]} : vector<8x128xbf16> to vector<8x32xbf16>
    %36 = vector.extract_strided_slice %10 {offsets = [0, 32], sizes = [16, 32], strides = [1, 1]} : vector<16x256xbf16> to vector<16x32xbf16>
    %37 = vector.extract_strided_slice %10 {offsets = [0, 160], sizes = [16, 32], strides = [1, 1]} : vector<16x256xbf16> to vector<16x32xbf16>
    %cst_18 = arith.constant dense<0.000000e+00> : vector<8x16xf32>
    %38 = tpu.matmul %35, %36, %cst_18 {dimension_numbers = #tpu.dot_dimension_numbers<[1], [1], [0], [0], [0, 0, 1, 0], [], []>} : vector<8x32xbf16>, vector<16x32xbf16>, vector<8x16xf32> -> vector<8x16xf32>
    %cst_19 = arith.constant 0.176776692 : f32
    %39 = vector.broadcast %cst_19 : f32 to vector<8x16xf32>
    %40 = arith.mulf %38, %39 : vector<8x16xf32>
    %cst_20 = arith.constant dense<0xFF800000> : vector<8xf32>
    %41 = vector.multi_reduction <maximumf>, %40, %cst_20 [1] : vector<8x16xf32> to vector<8xf32>
    %42 = vector.shape_cast %41 : vector<8xf32> to vector<8x1xf32>
    %43 = vector.broadcast %42 : vector<8x1xf32> to vector<8x16xf32>
    %44 = arith.subf %40, %43 : vector<8x16xf32>
    %45 = math.exp %44 : vector<8x16xf32>
    %cst_21 = arith.constant dense<0.000000e+00> : vector<8xf32>
    %46 = vector.multi_reduction <add>, %45, %cst_21 [1] : vector<8x16xf32> to vector<8xf32>
    %47 = vector.shape_cast %46 : vector<8xf32> to vector<8x1xf32>
    %48 = tpu.reciprocal %47 {approx = true} : vector<8x1xf32> -> vector<8x1xf32>
    %49 = vector.broadcast %48 : vector<8x1xf32> to vector<8x16xf32>
    %50 = arith.mulf %45, %49 : vector<8x16xf32>
    %51 = arith.truncf %50 : vector<8x16xf32> to vector<8x16xbf16>
    %cst_22 = arith.constant dense<0.000000e+00> : vector<8x32xf32>
    %52 = tpu.matmul %51, %37, %cst_22 {dimension_numbers = #tpu.dot_dimension_numbers<[1], [0], [0], [1], [0, 0, 1, 1], [], []>} : vector<8x16xbf16>, vector<16x32xbf16>, vector<8x32xf32> -> vector<8x32xf32>
    %53 = arith.truncf %52 : vector<8x32xf32> to vector<8x32xbf16>
    %54 = vector.extract_strided_slice %11 {offsets = [32, 0], sizes = [32, 128], strides = [1, 1]} : vector<128x128xbf16> to vector<32x128xbf16>
    %cst_23 = arith.constant dense<0.000000e+00> : vector<8x128xf32>
    %55 = tpu.matmul %53, %54, %cst_23 {dimension_numbers = #tpu.dot_dimension_numbers<[1], [0], [0], [1], [0, 0, 1, 1], [], []>} : vector<8x32xbf16>, vector<32x128xbf16>, vector<8x128xf32> -> vector<8x128xf32>
    %56 = arith.addf %34, %55 : vector<8x128xf32>
    %57 = vector.extract_strided_slice %8 {offsets = [0, 64], sizes = [8, 32], strides = [1, 1]} : vector<8x128xbf16> to vector<8x32xbf16>
    %58 = vector.extract_strided_slice %10 {offsets = [0, 64], sizes = [16, 32], strides = [1, 1]} : vector<16x256xbf16> to vector<16x32xbf16>
    %59 = vector.extract_strided_slice %10 {offsets = [0, 192], sizes = [16, 32], strides = [1, 1]} : vector<16x256xbf16> to vector<16x32xbf16>
    %cst_24 = arith.constant dense<0.000000e+00> : vector<8x16xf32>
    %60 = tpu.matmul %57, %58, %cst_24 {dimension_numbers = #tpu.dot_dimension_numbers<[1], [1], [0], [0], [0, 0, 1, 0], [], []>} : vector<8x32xbf16>, vector<16x32xbf16>, vector<8x16xf32> -> vector<8x16xf32>
    %cst_25 = arith.constant 0.176776692 : f32
    %61 = vector.broadcast %cst_25 : f32 to vector<8x16xf32>
    %62 = arith.mulf %60, %61 : vector<8x16xf32>
    %cst_26 = arith.constant dense<0xFF800000> : vector<8xf32>
    %63 = vector.multi_reduction <maximumf>, %62, %cst_26 [1] : vector<8x16xf32> to vector<8xf32>
    %64 = vector.shape_cast %63 : vector<8xf32> to vector<8x1xf32>
    %65 = vector.broadcast %64 : vector<8x1xf32> to vector<8x16xf32>
    %66 = arith.subf %62, %65 : vector<8x16xf32>
    %67 = math.exp %66 : vector<8x16xf32>
    %cst_27 = arith.constant dense<0.000000e+00> : vector<8xf32>
    %68 = vector.multi_reduction <add>, %67, %cst_27 [1] : vector<8x16xf32> to vector<8xf32>
    %69 = vector.shape_cast %68 : vector<8xf32> to vector<8x1xf32>
    %70 = tpu.reciprocal %69 {approx = true} : vector<8x1xf32> -> vector<8x1xf32>
    %71 = vector.broadcast %70 : vector<8x1xf32> to vector<8x16xf32>
    %72 = arith.mulf %67, %71 : vector<8x16xf32>
    %73 = arith.truncf %72 : vector<8x16xf32> to vector<8x16xbf16>
    %cst_28 = arith.constant dense<0.000000e+00> : vector<8x32xf32>
    %74 = tpu.matmul %73, %59, %cst_28 {dimension_numbers = #tpu.dot_dimension_numbers<[1], [0], [0], [1], [0, 0, 1, 1], [], []>} : vector<8x16xbf16>, vector<16x32xbf16>, vector<8x32xf32> -> vector<8x32xf32>
    %75 = arith.truncf %74 : vector<8x32xf32> to vector<8x32xbf16>
    %76 = vector.extract_strided_slice %11 {offsets = [64, 0], sizes = [32, 128], strides = [1, 1]} : vector<128x128xbf16> to vector<32x128xbf16>
    %cst_29 = arith.constant dense<0.000000e+00> : vector<8x128xf32>
    %77 = tpu.matmul %75, %76, %cst_29 {dimension_numbers = #tpu.dot_dimension_numbers<[1], [0], [0], [1], [0, 0, 1, 1], [], []>} : vector<8x32xbf16>, vector<32x128xbf16>, vector<8x128xf32> -> vector<8x128xf32>
    %78 = arith.addf %56, %77 : vector<8x128xf32>
    %79 = vector.extract_strided_slice %8 {offsets = [0, 96], sizes = [8, 32], strides = [1, 1]} : vector<8x128xbf16> to vector<8x32xbf16>
    %80 = vector.extract_strided_slice %10 {offsets = [0, 96], sizes = [16, 32], strides = [1, 1]} : vector<16x256xbf16> to vector<16x32xbf16>
    %81 = vector.extract_strided_slice %10 {offsets = [0, 224], sizes = [16, 32], strides = [1, 1]} : vector<16x256xbf16> to vector<16x32xbf16>
    %cst_30 = arith.constant dense<0.000000e+00> : vector<8x16xf32>
    %82 = tpu.matmul %79, %80, %cst_30 {dimension_numbers = #tpu.dot_dimension_numbers<[1], [1], [0], [0], [0, 0, 1, 0], [], []>} : vector<8x32xbf16>, vector<16x32xbf16>, vector<8x16xf32> -> vector<8x16xf32>
    %cst_31 = arith.constant 0.176776692 : f32
    %83 = vector.broadcast %cst_31 : f32 to vector<8x16xf32>
    %84 = arith.mulf %82, %83 : vector<8x16xf32>
    %cst_32 = arith.constant dense<0xFF800000> : vector<8xf32>
    %85 = vector.multi_reduction <maximumf>, %84, %cst_32 [1] : vector<8x16xf32> to vector<8xf32>
    %86 = vector.shape_cast %85 : vector<8xf32> to vector<8x1xf32>
    %87 = vector.broadcast %86 : vector<8x1xf32> to vector<8x16xf32>
    %88 = arith.subf %84, %87 : vector<8x16xf32>
    %89 = math.exp %88 : vector<8x16xf32>
    %cst_33 = arith.constant dense<0.000000e+00> : vector<8xf32>
    %90 = vector.multi_reduction <add>, %89, %cst_33 [1] : vector<8x16xf32> to vector<8xf32>
    %91 = vector.shape_cast %90 : vector<8xf32> to vector<8x1xf32>
    %92 = tpu.reciprocal %91 {approx = true} : vector<8x1xf32> -> vector<8x1xf32>
    %93 = vector.broadcast %92 : vector<8x1xf32> to vector<8x16xf32>
    %94 = arith.mulf %89, %93 : vector<8x16xf32>
    %95 = arith.truncf %94 : vector<8x16xf32> to vector<8x16xbf16>
    %cst_34 = arith.constant dense<0.000000e+00> : vector<8x32xf32>
    %96 = tpu.matmul %95, %81, %cst_34 {dimension_numbers = #tpu.dot_dimension_numbers<[1], [0], [0], [1], [0, 0, 1, 1], [], []>} : vector<8x16xbf16>, vector<16x32xbf16>, vector<8x32xf32> -> vector<8x32xf32>
    %97 = arith.truncf %96 : vector<8x32xf32> to vector<8x32xbf16>
    %98 = vector.extract_strided_slice %11 {offsets = [96, 0], sizes = [32, 128], strides = [1, 1]} : vector<128x128xbf16> to vector<32x128xbf16>
    %cst_35 = arith.constant dense<0.000000e+00> : vector<8x128xf32>
    %99 = tpu.matmul %97, %98, %cst_35 {dimension_numbers = #tpu.dot_dimension_numbers<[1], [0], [0], [1], [0, 0, 1, 1], [], []>} : vector<8x32xbf16>, vector<32x128xbf16>, vector<8x128xf32> -> vector<8x128xf32>
    %100 = arith.addf %78, %99 : vector<8x128xf32>
    %c0_36 = arith.constant 0 : index
    %c0_37 = arith.constant 0 : index
    %101 = vector.load %arg6[%c0_36, %c0_37] : memref<1x128xf32, #tpu.memory_space<vmem>>, vector<1x128xf32>
    %102 = vector.broadcast %101 : vector<1x128xf32> to vector<8x128xf32>
    %103 = arith.addf %100, %102 : vector<8x128xf32>
    %104 = arith.addf %1, %103 : vector<8x128xf32>
    %c0_38 = arith.constant 0 : index
    %c0_39 = arith.constant 0 : index
    %105 = vector.load %arg7[%c0_38, %c0_39] : memref<1x128xf32, #tpu.memory_space<vmem>>, vector<1x128xf32>
    %c0_40 = arith.constant 0 : index
    %c0_41 = arith.constant 0 : index
    %106 = vector.load %arg8[%c0_40, %c0_41] : memref<1x128xf32, #tpu.memory_space<vmem>>, vector<1x128xf32>
    %cst_42 = arith.constant dense<0.000000e+00> : vector<8xf32>
    %107 = vector.multi_reduction <add>, %104, %cst_42 [1] : vector<8x128xf32> to vector<8xf32>
    %108 = vector.shape_cast %107 : vector<8xf32> to vector<8x1xf32>
    %cst_43 = arith.constant 1.280000e+02 : f32
    %109 = vector.broadcast %cst_43 : f32 to vector<8x1xf32>
    %110 = arith.divf %108, %109 : vector<8x1xf32>
    %111 = vector.broadcast %110 : vector<8x1xf32> to vector<8x128xf32>
    %112 = arith.subf %104, %111 : vector<8x128xf32>
    %113 = arith.mulf %112, %112 : vector<8x128xf32>
    %cst_44 = arith.constant dense<0.000000e+00> : vector<8xf32>
    %114 = vector.multi_reduction <add>, %113, %cst_44 [1] : vector<8x128xf32> to vector<8xf32>
    %115 = vector.shape_cast %114 : vector<8xf32> to vector<8x1xf32>
    %cst_45 = arith.constant 1.280000e+02 : f32
    %116 = vector.broadcast %cst_45 : f32 to vector<8x1xf32>
    %117 = arith.divf %115, %116 : vector<8x1xf32>
    %118 = vector.broadcast %110 : vector<8x1xf32> to vector<8x128xf32>
    %119 = arith.subf %104, %118 : vector<8x128xf32>
    %cst_46 = arith.constant 9.99999974E-6 : f32
    %120 = vector.broadcast %cst_46 : f32 to vector<8x1xf32>
    %121 = arith.addf %117, %120 : vector<8x1xf32>
    %122 = math.rsqrt %121 : vector<8x1xf32>
    %123 = vector.broadcast %122 : vector<8x1xf32> to vector<8x128xf32>
    %124 = arith.mulf %119, %123 : vector<8x128xf32>
    %125 = vector.broadcast %105 : vector<1x128xf32> to vector<8x128xf32>
    %126 = arith.mulf %124, %125 : vector<8x128xf32>
    %127 = vector.broadcast %106 : vector<1x128xf32> to vector<8x128xf32>
    %128 = arith.addf %126, %127 : vector<8x128xf32>
    %c0_47 = arith.constant 0 : index
    %c0_48 = arith.constant 0 : index
    %c0_49 = arith.constant 0 : index
    %129 = vector.load %arg9[%c0_47, %c0_48, %c0_49] : memref<1x8x128xf32, #tpu.memory_space<vmem>>, vector<1x8x128xf32>
    %130 = vector.shape_cast %129 : vector<1x8x128xf32> to vector<8x128xf32>
    %131 = vector.shape_cast %128 : vector<8x128xf32> to vector<1x8x128xf32>
    tpu.vector_store %arg9[%c0_47, %c0_48, %c0_49], %131 {strides = array<i32>} : memref<1x8x128xf32, #tpu.memory_space<vmem>>, vector<1x8x128xf32>,
    return
  }
  func.func @transform_0(%arg0: i32) -> (i32, i32, i32) {
    %c0_i32 = arith.constant 0 : i32
    %c0_i32_0 = arith.constant 0 : i32
    %c0_i32_1 = arith.constant 0 : i32
    return %arg0, %c0_i32, %c0_i32_0 : i32, i32, i32
  }
  func.func @transform_1(%arg0: i32) -> (i32, i32, i32) {
    %c0_i32 = arith.constant 0 : i32
    %c0_i32_0 = arith.constant 0 : i32
    %c0_i32_1 = arith.constant 0 : i32
    return %arg0, %c0_i32, %c0_i32_0 : i32, i32, i32
  }
  func.func @transform_2(%arg0: i32) -> (i32, i32) {
    %c0_i32 = arith.constant 0 : i32
    %c0_i32_0 = arith.constant 0 : i32
    %c0_i32_1 = arith.constant 0 : i32
    return %c0_i32, %c0_i32_0 : i32, i32
  }
  func.func @transform_3(%arg0: i32) -> (i32, i32) {
    %c0_i32 = arith.constant 0 : i32
    %c0_i32_0 = arith.constant 0 : i32
    %c0_i32_1 = arith.constant 0 : i32
    return %c0_i32, %c0_i32_0 : i32, i32
  }
  func.func @transform_4(%arg0: i32) -> (i32, i32) {
    %c0_i32 = arith.constant 0 : i32
    %c0_i32_0 = arith.constant 0 : i32
    %c0_i32_1 = arith.constant 0 : i32
    return %c0_i32, %c0_i32_0 : i32, i32
  }
  func.func @transform_5(%arg0: i32) -> (i32, i32) {
    %c0_i32 = arith.constant 0 : i32
    %c0_i32_0 = arith.constant 0 : i32
    %c0_i32_1 = arith.constant 0 : i32
    return %c0_i32, %c0_i32_0 : i32, i32
  }
  func.func @transform_6(%arg0: i32) -> (i32, i32) {
    %c0_i32 = arith.constant 0 : i32
    %c0_i32_0 = arith.constant 0 : i32
    %c0_i32_1 = arith.constant 0 : i32
    return %c0_i32, %c0_i32_0 : i32, i32
  }
  func.func @transform_7(%arg0: i32) -> (i32, i32) {
    %c0_i32 = arith.constant 0 : i32
    %c0_i32_0 = arith.constant 0 : i32
    %c0_i32_1 = arith.constant 0 : i32
    return %c0_i32, %c0_i32_0 : i32, i32
  }
  func.func @transform_8(%arg0: i32) -> (i32, i32, i32) {
    %c0_i32 = arith.constant 0 : i32
    %c0_i32_0 = arith.constant 0 : i32
    %c0_i32_1 = arith.constant 0 : i32
    return %arg0, %c0_i32, %c0_i32_0 : i32, i32, i32
  }
}

module attributes {stable_mosaic.version = 11 : i64} {
  func.func @_ffn_block_kernel(%arg0: i32, %arg1: memref<16x128xf32, #tpu.memory_space<vmem>>, %arg2: memref<128x256xbf16, #tpu.memory_space<vmem>>, %arg3: memref<1x256xf32, #tpu.memory_space<vmem>>, %arg4: memref<256x128xbf16, #tpu.memory_space<vmem>>, %arg5: memref<1x128xf32, #tpu.memory_space<vmem>>, %arg6: memref<1x128xf32, #tpu.memory_space<vmem>>, %arg7: memref<1x128xf32, #tpu.memory_space<vmem>>, %arg8: memref<1x128xf32, #tpu.memory_space<vmem>>, %arg9: memref<1x128xf32, #tpu.memory_space<vmem>>, %arg10: memref<16x128xf32, #tpu.memory_space<vmem>>) attributes {dimension_semantics = [#tpu.dimension_semantics<parallel>], iteration_bounds = array<i64: 1>, scalar_prefetch = 0 : i64, scratch_operands = 0 : i64, tpu.core_type = #tpu.core_type<tc>, window_params = [{transform_indices = @transform_0, window_bounds = array<i64: 16, 128>}, {pipeline_mode = #tpu.pipeline_mode<synchronous>, transform_indices = @transform_1, window_bounds = array<i64: 128, 256>}, {pipeline_mode = #tpu.pipeline_mode<synchronous>, transform_indices = @transform_2, window_bounds = array<i64: 1, 256>}, {pipeline_mode = #tpu.pipeline_mode<synchronous>, transform_indices = @transform_3, window_bounds = array<i64: 256, 128>}, {pipeline_mode = #tpu.pipeline_mode<synchronous>, transform_indices = @transform_4, window_bounds = array<i64: 1, 128>}, {pipeline_mode = #tpu.pipeline_mode<synchronous>, transform_indices = @transform_5, window_bounds = array<i64: 1, 128>}, {pipeline_mode = #tpu.pipeline_mode<synchronous>, transform_indices = @transform_6, window_bounds = array<i64: 1, 128>}, {pipeline_mode = #tpu.pipeline_mode<synchronous>, transform_indices = @transform_7, window_bounds = array<i64: 1, 128>}, {pipeline_mode = #tpu.pipeline_mode<synchronous>, transform_indices = @transform_8, window_bounds = array<i64: 1, 128>}, {transform_indices = @transform_9, window_bounds = array<i64: 16, 128>}]} {
    %c0 = arith.constant 0 : index
    %c0_0 = arith.constant 0 : index
    %0 = vector.load %arg1[%c0, %c0_0] : memref<16x128xf32, #tpu.memory_space<vmem>>, vector<16x128xf32>
    %1 = arith.truncf %0 : vector<16x128xf32> to vector<16x128xbf16>
    %c0_1 = arith.constant 0 : index
    %c0_2 = arith.constant 0 : index
    %2 = vector.load %arg2[%c0_1, %c0_2] : memref<128x256xbf16, #tpu.memory_space<vmem>>, vector<128x256xbf16>
    %cst = arith.constant dense<0.000000e+00> : vector<16x256xf32>
    %3 = tpu.matmul %1, %2, %cst {dimension_numbers = #tpu.dot_dimension_numbers<[1], [0], [0], [1], [0, 0, 1, 1], [], []>} : vector<16x128xbf16>, vector<128x256xbf16>, vector<16x256xf32> -> vector<16x256xf32>
    %c0_3 = arith.constant 0 : index
    %c0_4 = arith.constant 0 : index
    %4 = vector.load %arg3[%c0_3, %c0_4] : memref<1x256xf32, #tpu.memory_space<vmem>>, vector<1x256xf32>
    %5 = vector.broadcast %4 : vector<1x256xf32> to vector<16x256xf32>
    %6 = arith.addf %3, %5 : vector<16x256xf32>
    %cst_5 = arith.constant 0.000000e+00 : f32
    %7 = vector.broadcast %cst_5 : f32 to vector<16x256xf32>
    %8 = arith.maximumf %6, %7 : vector<16x256xf32>
    %9 = arith.truncf %8 : vector<16x256xf32> to vector<16x256xbf16>
    %c0_6 = arith.constant 0 : index
    %c0_7 = arith.constant 0 : index
    %10 = vector.load %arg4[%c0_6, %c0_7] : memref<256x128xbf16, #tpu.memory_space<vmem>>, vector<256x128xbf16>
    %cst_8 = arith.constant dense<0.000000e+00> : vector<16x128xf32>
    %11 = tpu.matmul %9, %10, %cst_8 {dimension_numbers = #tpu.dot_dimension_numbers<[1], [0], [0], [1], [0, 0, 1, 1], [], []>} : vector<16x256xbf16>, vector<256x128xbf16>, vector<16x128xf32> -> vector<16x128xf32>
    %c0_9 = arith.constant 0 : index
    %c0_10 = arith.constant 0 : index
    %12 = vector.load %arg5[%c0_9, %c0_10] : memref<1x128xf32, #tpu.memory_space<vmem>>, vector<1x128xf32>
    %13 = vector.broadcast %12 : vector<1x128xf32> to vector<16x128xf32>
    %14 = arith.addf %11, %13 : vector<16x128xf32>
    %15 = arith.addf %0, %14 : vector<16x128xf32>
    %c0_11 = arith.constant 0 : index
    %c0_12 = arith.constant 0 : index
    %16 = vector.load %arg6[%c0_11, %c0_12] : memref<1x128xf32, #tpu.memory_space<vmem>>, vector<1x128xf32>
    %c0_13 = arith.constant 0 : index
    %c0_14 = arith.constant 0 : index
    %17 = vector.load %arg7[%c0_13, %c0_14] : memref<1x128xf32, #tpu.memory_space<vmem>>, vector<1x128xf32>
    %cst_15 = arith.constant dense<0.000000e+00> : vector<16xf32>
    %18 = vector.multi_reduction <add>, %15, %cst_15 [1] : vector<16x128xf32> to vector<16xf32>
    %19 = vector.shape_cast %18 : vector<16xf32> to vector<16x1xf32>
    %cst_16 = arith.constant 1.280000e+02 : f32
    %20 = vector.broadcast %cst_16 : f32 to vector<16x1xf32>
    %21 = arith.divf %19, %20 : vector<16x1xf32>
    %22 = vector.broadcast %21 : vector<16x1xf32> to vector<16x128xf32>
    %23 = arith.subf %15, %22 : vector<16x128xf32>
    %24 = arith.mulf %23, %23 : vector<16x128xf32>
    %cst_17 = arith.constant dense<0.000000e+00> : vector<16xf32>
    %25 = vector.multi_reduction <add>, %24, %cst_17 [1] : vector<16x128xf32> to vector<16xf32>
    %26 = vector.shape_cast %25 : vector<16xf32> to vector<16x1xf32>
    %cst_18 = arith.constant 1.280000e+02 : f32
    %27 = vector.broadcast %cst_18 : f32 to vector<16x1xf32>
    %28 = arith.divf %26, %27 : vector<16x1xf32>
    %29 = vector.broadcast %21 : vector<16x1xf32> to vector<16x128xf32>
    %30 = arith.subf %15, %29 : vector<16x128xf32>
    %cst_19 = arith.constant 9.99999974E-6 : f32
    %31 = vector.broadcast %cst_19 : f32 to vector<16x1xf32>
    %32 = arith.addf %28, %31 : vector<16x1xf32>
    %33 = math.rsqrt %32 : vector<16x1xf32>
    %34 = vector.broadcast %33 : vector<16x1xf32> to vector<16x128xf32>
    %35 = arith.mulf %30, %34 : vector<16x128xf32>
    %36 = vector.broadcast %16 : vector<1x128xf32> to vector<16x128xf32>
    %37 = arith.mulf %35, %36 : vector<16x128xf32>
    %38 = vector.broadcast %17 : vector<1x128xf32> to vector<16x128xf32>
    %39 = arith.addf %37, %38 : vector<16x128xf32>
    %c0_20 = arith.constant 0 : index
    %c0_21 = arith.constant 0 : index
    %40 = vector.load %arg8[%c0_20, %c0_21] : memref<1x128xf32, #tpu.memory_space<vmem>>, vector<1x128xf32>
    %c0_22 = arith.constant 0 : index
    %c0_23 = arith.constant 0 : index
    %41 = vector.load %arg9[%c0_22, %c0_23] : memref<1x128xf32, #tpu.memory_space<vmem>>, vector<1x128xf32>
    %cst_24 = arith.constant dense<0.000000e+00> : vector<16xf32>
    %42 = vector.multi_reduction <add>, %39, %cst_24 [1] : vector<16x128xf32> to vector<16xf32>
    %43 = vector.shape_cast %42 : vector<16xf32> to vector<16x1xf32>
    %cst_25 = arith.constant 1.280000e+02 : f32
    %44 = vector.broadcast %cst_25 : f32 to vector<16x1xf32>
    %45 = arith.divf %43, %44 : vector<16x1xf32>
    %46 = vector.broadcast %45 : vector<16x1xf32> to vector<16x128xf32>
    %47 = arith.subf %39, %46 : vector<16x128xf32>
    %48 = arith.mulf %47, %47 : vector<16x128xf32>
    %cst_26 = arith.constant dense<0.000000e+00> : vector<16xf32>
    %49 = vector.multi_reduction <add>, %48, %cst_26 [1] : vector<16x128xf32> to vector<16xf32>
    %50 = vector.shape_cast %49 : vector<16xf32> to vector<16x1xf32>
    %cst_27 = arith.constant 1.280000e+02 : f32
    %51 = vector.broadcast %cst_27 : f32 to vector<16x1xf32>
    %52 = arith.divf %50, %51 : vector<16x1xf32>
    %53 = vector.broadcast %45 : vector<16x1xf32> to vector<16x128xf32>
    %54 = arith.subf %39, %53 : vector<16x128xf32>
    %cst_28 = arith.constant 9.99999974E-6 : f32
    %55 = vector.broadcast %cst_28 : f32 to vector<16x1xf32>
    %56 = arith.addf %52, %55 : vector<16x1xf32>
    %57 = math.rsqrt %56 : vector<16x1xf32>
    %58 = vector.broadcast %57 : vector<16x1xf32> to vector<16x128xf32>
    %59 = arith.mulf %54, %58 : vector<16x128xf32>
    %60 = vector.broadcast %40 : vector<1x128xf32> to vector<16x128xf32>
    %61 = arith.mulf %59, %60 : vector<16x128xf32>
    %62 = vector.broadcast %41 : vector<1x128xf32> to vector<16x128xf32>
    %63 = arith.addf %61, %62 : vector<16x128xf32>
    %c0_29 = arith.constant 0 : index
    %c0_30 = arith.constant 0 : index
    %64 = vector.load %arg10[%c0_29, %c0_30] : memref<16x128xf32, #tpu.memory_space<vmem>>, vector<16x128xf32>
    tpu.vector_store %arg10[%c0_29, %c0_30], %63 {strides = array<i32>} : memref<16x128xf32, #tpu.memory_space<vmem>>, vector<16x128xf32>,
    return
  }
  func.func @transform_0(%arg0: i32) -> (i32, i32) {
    %c0_i32 = arith.constant 0 : i32
    %c0_i32_0 = arith.constant 0 : i32
    return %arg0, %c0_i32 : i32, i32
  }
  func.func @transform_1(%arg0: i32) -> (i32, i32) {
    %c0_i32 = arith.constant 0 : i32
    %c0_i32_0 = arith.constant 0 : i32
    %c0_i32_1 = arith.constant 0 : i32
    return %c0_i32, %c0_i32_0 : i32, i32
  }
  func.func @transform_2(%arg0: i32) -> (i32, i32) {
    %c0_i32 = arith.constant 0 : i32
    %c0_i32_0 = arith.constant 0 : i32
    %c0_i32_1 = arith.constant 0 : i32
    return %c0_i32, %c0_i32_0 : i32, i32
  }
  func.func @transform_3(%arg0: i32) -> (i32, i32) {
    %c0_i32 = arith.constant 0 : i32
    %c0_i32_0 = arith.constant 0 : i32
    %c0_i32_1 = arith.constant 0 : i32
    return %c0_i32, %c0_i32_0 : i32, i32
  }
  func.func @transform_4(%arg0: i32) -> (i32, i32) {
    %c0_i32 = arith.constant 0 : i32
    %c0_i32_0 = arith.constant 0 : i32
    %c0_i32_1 = arith.constant 0 : i32
    return %c0_i32, %c0_i32_0 : i32, i32
  }
  func.func @transform_5(%arg0: i32) -> (i32, i32) {
    %c0_i32 = arith.constant 0 : i32
    %c0_i32_0 = arith.constant 0 : i32
    %c0_i32_1 = arith.constant 0 : i32
    return %c0_i32, %c0_i32_0 : i32, i32
  }
  func.func @transform_6(%arg0: i32) -> (i32, i32) {
    %c0_i32 = arith.constant 0 : i32
    %c0_i32_0 = arith.constant 0 : i32
    %c0_i32_1 = arith.constant 0 : i32
    return %c0_i32, %c0_i32_0 : i32, i32
  }
  func.func @transform_7(%arg0: i32) -> (i32, i32) {
    %c0_i32 = arith.constant 0 : i32
    %c0_i32_0 = arith.constant 0 : i32
    %c0_i32_1 = arith.constant 0 : i32
    return %c0_i32, %c0_i32_0 : i32, i32
  }
  func.func @transform_8(%arg0: i32) -> (i32, i32) {
    %c0_i32 = arith.constant 0 : i32
    %c0_i32_0 = arith.constant 0 : i32
    %c0_i32_1 = arith.constant 0 : i32
    return %c0_i32, %c0_i32_0 : i32, i32
  }
  func.func @transform_9(%arg0: i32) -> (i32, i32) {
    %c0_i32 = arith.constant 0 : i32
    %c0_i32_0 = arith.constant 0 : i32
    return %arg0, %c0_i32 : i32, i32
  }
}

module attributes {stable_mosaic.version = 11 : i64} {
  func.func @_self_attn_block_kernel(%arg0: i32, %arg1: memref<1x8x128xf32, #tpu.memory_space<vmem>>, %arg2: memref<128x384xbf16, #tpu.memory_space<vmem>>, %arg3: memref<1x384xf32, #tpu.memory_space<vmem>>, %arg4: memref<128x128xbf16, #tpu.memory_space<vmem>>, %arg5: memref<1x128xf32, #tpu.memory_space<vmem>>, %arg6: memref<1x128xf32, #tpu.memory_space<vmem>>, %arg7: memref<1x128xf32, #tpu.memory_space<vmem>>, %arg8: memref<1x8x128xf32, #tpu.memory_space<vmem>>) attributes {dimension_semantics = [#tpu.dimension_semantics<parallel>], iteration_bounds = array<i64: 2>, scalar_prefetch = 0 : i64, scratch_operands = 0 : i64, tpu.core_type = #tpu.core_type<tc>, window_params = [{transform_indices = @transform_0, window_bounds = array<i64: 1, 8, 128>}, {pipeline_mode = #tpu.pipeline_mode<synchronous>, transform_indices = @transform_1, window_bounds = array<i64: 128, 384>}, {pipeline_mode = #tpu.pipeline_mode<synchronous>, transform_indices = @transform_2, window_bounds = array<i64: 1, 384>}, {pipeline_mode = #tpu.pipeline_mode<synchronous>, transform_indices = @transform_3, window_bounds = array<i64: 128, 128>}, {pipeline_mode = #tpu.pipeline_mode<synchronous>, transform_indices = @transform_4, window_bounds = array<i64: 1, 128>}, {pipeline_mode = #tpu.pipeline_mode<synchronous>, transform_indices = @transform_5, window_bounds = array<i64: 1, 128>}, {pipeline_mode = #tpu.pipeline_mode<synchronous>, transform_indices = @transform_6, window_bounds = array<i64: 1, 128>}, {transform_indices = @transform_7, window_bounds = array<i64: 1, 8, 128>}]} {
    %c0 = arith.constant 0 : index
    %c0_0 = arith.constant 0 : index
    %c0_1 = arith.constant 0 : index
    %0 = vector.load %arg1[%c0, %c0_0, %c0_1] : memref<1x8x128xf32, #tpu.memory_space<vmem>>, vector<1x8x128xf32>
    %1 = vector.shape_cast %0 : vector<1x8x128xf32> to vector<8x128xf32>
    %2 = arith.truncf %1 : vector<8x128xf32> to vector<8x128xbf16>
    %c0_2 = arith.constant 0 : index
    %c0_3 = arith.constant 0 : index
    %3 = vector.load %arg2[%c0_2, %c0_3] : memref<128x384xbf16, #tpu.memory_space<vmem>>, vector<128x384xbf16>
    %cst = arith.constant dense<0.000000e+00> : vector<8x384xf32>
    %4 = tpu.matmul %2, %3, %cst {dimension_numbers = #tpu.dot_dimension_numbers<[1], [0], [0], [1], [0, 0, 1, 1], [], []>} : vector<8x128xbf16>, vector<128x384xbf16>, vector<8x384xf32> -> vector<8x384xf32>
    %c0_4 = arith.constant 0 : index
    %c0_5 = arith.constant 0 : index
    %5 = vector.load %arg3[%c0_4, %c0_5] : memref<1x384xf32, #tpu.memory_space<vmem>>, vector<1x384xf32>
    %6 = vector.broadcast %5 : vector<1x384xf32> to vector<8x384xf32>
    %7 = arith.addf %4, %6 : vector<8x384xf32>
    %8 = arith.truncf %7 : vector<8x384xf32> to vector<8x384xbf16>
    %9 = vector.extract_strided_slice %8 {offsets = [0, 0], sizes = [8, 128], strides = [1, 1]} : vector<8x384xbf16> to vector<8x128xbf16>
    %10 = vector.extract_strided_slice %8 {offsets = [0, 128], sizes = [8, 256], strides = [1, 1]} : vector<8x384xbf16> to vector<8x256xbf16>
    %c0_6 = arith.constant 0 : index
    %c0_7 = arith.constant 0 : index
    %11 = vector.load %arg4[%c0_6, %c0_7] : memref<128x128xbf16, #tpu.memory_space<vmem>>, vector<128x128xbf16>
    %cst_8 = arith.constant 0.000000e+00 : f32
    %12 = vector.broadcast %cst_8 : f32 to vector<8x128xf32>
    %13 = vector.extract_strided_slice %9 {offsets = [0, 0], sizes = [8, 32], strides = [1, 1]} : vector<8x128xbf16> to vector<8x32xbf16>
    %14 = vector.extract_strided_slice %10 {offsets = [0, 0], sizes = [8, 32], strides = [1, 1]} : vector<8x256xbf16> to vector<8x32xbf16>
    %15 = vector.extract_strided_slice %10 {offsets = [0, 128], sizes = [8, 32], strides = [1, 1]} : vector<8x256xbf16> to vector<8x32xbf16>
    %cst_9 = arith.constant dense<0.000000e+00> : vector<8x8xf32>
    %16 = tpu.matmul %13, %14, %cst_9 {dimension_numbers = #tpu.dot_dimension_numbers<[1], [1], [0], [0], [0, 0, 1, 0], [], []>} : vector<8x32xbf16>, vector<8x32xbf16>, vector<8x8xf32> -> vector<8x8xf32>
    %cst_10 = arith.constant 0.176776692 : f32
    %17 = vector.broadcast %cst_10 : f32 to vector<8x8xf32>
    %18 = arith.mulf %16, %17 : vector<8x8xf32>
    %cst_11 = arith.constant dense<0xFF800000> : vector<8xf32>
    %19 = vector.multi_reduction <maximumf>, %18, %cst_11 [1] : vector<8x8xf32> to vector<8xf32>
    %20 = vector.shape_cast %19 : vector<8xf32> to vector<8x1xf32>
    %21 = vector.broadcast %20 : vector<8x1xf32> to vector<8x8xf32>
    %22 = arith.subf %18, %21 : vector<8x8xf32>
    %23 = math.exp %22 : vector<8x8xf32>
    %cst_12 = arith.constant dense<0.000000e+00> : vector<8xf32>
    %24 = vector.multi_reduction <add>, %23, %cst_12 [1] : vector<8x8xf32> to vector<8xf32>
    %25 = vector.shape_cast %24 : vector<8xf32> to vector<8x1xf32>
    %26 = tpu.reciprocal %25 {approx = true} : vector<8x1xf32> -> vector<8x1xf32>
    %27 = vector.broadcast %26 : vector<8x1xf32> to vector<8x8xf32>
    %28 = arith.mulf %23, %27 : vector<8x8xf32>
    %29 = arith.truncf %28 : vector<8x8xf32> to vector<8x8xbf16>
    %cst_13 = arith.constant dense<0.000000e+00> : vector<8x32xf32>
    %30 = tpu.matmul %29, %15, %cst_13 {dimension_numbers = #tpu.dot_dimension_numbers<[1], [0], [0], [1], [0, 0, 1, 1], [], []>} : vector<8x8xbf16>, vector<8x32xbf16>, vector<8x32xf32> -> vector<8x32xf32>
    %31 = arith.truncf %30 : vector<8x32xf32> to vector<8x32xbf16>
    %32 = vector.extract_strided_slice %11 {offsets = [0, 0], sizes = [32, 128], strides = [1, 1]} : vector<128x128xbf16> to vector<32x128xbf16>
    %cst_14 = arith.constant dense<0.000000e+00> : vector<8x128xf32>
    %33 = tpu.matmul %31, %32, %cst_14 {dimension_numbers = #tpu.dot_dimension_numbers<[1], [0], [0], [1], [0, 0, 1, 1], [], []>} : vector<8x32xbf16>, vector<32x128xbf16>, vector<8x128xf32> -> vector<8x128xf32>
    %34 = arith.addf %12, %33 : vector<8x128xf32>
    %35 = vector.extract_strided_slice %9 {offsets = [0, 32], sizes = [8, 32], strides = [1, 1]} : vector<8x128xbf16> to vector<8x32xbf16>
    %36 = vector.extract_strided_slice %10 {offsets = [0, 32], sizes = [8, 32], strides = [1, 1]} : vector<8x256xbf16> to vector<8x32xbf16>
    %37 = vector.extract_strided_slice %10 {offsets = [0, 160], sizes = [8, 32], strides = [1, 1]} : vector<8x256xbf16> to vector<8x32xbf16>
    %cst_15 = arith.constant dense<0.000000e+00> : vector<8x8xf32>
    %38 = tpu.matmul %35, %36, %cst_15 {dimension_numbers = #tpu.dot_dimension_numbers<[1], [1], [0], [0], [0, 0, 1, 0], [], []>} : vector<8x32xbf16>, vector<8x32xbf16>, vector<8x8xf32> -> vector<8x8xf32>
    %cst_16 = arith.constant 0.176776692 : f32
    %39 = vector.broadcast %cst_16 : f32 to vector<8x8xf32>
    %40 = arith.mulf %38, %39 : vector<8x8xf32>
    %cst_17 = arith.constant dense<0xFF800000> : vector<8xf32>
    %41 = vector.multi_reduction <maximumf>, %40, %cst_17 [1] : vector<8x8xf32> to vector<8xf32>
    %42 = vector.shape_cast %41 : vector<8xf32> to vector<8x1xf32>
    %43 = vector.broadcast %42 : vector<8x1xf32> to vector<8x8xf32>
    %44 = arith.subf %40, %43 : vector<8x8xf32>
    %45 = math.exp %44 : vector<8x8xf32>
    %cst_18 = arith.constant dense<0.000000e+00> : vector<8xf32>
    %46 = vector.multi_reduction <add>, %45, %cst_18 [1] : vector<8x8xf32> to vector<8xf32>
    %47 = vector.shape_cast %46 : vector<8xf32> to vector<8x1xf32>
    %48 = tpu.reciprocal %47 {approx = true} : vector<8x1xf32> -> vector<8x1xf32>
    %49 = vector.broadcast %48 : vector<8x1xf32> to vector<8x8xf32>
    %50 = arith.mulf %45, %49 : vector<8x8xf32>
    %51 = arith.truncf %50 : vector<8x8xf32> to vector<8x8xbf16>
    %cst_19 = arith.constant dense<0.000000e+00> : vector<8x32xf32>
    %52 = tpu.matmul %51, %37, %cst_19 {dimension_numbers = #tpu.dot_dimension_numbers<[1], [0], [0], [1], [0, 0, 1, 1], [], []>} : vector<8x8xbf16>, vector<8x32xbf16>, vector<8x32xf32> -> vector<8x32xf32>
    %53 = arith.truncf %52 : vector<8x32xf32> to vector<8x32xbf16>
    %54 = vector.extract_strided_slice %11 {offsets = [32, 0], sizes = [32, 128], strides = [1, 1]} : vector<128x128xbf16> to vector<32x128xbf16>
    %cst_20 = arith.constant dense<0.000000e+00> : vector<8x128xf32>
    %55 = tpu.matmul %53, %54, %cst_20 {dimension_numbers = #tpu.dot_dimension_numbers<[1], [0], [0], [1], [0, 0, 1, 1], [], []>} : vector<8x32xbf16>, vector<32x128xbf16>, vector<8x128xf32> -> vector<8x128xf32>
    %56 = arith.addf %34, %55 : vector<8x128xf32>
    %57 = vector.extract_strided_slice %9 {offsets = [0, 64], sizes = [8, 32], strides = [1, 1]} : vector<8x128xbf16> to vector<8x32xbf16>
    %58 = vector.extract_strided_slice %10 {offsets = [0, 64], sizes = [8, 32], strides = [1, 1]} : vector<8x256xbf16> to vector<8x32xbf16>
    %59 = vector.extract_strided_slice %10 {offsets = [0, 192], sizes = [8, 32], strides = [1, 1]} : vector<8x256xbf16> to vector<8x32xbf16>
    %cst_21 = arith.constant dense<0.000000e+00> : vector<8x8xf32>
    %60 = tpu.matmul %57, %58, %cst_21 {dimension_numbers = #tpu.dot_dimension_numbers<[1], [1], [0], [0], [0, 0, 1, 0], [], []>} : vector<8x32xbf16>, vector<8x32xbf16>, vector<8x8xf32> -> vector<8x8xf32>
    %cst_22 = arith.constant 0.176776692 : f32
    %61 = vector.broadcast %cst_22 : f32 to vector<8x8xf32>
    %62 = arith.mulf %60, %61 : vector<8x8xf32>
    %cst_23 = arith.constant dense<0xFF800000> : vector<8xf32>
    %63 = vector.multi_reduction <maximumf>, %62, %cst_23 [1] : vector<8x8xf32> to vector<8xf32>
    %64 = vector.shape_cast %63 : vector<8xf32> to vector<8x1xf32>
    %65 = vector.broadcast %64 : vector<8x1xf32> to vector<8x8xf32>
    %66 = arith.subf %62, %65 : vector<8x8xf32>
    %67 = math.exp %66 : vector<8x8xf32>
    %cst_24 = arith.constant dense<0.000000e+00> : vector<8xf32>
    %68 = vector.multi_reduction <add>, %67, %cst_24 [1] : vector<8x8xf32> to vector<8xf32>
    %69 = vector.shape_cast %68 : vector<8xf32> to vector<8x1xf32>
    %70 = tpu.reciprocal %69 {approx = true} : vector<8x1xf32> -> vector<8x1xf32>
    %71 = vector.broadcast %70 : vector<8x1xf32> to vector<8x8xf32>
    %72 = arith.mulf %67, %71 : vector<8x8xf32>
    %73 = arith.truncf %72 : vector<8x8xf32> to vector<8x8xbf16>
    %cst_25 = arith.constant dense<0.000000e+00> : vector<8x32xf32>
    %74 = tpu.matmul %73, %59, %cst_25 {dimension_numbers = #tpu.dot_dimension_numbers<[1], [0], [0], [1], [0, 0, 1, 1], [], []>} : vector<8x8xbf16>, vector<8x32xbf16>, vector<8x32xf32> -> vector<8x32xf32>
    %75 = arith.truncf %74 : vector<8x32xf32> to vector<8x32xbf16>
    %76 = vector.extract_strided_slice %11 {offsets = [64, 0], sizes = [32, 128], strides = [1, 1]} : vector<128x128xbf16> to vector<32x128xbf16>
    %cst_26 = arith.constant dense<0.000000e+00> : vector<8x128xf32>
    %77 = tpu.matmul %75, %76, %cst_26 {dimension_numbers = #tpu.dot_dimension_numbers<[1], [0], [0], [1], [0, 0, 1, 1], [], []>} : vector<8x32xbf16>, vector<32x128xbf16>, vector<8x128xf32> -> vector<8x128xf32>
    %78 = arith.addf %56, %77 : vector<8x128xf32>
    %79 = vector.extract_strided_slice %9 {offsets = [0, 96], sizes = [8, 32], strides = [1, 1]} : vector<8x128xbf16> to vector<8x32xbf16>
    %80 = vector.extract_strided_slice %10 {offsets = [0, 96], sizes = [8, 32], strides = [1, 1]} : vector<8x256xbf16> to vector<8x32xbf16>
    %81 = vector.extract_strided_slice %10 {offsets = [0, 224], sizes = [8, 32], strides = [1, 1]} : vector<8x256xbf16> to vector<8x32xbf16>
    %cst_27 = arith.constant dense<0.000000e+00> : vector<8x8xf32>
    %82 = tpu.matmul %79, %80, %cst_27 {dimension_numbers = #tpu.dot_dimension_numbers<[1], [1], [0], [0], [0, 0, 1, 0], [], []>} : vector<8x32xbf16>, vector<8x32xbf16>, vector<8x8xf32> -> vector<8x8xf32>
    %cst_28 = arith.constant 0.176776692 : f32
    %83 = vector.broadcast %cst_28 : f32 to vector<8x8xf32>
    %84 = arith.mulf %82, %83 : vector<8x8xf32>
    %cst_29 = arith.constant dense<0xFF800000> : vector<8xf32>
    %85 = vector.multi_reduction <maximumf>, %84, %cst_29 [1] : vector<8x8xf32> to vector<8xf32>
    %86 = vector.shape_cast %85 : vector<8xf32> to vector<8x1xf32>
    %87 = vector.broadcast %86 : vector<8x1xf32> to vector<8x8xf32>
    %88 = arith.subf %84, %87 : vector<8x8xf32>
    %89 = math.exp %88 : vector<8x8xf32>
    %cst_30 = arith.constant dense<0.000000e+00> : vector<8xf32>
    %90 = vector.multi_reduction <add>, %89, %cst_30 [1] : vector<8x8xf32> to vector<8xf32>
    %91 = vector.shape_cast %90 : vector<8xf32> to vector<8x1xf32>
    %92 = tpu.reciprocal %91 {approx = true} : vector<8x1xf32> -> vector<8x1xf32>
    %93 = vector.broadcast %92 : vector<8x1xf32> to vector<8x8xf32>
    %94 = arith.mulf %89, %93 : vector<8x8xf32>
    %95 = arith.truncf %94 : vector<8x8xf32> to vector<8x8xbf16>
    %cst_31 = arith.constant dense<0.000000e+00> : vector<8x32xf32>
    %96 = tpu.matmul %95, %81, %cst_31 {dimension_numbers = #tpu.dot_dimension_numbers<[1], [0], [0], [1], [0, 0, 1, 1], [], []>} : vector<8x8xbf16>, vector<8x32xbf16>, vector<8x32xf32> -> vector<8x32xf32>
    %97 = arith.truncf %96 : vector<8x32xf32> to vector<8x32xbf16>
    %98 = vector.extract_strided_slice %11 {offsets = [96, 0], sizes = [32, 128], strides = [1, 1]} : vector<128x128xbf16> to vector<32x128xbf16>
    %cst_32 = arith.constant dense<0.000000e+00> : vector<8x128xf32>
    %99 = tpu.matmul %97, %98, %cst_32 {dimension_numbers = #tpu.dot_dimension_numbers<[1], [0], [0], [1], [0, 0, 1, 1], [], []>} : vector<8x32xbf16>, vector<32x128xbf16>, vector<8x128xf32> -> vector<8x128xf32>
    %100 = arith.addf %78, %99 : vector<8x128xf32>
    %c0_33 = arith.constant 0 : index
    %c0_34 = arith.constant 0 : index
    %101 = vector.load %arg5[%c0_33, %c0_34] : memref<1x128xf32, #tpu.memory_space<vmem>>, vector<1x128xf32>
    %102 = vector.broadcast %101 : vector<1x128xf32> to vector<8x128xf32>
    %103 = arith.addf %100, %102 : vector<8x128xf32>
    %104 = arith.addf %1, %103 : vector<8x128xf32>
    %c0_35 = arith.constant 0 : index
    %c0_36 = arith.constant 0 : index
    %105 = vector.load %arg6[%c0_35, %c0_36] : memref<1x128xf32, #tpu.memory_space<vmem>>, vector<1x128xf32>
    %c0_37 = arith.constant 0 : index
    %c0_38 = arith.constant 0 : index
    %106 = vector.load %arg7[%c0_37, %c0_38] : memref<1x128xf32, #tpu.memory_space<vmem>>, vector<1x128xf32>
    %cst_39 = arith.constant dense<0.000000e+00> : vector<8xf32>
    %107 = vector.multi_reduction <add>, %104, %cst_39 [1] : vector<8x128xf32> to vector<8xf32>
    %108 = vector.shape_cast %107 : vector<8xf32> to vector<8x1xf32>
    %cst_40 = arith.constant 1.280000e+02 : f32
    %109 = vector.broadcast %cst_40 : f32 to vector<8x1xf32>
    %110 = arith.divf %108, %109 : vector<8x1xf32>
    %111 = vector.broadcast %110 : vector<8x1xf32> to vector<8x128xf32>
    %112 = arith.subf %104, %111 : vector<8x128xf32>
    %113 = arith.mulf %112, %112 : vector<8x128xf32>
    %cst_41 = arith.constant dense<0.000000e+00> : vector<8xf32>
    %114 = vector.multi_reduction <add>, %113, %cst_41 [1] : vector<8x128xf32> to vector<8xf32>
    %115 = vector.shape_cast %114 : vector<8xf32> to vector<8x1xf32>
    %cst_42 = arith.constant 1.280000e+02 : f32
    %116 = vector.broadcast %cst_42 : f32 to vector<8x1xf32>
    %117 = arith.divf %115, %116 : vector<8x1xf32>
    %118 = vector.broadcast %110 : vector<8x1xf32> to vector<8x128xf32>
    %119 = arith.subf %104, %118 : vector<8x128xf32>
    %cst_43 = arith.constant 9.99999974E-6 : f32
    %120 = vector.broadcast %cst_43 : f32 to vector<8x1xf32>
    %121 = arith.addf %117, %120 : vector<8x1xf32>
    %122 = math.rsqrt %121 : vector<8x1xf32>
    %123 = vector.broadcast %122 : vector<8x1xf32> to vector<8x128xf32>
    %124 = arith.mulf %119, %123 : vector<8x128xf32>
    %125 = vector.broadcast %105 : vector<1x128xf32> to vector<8x128xf32>
    %126 = arith.mulf %124, %125 : vector<8x128xf32>
    %127 = vector.broadcast %106 : vector<1x128xf32> to vector<8x128xf32>
    %128 = arith.addf %126, %127 : vector<8x128xf32>
    %c0_44 = arith.constant 0 : index
    %c0_45 = arith.constant 0 : index
    %c0_46 = arith.constant 0 : index
    %129 = vector.load %arg8[%c0_44, %c0_45, %c0_46] : memref<1x8x128xf32, #tpu.memory_space<vmem>>, vector<1x8x128xf32>
    %130 = vector.shape_cast %129 : vector<1x8x128xf32> to vector<8x128xf32>
    %131 = vector.shape_cast %128 : vector<8x128xf32> to vector<1x8x128xf32>
    tpu.vector_store %arg8[%c0_44, %c0_45, %c0_46], %131 {strides = array<i32>} : memref<1x8x128xf32, #tpu.memory_space<vmem>>, vector<1x8x128xf32>,
    return
  }
  func.func @transform_0(%arg0: i32) -> (i32, i32, i32) {
    %c0_i32 = arith.constant 0 : i32
    %c0_i32_0 = arith.constant 0 : i32
    %c0_i32_1 = arith.constant 0 : i32
    return %arg0, %c0_i32, %c0_i32_0 : i32, i32, i32
  }
  func.func @transform_1(%arg0: i32) -> (i32, i32) {
    %c0_i32 = arith.constant 0 : i32
    %c0_i32_0 = arith.constant 0 : i32
    %c0_i32_1 = arith.constant 0 : i32
    return %c0_i32, %c0_i32_0 : i32, i32
  }
  func.func @transform_2(%arg0: i32) -> (i32, i32) {
    %c0_i32 = arith.constant 0 : i32
    %c0_i32_0 = arith.constant 0 : i32
    %c0_i32_1 = arith.constant 0 : i32
    return %c0_i32, %c0_i32_0 : i32, i32
  }
  func.func @transform_3(%arg0: i32) -> (i32, i32) {
    %c0_i32 = arith.constant 0 : i32
    %c0_i32_0 = arith.constant 0 : i32
    %c0_i32_1 = arith.constant 0 : i32
    return %c0_i32, %c0_i32_0 : i32, i32
  }
  func.func @transform_4(%arg0: i32) -> (i32, i32) {
    %c0_i32 = arith.constant 0 : i32
    %c0_i32_0 = arith.constant 0 : i32
    %c0_i32_1 = arith.constant 0 : i32
    return %c0_i32, %c0_i32_0 : i32, i32
  }
  func.func @transform_5(%arg0: i32) -> (i32, i32) {
    %c0_i32 = arith.constant 0 : i32
    %c0_i32_0 = arith.constant 0 : i32
    %c0_i32_1 = arith.constant 0 : i32
    return %c0_i32, %c0_i32_0 : i32, i32
  }
  func.func @transform_6(%arg0: i32) -> (i32, i32) {
    %c0_i32 = arith.constant 0 : i32
    %c0_i32_0 = arith.constant 0 : i32
    %c0_i32_1 = arith.constant 0 : i32
    return %c0_i32, %c0_i32_0 : i32, i32
  }
  func.func @transform_7(%arg0: i32) -> (i32, i32, i32) {
    %c0_i32 = arith.constant 0 : i32
    %c0_i32_0 = arith.constant 0 : i32
    %c0_i32_1 = arith.constant 0 : i32
    return %arg0, %c0_i32, %c0_i32_0 : i32, i32, i32
  }
}

</mosaic_0001>

<llo_original>
// kernel: _lambda_.7
$region0: #{_lambda_.7}
  #allocation0 [shape = 'u32[]', space=smem, size = 0x4, offset = 0x4, fixed_abs, tag = 'smem constant byte address 0x4 - core index']
  #allocation1 [shape = 'u32[144,128]{1,0:T(1,128)}', space=vmem, size = 0x12000, scoped, tag = 'internal scratch']
  %s0 = inlined_call_operand.vmem [shape: f32[2,16,128], index: 0, kind: input, shape index: {}]
  %s1 = inlined_call_operand.vmem [shape: bf16[128,256], index: 1, kind: input, shape index: {}]
  %s2 = inlined_call_operand.vmem [shape: f32[1,256], index: 2, kind: input, shape index: {}]
  %s3 = inlined_call_operand.vmem [shape: bf16[2,16,256], index: 3, kind: output, shape index: {}]
  %s4 = sld [smem:[#allocation0]]
  $region45: #{_lambda_.7} parent=0
    _
  %s6 = ssub.s32 1, %s4
  %s7 = scalar_select 0, %s6, %s4
  loop: start=0, step=1, limit=4
  $region2: #{_lambda_.7} parent=0 // loop_pre_header
    _
  $region3: #{_lambda_.7} parent=0 // loop_header
    %s9 = sphi 0, %s13
    %p10 = scmp.ge.s32.totalorder %s9, 4
    %s19 = sphi 0, %s21
    %s22 = sphi 0, %s19
    %s23 = sphi 0, %s22
    %s39 = sphi 0, %s23
    %s43 = sphi 0, %s43
    %s45 = sphi 0, %s43
    %s46 = sphi 0, %s45
    %s60 = sphi 0, %s46
    %s64 = sphi 0, %s64
    %s66 = sphi 0, %s64
    %s67 = sphi 0, %s66
    %s81 = sphi 0, %s67
    %s87 = sphi 0, %s89
    %s90 = sphi 0, %s87
    %s91 = sphi 0, %s90
    %s107 = sphi 0, %s91
  $region4: #{_lambda_.7} parent=0 // loop_header_branch
    %12 = sbr.rel (%p10) target = $region8
  $region5: #{_lambda_.7} parent=0 // loop_body
    %s14 = ssub.s32 %s9, 1
    %s15 = ssub.s32 %s9, 2
    %s16 = sadd.s32 %s9, 1
    %s17 = ssub.s32 %s9, %s16
    %p18 = scmp.eq.s32.totalorder %s17, 0
    %s20 = sadd.s32 %s19, 1
    %s21 = scalar_select %p18, %s19, %s20
    %p24 = pneg %p18
    %p25 = scmp.eq.s32.totalorder %s9, 1
    %p26 = por %p24, %p25
    %p27 = scmp.ne.s32.totalorder %s19, %s22
    %p28 = scmp.eq.s32.totalorder %s9, 0
    %p29 = por %p27, %p28
    %p30 = scmp.ne.s32.totalorder %s19, %s22
    %p31 = scmp.eq.s32.totalorder %s14, 1
    %p32 = por %p30, %p31
    %p33 = scmp.ne.s32.totalorder %s22, %s23
    %p34 = scmp.eq.s32.totalorder %s14, 0
    %p35 = por %p33, %p34
    %p36 = scmp.ne.s32.totalorder %s22, %s23
    %p37 = scmp.eq.s32.totalorder %s15, 1
    %p38 = por %p36, %p37
    %p40 = scmp.ne.s32.totalorder %s23, %s39
    %p41 = scmp.eq.s32.totalorder %s15, 0
    %p42 = por %p40, %p41
    %s44 = sadd.s32 %s43, 1
    %p47 = scmp.eq.s32.totalorder %s9, 1
    %p48 = scmp.ne.s32.totalorder %s43, %s45
    %p49 = scmp.eq.s32.totalorder %s9, 0
    %p50 = por %p48, %p49
    %p51 = scmp.ne.s32.totalorder %s43, %s45
    %p52 = scmp.eq.s32.totalorder %s14, 1
    %p53 = por %p51, %p52
    %p54 = scmp.ne.s32.totalorder %s45, %s46
    %p55 = scmp.eq.s32.totalorder %s14, 0
    %p56 = por %p54, %p55
    %p57 = scmp.ne.s32.totalorder %s45, %s46
    %p58 = scmp.eq.s32.totalorder %s15, 1
    %p59 = por %p57, %p58
    %p61 = scmp.ne.s32.totalorder %s46, %s60
    %p62 = scmp.eq.s32.totalorder %s15, 0
    %p63 = por %p61, %p62
    %s65 = sadd.s32 %s64, 1
    %p68 = scmp.eq.s32.totalorder %s9, 1
    %p69 = scmp.ne.s32.totalorder %s64, %s66
    %p70 = scmp.eq.s32.totalorder %s9, 0
    %p71 = por %p69, %p70
    %p72 = scmp.ne.s32.totalorder %s64, %s66
    %p73 = scmp.eq.s32.totalorder %s14, 1
    %p74 = por %p72, %p73
    %p75 = scmp.ne.s32.totalorder %s66, %s67
    %p76 = scmp.eq.s32.totalorder %s14, 0
    %p77 = por %p75, %p76
    %p78 = scmp.ne.s32.totalorder %s66, %s67
    %p79 = scmp.eq.s32.totalorder %s15, 1
    %p80 = por %p78, %p79
    %p82 = scmp.ne.s32.totalorder %s67, %s81
    %p83 = scmp.eq.s32.totalorder %s15, 0
    %p84 = por %p82, %p83
    %s85 = ssub.s32 %s9, %s16
    %p86 = scmp.eq.s32.totalorder %s85, 0
    %s88 = sadd.s32 %s87, 1
    %s89 = scalar_select %p86, %s87, %s88
    %p92 = pneg %p86
    %p93 = scmp.eq.s32.totalorder %s9, 1
    %p94 = por %p92, %p93
    %p95 = scmp.ne.s32.totalorder %s87, %s90
    %p96 = scmp.eq.s32.totalorder %s9, 0
    %p97 = por %p95, %p96
    %p98 = scmp.ne.s32.totalorder %s87, %s90
    %p99 = scmp.eq.s32.totalorder %s14, 1
    %p100 = por %p98, %p99
    %p101 = scmp.ne.s32.totalorder %s90, %s91
    %p102 = scmp.eq.s32.totalorder %s14, 0
    %p103 = por %p101, %p102
    %p104 = scmp.ne.s32.totalorder %s90, %s91
    %p105 = scmp.eq.s32.totalorder %s15, 1
    %p106 = por %p104, %p105
    %p108 = scmp.ne.s32.totalorder %s91, %s107
    %p109 = scmp.eq.s32.totalorder %s15, 0
    %p110 = por %p108, %p109
    %p111 = scmp.le.s32.totalorder 1, %s9
    %p112 = scmp.lt.s32.totalorder %s9, 3
    %p113 = pnand %p111, %p112
    %p114 = pneg %p113
    // Predicated region
    $region9: #{_lambda_.7} parent=5 // pred_check
      _
    $region10: #{_lambda_.7} parent=5 // pred_check_branch
      %116 = sbr.rel (%p113) target = $region12
    $region11: #{_lambda_.7} parent=5 // pred_region
      %s117 = ssub.s32 %s9, 1
      // Predicated region
      $region13: #{_lambda_.7} parent=11 // pred_check
        %p118 = pneg %p56
      $region14: #{_lambda_.7} parent=11 // pred_check_branch
        %120 = sbr.rel (%p118) target = $region16
      $region15: #{_lambda_.7} parent=11 // pred_region
        _
      $region16: #{_lambda_.7} parent=11 // pred_fallthru
        _
      // Predicated region
      $region17: #{_lambda_.7} parent=11 // pred_check
        %p121 = pneg %p77
      $region18: #{_lambda_.7} parent=11 // pred_check_branch
        %123 = sbr.rel (%p121) target = $region20
      $region19: #{_lambda_.7} parent=11 // pred_region
        _
      $region20: #{_lambda_.7} parent=11 // pred_fallthru
        _
    $region12: #{_lambda_.7} parent=5 // pred_fallthru
      _
    %p124 = scmp.lt.s32.totalorder %s9, 2
    // Predicated region
    $region21: #{_lambda_.7} parent=5 // pred_check
      %p125 = pneg %p124
    $region22: #{_lambda_.7} parent=5 // pred_check_branch
      %127 = sbr.rel (%p125) target = $region24
    $region23: #{_lambda_.7} parent=5 // pred_region
      // Predicated region
      $region25: #{_lambda_.7} parent=23 // pred_check
        %p128 = pneg %p29
      $region26: #{_lambda_.7} parent=23 // pred_check_branch
        %130 = sbr.rel (%p128) target = $region28
      $region27: #{_lambda_.7} parent=23 // pred_region
        %p131 = scmp.lt.s32.totalorder %s9, 1
        %s132 = scalar_select %p131, %s9, 1
        %s133 = smul.addr %s132, 2
        %s134 = smul.addr %s133, 8
        %s135 = scalar_lea.vmem %s0, %s134
      $region28: #{_lambda_.7} parent=23 // pred_fallthru
        _
    $region24: #{_lambda_.7} parent=5 // pred_fallthru
      _
    %p136 = scmp.le.s32.totalorder 1, %s9
    %p137 = scmp.lt.s32.totalorder %s9, 3
    %p138 = pnand %p136, %p137
    %p139 = pneg %p138
    // Predicated region
    $region29: #{_lambda_.7} parent=5 // pred_check
      _
    $region30: #{_lambda_.7} parent=5 // pred_check_branch
      %141 = sbr.rel (%p138) target = $region32
    $region31: #{_lambda_.7} parent=5 // pred_region
      %s142 = ssub.s32 %s9, 1
      %p143 = scmp.lt.s32.totalorder %s14, 1
      %s144 = scalar_select %p143, %s14, 1
      %s145 = smul.addr %s144, 2
      %s146 = smul.addr %s145, 8
      %s147 = scalar_lea.vmem %s0, %s146
      %p148 = pneg %p35
      %p149 = pneg %p32
      %p150 = pneg %p56
      %p151 = pneg %p53
      %p152 = pneg %p77
      %p153 = pneg %p74
      %p154 = pneg %p103
      %p155 = pneg %p100
      %p156 = scmp.lt.s32.totalorder %s14, 1
      %s157 = scalar_select %p156, %s14, 1
      %s158 = smul.addr %s157, 4
      %s159 = smul.addr %s158, 4
      %s160 = scalar_lea.vmem %s3, %s159
      %p161 = scmp.lt.s32.totalorder %s14, 1
      %s162 = scalar_select %p161, %s14, 1
      %s163 = smul.addr %s162, 2
      %s164 = smul.addr %s163, 8
      %s165 = scalar_lea.vmem %s0, %s164
      %p166 = scmp.lt.s32.totalorder %s14, 1
      %s167 = scalar_select %p166, %s14, 1
      %s168 = smul.addr %s167, 4
      %s169 = smul.addr %s168, 4
      %s170 = scalar_lea.vmem %s3, %s169
      %v172 = vld [vmem:[%s165] sm:$0xff]
      %v173 = vld [vmem:[%s165 + $0x8] sm:$0xff]
      %v174 = vpack.c.bf16 %v173, %v172
      %v175 = vld [vmem:[%s1] sm:$0xff]
      %v176 = vld [vmem:[%s1 + $0x8] sm:$0xff]
      %v177 = vld [vmem:[%s1 + $0x10] sm:$0xff]
      %v178 = vld [vmem:[%s1 + $0x18] sm:$0xff]
      %v179 = vld [vmem:[%s1 + $0x20] sm:$0xff]
      %v180 = vld [vmem:[%s1 + $0x28] sm:$0xff]
      %v181 = vld [vmem:[%s1 + $0x30] sm:$0xff]
      %v182 = vld [vmem:[%s1 + $0x38] sm:$0xff]
      %v183 = vld [vmem:[%s1 + $0x40] sm:$0xff]
      %v184 = vld [vmem:[%s1 + $0x48] sm:$0xff]
      %v185 = vld [vmem:[%s1 + $0x50] sm:$0xff]
      %v186 = vld [vmem:[%s1 + $0x58] sm:$0xff]
      %v187 = vld [vmem:[%s1 + $0x60] sm:$0xff]
      %v188 = vld [vmem:[%s1 + $0x68] sm:$0xff]
      %v189 = vld [vmem:[%s1 + $0x70] sm:$0xff]
      %v190 = vld [vmem:[%s1 + $0x78] sm:$0xff]
      %v191 = vld [vmem:[%s2] sm:$0x3]
      %v193 = vlaneseq
      %v194 = vshrl.u32 %v193, 7
      %v195 = vsub.s32 0, %v194
      %v196 = vrot.slane %v191, %v195
      %v197 = vlaneseq
      %v198 = vshrl.u32 %v197, 7
      %v199 = vsub.s32 1, %v198
      %v200 = vrot.slane %v191, %v199
      %v219 = vunpack.c.l.b16 %v175
      %v220 = vunpack.c.h.b16 %v175
      %v221 = vunpack.c.l.b16 %v176
      %v222 = vunpack.c.h.b16 %v176
      %v223 = vunpack.c.l.b16 %v177
      %v224 = vunpack.c.h.b16 %v177
      %v225 = vunpack.c.l.b16 %v178
      %v226 = vunpack.c.h.b16 %v178
      %v227 = vunpack.c.l.b16 %v179
      %v228 = vunpack.c.h.b16 %v179
      %v229 = vunpack.c.l.b16 %v180
      %v230 = vunpack.c.h.b16 %v180
      %v231 = vunpack.c.l.b16 %v181
      %v232 = vunpack.c.h.b16 %v181
      %v233 = vunpack.c.l.b16 %v182
      %v234 = vunpack.c.h.b16 %v182
      %v235 = vunpack.c.l.b16 %v183
      %v236 = vunpack.c.h.b16 %v183
      %v237 = vunpack.c.l.b16 %v184
      %v238 = vunpack.c.h.b16 %v184
      %v239 = vunpack.c.l.b16 %v185
      %v240 = vunpack.c.h.b16 %v185
      %v241 = vunpack.c.l.b16 %v186
      %v242 = vunpack.c.h.b16 %v186
      %v243 = vunpack.c.l.b16 %v187
      %v244 = vunpack.c.h.b16 %v187
      %v245 = vunpack.c.l.b16 %v188
      %v246 = vunpack.c.h.b16 %v188
      %v247 = vunpack.c.l.b16 %v189
      %v248 = vunpack.c.h.b16 %v189
      %v249 = vunpack.c.l.b16 %v190
      %v250 = vunpack.c.h.b16 %v190
      %v251 = vpack.c.b16 %v221, %v219
      %v252 = vpack.c.b16 %v222, %v220
      %v253 = vpack.c.b16 %v225, %v223
      %v254 = vpack.c.b16 %v226, %v224
      %v255 = vpack.c.b16 %v229, %v227
      %v256 = vpack.c.b16 %v230, %v228
      %v257 = vpack.c.b16 %v233, %v231
      %v258 = vpack.c.b16 %v234, %v232
      %v259 = vpack.c.b16 %v237, %v235
      %v260 = vpack.c.b16 %v238, %v236
      %v261 = vpack.c.b16 %v241, %v239
      %v262 = vpack.c.b16 %v242, %v240
      %v263 = vpack.c.b16 %v245, %v243
      %v264 = vpack.c.b16 %v246, %v244
      %v265 = vpack.c.b16 %v249, %v247
      %v266 = vpack.c.b16 %v250, %v248
      %283 = vmatprep.subr.bf16.mxu0 %v252
      %284 = vmatpush1.bf16.msra.mxu0 %v251
      %285 = vmatprep.subr.bf16.mxu0 %v254
      %286 = vmatpush1.bf16.msra.mxu0 %v253
      %287 = vmatprep.subr.bf16.mxu0 %v256
      %288 = vmatpush1.bf16.msra.mxu0 %v255
      %289 = vmatprep.subr.bf16.mxu0 %v258
      %290 = vmatpush1.bf16.msra.mxu0 %v257
      %291 = vmatprep.subr.bf16.mxu0 %v260
      %292 = vmatpush1.bf16.msra.mxu0 %v259
      %293 = vmatprep.subr.bf16.mxu0 %v262
      %294 = vmatpush1.bf16.msra.mxu0 %v261
      %295 = vmatprep.subr.bf16.mxu0 %v264
      %296 = vmatpush1.bf16.msra.mxu0 %v263
      %297 = vmatprep.subr.bf16.mxu0 %v266
      %298 = vmatpush1.bf16.msra.mxu0 %v265
      %299 = vmatprep.subr.bf16.mxu0 0
      %300 = vmatpush1.bf16.msra.mxu0 0
      %301 = vmatprep.subr.bf16.mxu0 0
      %302 = vmatpush1.bf16.msra.mxu0 0
      %303 = vmatprep.subr.bf16.mxu0 0
      %304 = vmatpush1.bf16.msra.mxu0 0
      %305 = vmatprep.subr.bf16.mxu0 0
      %306 = vmatpush1.bf16.msra.mxu0 0
      %307 = vmatprep.subr.bf16.mxu0 0
      %308 = vmatpush1.bf16.msra.mxu0 0
      %309 = vmatprep.subr.bf16.mxu0 0
      %310 = vmatpush1.bf16.msra.mxu0 0
      %311 = vmatprep.subr.bf16.mxu0 0
      %312 = vmatpush1.bf16.msra.mxu0 0
      %313 = vmatprep.subr.bf16.mxu0 0
      %314 = vmatpush1.bf16.msra.mxu0 0
      %315 = vmatprep.mubr.bf16.mxu0 0
      %316 = vmatmul.mubr.bf16.gmra.mrb[0].mxu0 %v174
      %v317 = vpop.f32.mrb[0].mxu0
      %v318 = vadd.f32 %v196, %v317
      %v319 = vpop.f32.mrb[0].mxu0
      %v320 = vadd.f32 %v200, %v319
      %v321 = vpop.f32.mrb[0].mxu0
      %v322 = vadd.f32 %v196, %v321
      %v323 = vpop.f32.mrb[0].mxu0
      %v324 = vadd.f32 %v200, %v323
      %325 = vdwg.mxu0
      %v326 = vpack.c.bf16 %v322, %v318
      %v327 = vpack.c.bf16 %v324, %v320
      %v330 = vunpack.c.l.b16 %v326
      %v331 = vunpack.c.l.b16 %v327
      %v332 = vunpack.c.h.b16 %v326
      %v333 = vunpack.c.h.b16 %v327
      %v334 = vpack.c.b16 %v331, %v330
      %v335 = vpack.c.b16 %v333, %v332
      %338 = vst [vmem:[%s170] sm:$0xff] %v334
      %339 = vst [vmem:[%s170 + $0x8] sm:$0xff] %v335
      %p340 = scmp.lt.s32.totalorder %s14, 1
      %s341 = scalar_select %p340, %s14, 1
      %s342 = smul.addr %s341, 4
      %s343 = smul.addr %s342, 4
      %s344 = scalar_lea.vmem %s3, %s343
      // Predicated region
      $region33: #{_lambda_.7} parent=31 // pred_check
        %p345 = pneg %p100
      $region34: #{_lambda_.7} parent=31 // pred_check_branch
        %347 = sbr.rel (%p345) target = $region36
      $region35: #{_lambda_.7} parent=31 // pred_region
        _
      $region36: #{_lambda_.7} parent=31 // pred_fallthru
        _
    $region32: #{_lambda_.7} parent=5 // pred_fallthru
      _
    %p348 = scmp.le.s32.totalorder 2, %s9
    // Predicated region
    $region37: #{_lambda_.7} parent=5 // pred_check
      %p349 = pneg %p348
    $region38: #{_lambda_.7} parent=5 // pred_check_branch
      %351 = sbr.rel (%p349) target = $region40
    $region39: #{_lambda_.7} parent=5 // pred_region
      %s352 = ssub.s32 %s9, 2
      // Predicated region
      $region41: #{_lambda_.7} parent=39 // pred_check
        %p353 = pneg %p106
      $region42: #{_lambda_.7} parent=39 // pred_check_branch
        %355 = sbr.rel (%p353) target = $region44
      $region43: #{_lambda_.7} parent=39 // pred_region
        %p356 = scmp.lt.s32.totalorder %s15, 1
        %s357 = scalar_select %p356, %s15, 1
        %s358 = smul.addr %s357, 4
        %s359 = smul.addr %s358, 4
        %s360 = scalar_lea.vmem %s3, %s359
      $region44: #{_lambda_.7} parent=39 // pred_fallthru
        _
    $region40: #{_lambda_.7} parent=5 // pred_fallthru
      _
  $region6: #{_lambda_.7} parent=0 // loop_footer
    %s13 = sadd.s32 1, %s9
  $region7: #{_lambda_.7} parent=0 // loop_footer_branch
    %8 = sbr.rel target = $region3
  $region8: #{_lambda_.7} parent=0 // loop_exit
    _

// kernel: _lambda_.10
$region0: #{_lambda_.10}
  #allocation0 [shape = 'u32[]', space=smem, size = 0x4, offset = 0x4, fixed_abs, tag = 'smem constant byte address 0x4 - core index']
  #allocation1 [shape = 'u32[144,128]{1,0:T(1,128)}', space=vmem, size = 0x12000, scoped, tag = 'internal scratch']
  %s0 = inlined_call_operand.vmem [shape: f32[16,128], index: 0, kind: input, shape index: {}]
  %s1 = inlined_call_operand.vmem [shape: bf16[128,256], index: 1, kind: input, shape index: {}]
  %s2 = inlined_call_operand.vmem [shape: f32[1,256], index: 2, kind: input, shape index: {}]
  %s3 = inlined_call_operand.vmem [shape: bf16[256,128], index: 3, kind: input, shape index: {}]
  %s4 = inlined_call_operand.vmem [shape: f32[1,128], index: 4, kind: input, shape index: {}, may-alias: {4,6,8}]
  %s5 = inlined_call_operand.vmem [shape: f32[1,128], index: 5, kind: input, shape index: {}, may-alias: {5,7}]
  %s6 = inlined_call_operand.vmem [shape: f32[1,128], index: 6, kind: input, shape index: {}, may-alias: {4,6,8}]
  %s7 = inlined_call_operand.vmem [shape: f32[1,128], index: 7, kind: input, shape index: {}, may-alias: {5,7}]
  %s8 = inlined_call_operand.vmem [shape: f32[1,128], index: 8, kind: input, shape index: {}, may-alias: {4,6,8}]
  %s9 = inlined_call_operand.vmem [shape: f32[16,128], index: 9, kind: output, shape index: {}]
  %s10 = sld [smem:[#allocation0]]
  $region46: #{_lambda_.10} parent=0
    _
  %s12 = ssub.s32 1, %s10
  %s13 = scalar_select 0, %s12, %s10
  // Predicated region
  $region2: #{_lambda_.10} parent=0 // pred_check
    _
  $region3: #{_lambda_.10} parent=0 // pred_check_branch
    %15 = sbr.rel (0) target = $region5
  $region4: #{_lambda_.10} parent=0 // pred_region
    _
  $region5: #{_lambda_.10} parent=0 // pred_fallthru
    _
  // Predicated region
  $region6: #{_lambda_.10} parent=0 // pred_check
    _
  $region7: #{_lambda_.10} parent=0 // pred_check_branch
    %17 = sbr.rel (0) target = $region9
  $region8: #{_lambda_.10} parent=0 // pred_region
    _
  $region9: #{_lambda_.10} parent=0 // pred_fallthru
    _
  // Predicated region
  $region10: #{_lambda_.10} parent=0 // pred_check
    _
  $region11: #{_lambda_.10} parent=0 // pred_check_branch
    %19 = sbr.rel (0) target = $region13
  $region12: #{_lambda_.10} parent=0 // pred_region
    _
  $region13: #{_lambda_.10} parent=0 // pred_fallthru
    _
  // Predicated region
  $region14: #{_lambda_.10} parent=0 // pred_check
    _
  $region15: #{_lambda_.10} parent=0 // pred_check_branch
    %21 = sbr.rel (0) target = $region17
  $region16: #{_lambda_.10} parent=0 // pred_region
    _
  $region17: #{_lambda_.10} parent=0 // pred_fallthru
    _
  // Predicated region
  $region18: #{_lambda_.10} parent=0 // pred_check
    _
  $region19: #{_lambda_.10} parent=0 // pred_check_branch
    %23 = sbr.rel (0) target = $region21
  $region20: #{_lambda_.10} parent=0 // pred_region
    _
  $region21: #{_lambda_.10} parent=0 // pred_fallthru
    _
  // Predicated region
  $region22: #{_lambda_.10} parent=0 // pred_check
    _
  $region23: #{_lambda_.10} parent=0 // pred_check_branch
    %25 = sbr.rel (0) target = $region25
  $region24: #{_lambda_.10} parent=0 // pred_region
    _
  $region25: #{_lambda_.10} parent=0 // pred_fallthru
    _
  // Predicated region
  $region26: #{_lambda_.10} parent=0 // pred_check
    _
  $region27: #{_lambda_.10} parent=0 // pred_check_branch
    %27 = sbr.rel (0) target = $region29
  $region28: #{_lambda_.10} parent=0 // pred_region
    _
  $region29: #{_lambda_.10} parent=0 // pred_fallthru
    _
  // Predicated region
  $region30: #{_lambda_.10} parent=0 // pred_check
    _
  $region31: #{_lambda_.10} parent=0 // pred_check_branch
    %29 = sbr.rel (0) target = $region33
  $region32: #{_lambda_.10} parent=0 // pred_region
    _
  $region33: #{_lambda_.10} parent=0 // pred_fallthru
    _
  // Predicated region
  $region34: #{_lambda_.10} parent=0 // pred_check
    _
  $region35: #{_lambda_.10} parent=0 // pred_check_branch
    %31 = sbr.rel (0) target = $region37
  $region36: #{_lambda_.10} parent=0 // pred_region
    _
  $region37: #{_lambda_.10} parent=0 // pred_fallthru
    _
  %v33 = vld [vmem:[%s0] sm:$0xff]
  %v34 = vld [vmem:[%s0 + $0x8] sm:$0xff]
  %v35 = vpack.c.bf16 %v34, %v33
  %v36 = vld [vmem:[%s1] sm:$0xff]
  %v37 = vld [vmem:[%s1 + $0x8] sm:$0xff]
  %v38 = vld [vmem:[%s1 + $0x10] sm:$0xff]
  %v39 = vld [vmem:[%s1 + $0x18] sm:$0xff]
  %v40 = vld [vmem:[%s1 + $0x20] sm:$0xff]
  %v41 = vld [vmem:[%s1 + $0x28] sm:$0xff]
  %v42 = vld [vmem:[%s1 + $0x30] sm:$0xff]
  %v43 = vld [vmem:[%s1 + $0x38] sm:$0xff]
  %v44 = vld [vmem:[%s1 + $0x40] sm:$0xff]
  %v45 = vld [vmem:[%s1 + $0x48] sm:$0xff]
  %v46 = vld [vmem:[%s1 + $0x50] sm:$0xff]
  %v47 = vld [vmem:[%s1 + $0x58] sm:$0xff]
  %v48 = vld [vmem:[%s1 + $0x60] sm:$0xff]
  %v49 = vld [vmem:[%s1 + $0x68] sm:$0xff]
  %v50 = vld [vmem:[%s1 + $0x70] sm:$0xff]
  %v51 = vld [vmem:[%s1 + $0x78] sm:$0xff]
  %v52 = vld [vmem:[%s2] sm:$0x3]
  %v54 = vlaneseq
  %v55 = vshrl.u32 %v54, 7
  %v56 = vsub.s32 0, %v55
  %v57 = vrot.slane %v52, %v56
  %v58 = vlaneseq
  %v59 = vshrl.u32 %v58, 7
  %v60 = vsub.s32 1, %v59
  %v61 = vrot.slane %v52, %v60
  %v80 = vunpack.c.l.b16 %v36
  %v81 = vunpack.c.h.b16 %v36
  %v82 = vunpack.c.l.b16 %v37
  %v83 = vunpack.c.h.b16 %v37
  %v84 = vunpack.c.l.b16 %v38
  %v85 = vunpack.c.h.b16 %v38
  %v86 = vunpack.c.l.b16 %v39
  %v87 = vunpack.c.h.b16 %v39
  %v88 = vunpack.c.l.b16 %v40
  %v89 = vunpack.c.h.b16 %v40
  %v90 = vunpack.c.l.b16 %v41
  %v91 = vunpack.c.h.b16 %v41
  %v92 = vunpack.c.l.b16 %v42
  %v93 = vunpack.c.h.b16 %v42
  %v94 = vunpack.c.l.b16 %v43
  %v95 = vunpack.c.h.b16 %v43
  %v96 = vunpack.c.l.b16 %v44
  %v97 = vunpack.c.h.b16 %v44
  %v98 = vunpack.c.l.b16 %v45
  %v99 = vunpack.c.h.b16 %v45
  %v100 = vunpack.c.l.b16 %v46
  %v101 = vunpack.c.h.b16 %v46
  %v102 = vunpack.c.l.b16 %v47
  %v103 = vunpack.c.h.b16 %v47
  %v104 = vunpack.c.l.b16 %v48
  %v105 = vunpack.c.h.b16 %v48
  %v106 = vunpack.c.l.b16 %v49
  %v107 = vunpack.c.h.b16 %v49
  %v108 = vunpack.c.l.b16 %v50
  %v109 = vunpack.c.h.b16 %v50
  %v110 = vunpack.c.l.b16 %v51
  %v111 = vunpack.c.h.b16 %v51
  %v112 = vpack.c.b16 %v82, %v80
  %v113 = vpack.c.b16 %v83, %v81
  %v114 = vpack.c.b16 %v86, %v84
  %v115 = vpack.c.b16 %v87, %v85
  %v116 = vpack.c.b16 %v90, %v88
  %v117 = vpack.c.b16 %v91, %v89
  %v118 = vpack.c.b16 %v94, %v92
  %v119 = vpack.c.b16 %v95, %v93
  %v120 = vpack.c.b16 %v98, %v96
  %v121 = vpack.c.b16 %v99, %v97
  %v122 = vpack.c.b16 %v102, %v100
  %v123 = vpack.c.b16 %v103, %v101
  %v124 = vpack.c.b16 %v106, %v104
  %v125 = vpack.c.b16 %v107, %v105
  %v126 = vpack.c.b16 %v110, %v108
  %v127 = vpack.c.b16 %v111, %v109
  %144 = vmatprep.subr.bf16.mxu0 %v113
  %145 = vmatpush1.bf16.msra.mxu0 %v112
  %146 = vmatprep.subr.bf16.mxu0 %v115
  %147 = vmatpush1.bf16.msra.mxu0 %v114
  %148 = vmatprep.subr.bf16.mxu0 %v117
  %149 = vmatpush1.bf16.msra.mxu0 %v116
  %150 = vmatprep.subr.bf16.mxu0 %v119
  %151 = vmatpush1.bf16.msra.mxu0 %v118
  %152 = vmatprep.subr.bf16.mxu0 %v121
  %153 = vmatpush1.bf16.msra.mxu0 %v120
  %154 = vmatprep.subr.bf16.mxu0 %v123
  %155 = vmatpush1.bf16.msra.mxu0 %v122
  %156 = vmatprep.subr.bf16.mxu0 %v125
  %157 = vmatpush1.bf16.msra.mxu0 %v124
  %158 = vmatprep.subr.bf16.mxu0 %v127
  %159 = vmatpush1.bf16.msra.mxu0 %v126
  %160 = vmatprep.subr.bf16.mxu0 0
  %161 = vmatpush1.bf16.msra.mxu0 0
  %162 = vmatprep.subr.bf16.mxu0 0
  %163 = vmatpush1.bf16.msra.mxu0 0
  %164 = vmatprep.subr.bf16.mxu0 0
  %165 = vmatpush1.bf16.msra.mxu0 0
  %166 = vmatprep.subr.bf16.mxu0 0
  %167 = vmatpush1.bf16.msra.mxu0 0
  %168 = vmatprep.subr.bf16.mxu0 0
  %169 = vmatpush1.bf16.msra.mxu0 0
  %170 = vmatprep.subr.bf16.mxu0 0
  %171 = vmatpush1.bf16.msra.mxu0 0
  %172 = vmatprep.subr.bf16.mxu0 0
  %173 = vmatpush1.bf16.msra.mxu0 0
  %174 = vmatprep.subr.bf16.mxu0 0
  %175 = vmatpush1.bf16.msra.mxu0 0
  %176 = vmatprep.mubr.bf16.mxu0 0
  %177 = vmatmul.mubr.bf16.gmra.mrb[0].mxu0 %v35
  %v178 = vpop.f32.mrb[0].mxu0
  %v179 = vadd.f32 %v57, %v178
  %v180 = vpop.f32.mrb[0].mxu0
  %v181 = vadd.f32 %v61, %v180
  %v182 = vpop.f32.mrb[0].mxu0
  %v183 = vadd.f32 %v57, %v182
  %v184 = vpop.f32.mrb[0].mxu0
  %v185 = vadd.f32 %v61, %v184
  %186 = vdwg.mxu0
  %v187 = vmax.f32 %v179, 0.0
  %v188 = vmax.f32 %v181, 0.0
  %v189 = vmax.f32 %v183, 0.0
  %v190 = vmax.f32 %v185, 0.0
  %v191 = vpack.c.bf16 %v189, %v187
  %v192 = vpack.c.bf16 %v190, %v188
  %v193 = vld [vmem:[%s3] sm:$0xf]
  %v194 = vld [vmem:[%s3 + $0x4] sm:$0xf]
  %v195 = vld [vmem:[%s3 + $0x8] sm:$0xf]
  %v196 = vld [vmem:[%s3 + $0xc] sm:$0xf]
  %v197 = vld [vmem:[%s3 + $0x10] sm:$0xf]
  %v198 = vld [vmem:[%s3 + $0x14] sm:$0xf]
  %v199 = vld [vmem:[%s3 + $0x18] sm:$0xf]
  %v200 = vld [vmem:[%s3 + $0x1c] sm:$0xf]
  %v201 = vld [vmem:[%s3 + $0x20] sm:$0xf]
  %v202 = vld [vmem:[%s3 + $0x24] sm:$0xf]
  %v203 = vld [vmem:[%s3 + $0x28] sm:$0xf]
  %v204 = vld [vmem:[%s3 + $0x2c] sm:$0xf]
  %v205 = vld [vmem:[%s3 + $0x30] sm:$0xf]
  %v206 = vld [vmem:[%s3 + $0x34] sm:$0xf]
  %v207 = vld [vmem:[%s3 + $0x38] sm:$0xf]
  %v208 = vld [vmem:[%s3 + $0x3c] sm:$0xf]
  %v209 = vld [vmem:[%s3 + $0x40] sm:$0xf]
  %v210 = vld [vmem:[%s3 + $0x44] sm:$0xf]
  %v211 = vld [vmem:[%s3 + $0x48] sm:$0xf]
  %v212 = vld [vmem:[%s3 + $0x4c] sm:$0xf]
  %v213 = vld [vmem:[%s3 + $0x50] sm:$0xf]
  %v214 = vld [vmem:[%s3 + $0x54] sm:$0xf]
  %v215 = vld [vmem:[%s3 + $0x58] sm:$0xf]
  %v216 = vld [vmem:[%s3 + $0x5c] sm:$0xf]
  %v217 = vld [vmem:[%s3 + $0x60] sm:$0xf]
  %v218 = vld [vmem:[%s3 + $0x64] sm:$0xf]
  %v219 = vld [vmem:[%s3 + $0x68] sm:$0xf]
  %v220 = vld [vmem:[%s3 + $0x6c] sm:$0xf]
  %v221 = vld [vmem:[%s3 + $0x70] sm:$0xf]
  %v222 = vld [vmem:[%s3 + $0x74] sm:$0xf]
  %v223 = vld [vmem:[%s3 + $0x78] sm:$0xf]
  %v224 = vld [vmem:[%s3 + $0x7c] sm:$0xf]
  %v225 = vld [vmem:[%s4] sm:$0x1]
  %v227 = vlaneseq
  %v228 = vshrl.u32 %v227, 7
  %v229 = vsub.s32 0, %v228
  %v230 = vrot.slane %v225, %v229
  %v264 = vunpack.c.l.b16 %v193
  %v265 = vunpack.c.l.b16 %v194
  %v266 = vunpack.c.l.b16 %v195
  %v267 = vunpack.c.l.b16 %v196
  %v268 = vunpack.c.l.b16 %v197
  %v269 = vunpack.c.l.b16 %v198
  %v270 = vunpack.c.l.b16 %v199
  %v271 = vunpack.c.l.b16 %v200
  %v272 = vunpack.c.l.b16 %v201
  %v273 = vunpack.c.l.b16 %v202
  %v274 = vunpack.c.l.b16 %v203
  %v275 = vunpack.c.l.b16 %v204
  %v276 = vunpack.c.l.b16 %v205
  %v277 = vunpack.c.l.b16 %v206
  %v278 = vunpack.c.l.b16 %v207
  %v279 = vunpack.c.l.b16 %v208
  %v280 = vunpack.c.l.b16 %v209
  %v281 = vunpack.c.l.b16 %v210
  %v282 = vunpack.c.l.b16 %v211
  %v283 = vunpack.c.l.b16 %v212
  %v284 = vunpack.c.l.b16 %v213
  %v285 = vunpack.c.l.b16 %v214
  %v286 = vunpack.c.l.b16 %v215
  %v287 = vunpack.c.l.b16 %v216
  %v288 = vunpack.c.l.b16 %v217
  %v289 = vunpack.c.l.b16 %v218
  %v290 = vunpack.c.l.b16 %v219
  %v291 = vunpack.c.l.b16 %v220
  %v292 = vunpack.c.l.b16 %v221
  %v293 = vunpack.c.l.b16 %v222
  %v294 = vunpack.c.l.b16 %v223
  %v295 = vunpack.c.l.b16 %v224
  %v296 = vpack.c.b16 %v265, %v264
  %v297 = vpack.c.b16 %v267, %v266
  %v298 = vpack.c.b16 %v269, %v268
  %v299 = vpack.c.b16 %v271, %v270
  %v300 = vpack.c.b16 %v273, %v272
  %v301 = vpack.c.b16 %v275, %v274
  %v302 = vpack.c.b16 %v277, %v276
  %v303 = vpack.c.b16 %v279, %v278
  %v304 = vpack.c.b16 %v281, %v280
  %v305 = vpack.c.b16 %v283, %v282
  %v306 = vpack.c.b16 %v285, %v284
  %v307 = vpack.c.b16 %v287, %v286
  %v308 = vpack.c.b16 %v289, %v288
  %v309 = vpack.c.b16 %v291, %v290
  %v310 = vpack.c.b16 %v293, %v292
  %v311 = vpack.c.b16 %v295, %v294
  %328 = vmatprep.subr.bf16.mxu0 0
  %329 = vmatpush1.bf16.msra.mxu0 %v296
  %330 = vmatprep.subr.bf16.mxu0 0
  %331 = vmatpush1.bf16.msra.mxu0 %v297
  %332 = vmatprep.subr.bf16.mxu0 0
  %333 = vmatpush1.bf16.msra.mxu0 %v298
  %334 = vmatprep.subr.bf16.mxu0 0
  %335 = vmatpush1.bf16.msra.mxu0 %v299
  %336 = vmatprep.subr.bf16.mxu0 0
  %337 = vmatpush1.bf16.msra.mxu0 %v300
  %338 = vmatprep.subr.bf16.mxu0 0
  %339 = vmatpush1.bf16.msra.mxu0 %v301
  %340 = vmatprep.subr.bf16.mxu0 0
  %341 = vmatpush1.bf16.msra.mxu0 %v302
  %342 = vmatprep.subr.bf16.mxu0 0
  %343 = vmatpush1.bf16.msra.mxu0 %v303
  %344 = vmatprep.subr.bf16.mxu0 0
  %345 = vmatpush1.bf16.msra.mxu0 %v304
  %346 = vmatprep.subr.bf16.mxu0 0
  %347 = vmatpush1.bf16.msra.mxu0 %v305
  %348 = vmatprep.subr.bf16.mxu0 0
  %349 = vmatpush1.bf16.msra.mxu0 %v306
  %350 = vmatprep.subr.bf16.mxu0 0
  %351 = vmatpush1.bf16.msra.mxu0 %v307
  %352 = vmatprep.subr.bf16.mxu0 0
  %353 = vmatpush1.bf16.msra.mxu0 %v308
  %354 = vmatprep.subr.bf16.mxu0 0
  %355 = vmatpush1.bf16.msra.mxu0 %v309
  %356 = vmatprep.subr.bf16.mxu0 0
  %357 = vmatpush1.bf16.msra.mxu0 %v310
  %358 = vmatprep.subr.bf16.mxu0 0
  %359 = vmatpush1.bf16.msra.mxu0 %v311
  %360 = vmatprep.mubr.bf16.mxu0 %v192
  %361 = vmatmul.mubr.bf16.gmra.mrb[0].mxu0 %v191
  %v362 = vpop.f32.mrb[0].mxu0
  %v363 = vadd.f32 %v230, %v362
  %v364 = vpop.f32.mrb[0].mxu0
  %v365 = vpop.f32.mrb[0].mxu0
  %v366 = vadd.f32 %v230, %v365
  %v367 = vpop.f32.mrb[0].mxu0
  %368 = vdwg.mxu0
  %v369 = vadd.f32 %v33, %v363
  %v370 = vadd.f32 %v34, %v366
  %v371 = vld [vmem:[%s5] sm:$0x1]
  %v372 = vld [vmem:[%s6] sm:$0x1]
  %373 = vadd.xlane.f32.xlu0 %v369
  %v374 = vpop.xlane.xlu0 %373
  %375 = vadd.xlane.f32.xlu0 %v370
  %v376 = vpop.xlane.xlu0 %375
  %v377 = vrcp.pop 128.0
  %v378 = vmul.f32 %v374, %v377
  %v379 = vmul.f32 %v376, %v377
  %v380 = vsub.f32 %v369, %v378
  %v381 = vsub.f32 %v370, %v379
  %v382 = vmul.f32 %v380, %v380
  %v383 = vmul.f32 %v381, %v381
  %384 = vadd.xlane.f32.xlu0 %v382
  %v385 = vpop.xlane.xlu0 %384
  %386 = vadd.xlane.f32.xlu0 %v383
  %v387 = vpop.xlane.xlu0 %386
  %v388 = vmul.f32 %v385, %v377
  %v389 = vmul.f32 %v387, %v377
  %v390 = vadd.f32 %v388, 1e-05
  %v391 = vadd.f32 %v389, 1e-05
  %v392 = vrsqrt.pop %v390
  %v393 = vrsqrt.pop %v391
  %v394 = vmul.f32 %v380, %v392
  %v395 = vmul.f32 %v381, %v393
  %v397 = vlaneseq
  %v398 = vshrl.u32 %v397, 7
  %v399 = vsub.s32 0, %v398
  %v400 = vrot.slane %v371, %v399
  %v402 = vmul.f32 %v394, %v400
  %v403 = vmul.f32 %v395, %v400
  %v405 = vlaneseq
  %v406 = vshrl.u32 %v405, 7
  %v407 = vsub.s32 0, %v406
  %v408 = vrot.slane %v372, %v407
  %v410 = vadd.f32 %v402, %v408
  %v411 = vadd.f32 %v403, %v408
  %v412 = vld [vmem:[%s7] sm:$0x1]
  %v413 = vld [vmem:[%s8] sm:$0x1]
  %414 = vadd.xlane.f32.xlu0 %v410
  %v415 = vpop.xlane.xlu0 %414
  %416 = vadd.xlane.f32.xlu0 %v411
  %v417 = vpop.xlane.xlu0 %416
  %v418 = vmul.f32 %v415, %v377
  %v419 = vmul.f32 %v417, %v377
  %v420 = vsub.f32 %v410, %v418
  %v421 = vsub.f32 %v411, %v419
  %v422 = vmul.f32 %v420, %v420
  %v423 = vmul.f32 %v421, %v421
  %424 = vadd.xlane.f32.xlu0 %v422
  %v425 = vpop.xlane.xlu0 %424
  %426 = vadd.xlane.f32.xlu0 %v423
  %v427 = vpop.xlane.xlu0 %426
  %v428 = vmul.f32 %v425, %v377
  %v429 = vmul.f32 %v427, %v377
  %v430 = vadd.f32 %v428, 1e-05
  %v431 = vadd.f32 %v429, 1e-05
  %v432 = vrsqrt.pop %v430
  %v433 = vrsqrt.pop %v431
  %v434 = vmul.f32 %v420, %v432
  %v435 = vmul.f32 %v421, %v433
  %v437 = vlaneseq
  %v438 = vshrl.u32 %v437, 7
  %v439 = vsub.s32 0, %v438
  %v440 = vrot.slane %v412, %v439
  %v442 = vmul.f32 %v434, %v440
  %v443 = vmul.f32 %v435, %v440
  %v445 = vlaneseq
  %v446 = vshrl.u32 %v445, 7
  %v447 = vsub.s32 0, %v446
  %v448 = vrot.slane %v413, %v447
  %v450 = vadd.f32 %v442, %v448
  %v451 = vadd.f32 %v443, %v448
  %452 = vst [vmem:[%s9] sm:$0xff] %v450
  %453 = vst [vmem:[%s9 + $0x8] sm:$0xff] %v451
  // Predicated region
  $region38: #{_lambda_.10} parent=0 // pred_check
    _
  $region39: #{_lambda_.10} parent=0 // pred_check_branch
    %455 = sbr.rel (0) target = $region41
  $region40: #{_lambda_.10} parent=0 // pred_region
    _
  $region41: #{_lambda_.10} parent=0 // pred_fallthru
    _
  // Predicated region
  $region42: #{_lambda_.10} parent=0 // pred_check
    _
  $region43: #{_lambda_.10} parent=0 // pred_check_branch
    %457 = sbr.rel (0) target = $region45
  $region44: #{_lambda_.10} parent=0 // pred_region
    _
  $region45: #{_lambda_.10} parent=0 // pred_fallthru
    _

// kernel: _lambda_.9
$region0: #{_lambda_.9}
  #allocation0 [shape = 'u32[]', space=smem, size = 0x4, offset = 0x4, fixed_abs, tag = 'smem constant byte address 0x4 - core index']
  #allocation1 [shape = 'u32[144,128]{1,0:T(1,128)}', space=vmem, size = 0x12000, scoped, tag = 'internal scratch']
  %s0 = inlined_call_operand.vmem [shape: f32[2,8,128], index: 0, kind: input, shape index: {}]
  %s1 = inlined_call_operand.vmem [shape: bf16[2,16,256], index: 1, kind: input, shape index: {}]
  %s2 = inlined_call_operand.vmem [shape: bf16[128,128], index: 2, kind: input, shape index: {}]
  %s3 = inlined_call_operand.vmem [shape: f32[1,128], index: 3, kind: input, shape index: {}, may-alias: {3,5,7}]
  %s4 = inlined_call_operand.vmem [shape: bf16[128,128], index: 4, kind: input, shape index: {}]
  %s5 = inlined_call_operand.vmem [shape: f32[1,128], index: 5, kind: input, shape index: {}, may-alias: {3,5,7}]
  %s6 = inlined_call_operand.vmem [shape: f32[1,128], index: 6, kind: input, shape index: {}]
  %s7 = inlined_call_operand.vmem [shape: f32[1,128], index: 7, kind: input, shape index: {}, may-alias: {3,5,7}]
  %s8 = inlined_call_operand.vmem [shape: f32[2,8,128], index: 8, kind: output, shape index: {}]
  %s9 = sld [smem:[#allocation0]]
  $region65: #{_lambda_.9} parent=0
    _
  %s11 = ssub.s32 1, %s9
  %s12 = scalar_select 0, %s11, %s9
  loop: start=0, step=1, limit=4
  $region2: #{_lambda_.9} parent=0 // loop_pre_header
    _
  $region3: #{_lambda_.9} parent=0 // loop_header
    %s14 = sphi 0, %s18
    %p15 = scmp.ge.s32.totalorder %s14, 4
    %s24 = sphi 0, %s26
    %s27 = sphi 0, %s24
    %s28 = sphi 0, %s27
    %s44 = sphi 0, %s28
    %s50 = sphi 0, %s52
    %s53 = sphi 0, %s50
    %s54 = sphi 0, %s53
    %s70 = sphi 0, %s54
    %s74 = sphi 0, %s74
    %s76 = sphi 0, %s74
    %s77 = sphi 0, %s76
    %s91 = sphi 0, %s77
    %s95 = sphi 0, %s95
    %s97 = sphi 0, %s95
    %s98 = sphi 0, %s97
    %s112 = sphi 0, %s98
    %s116 = sphi 0, %s116
    %s118 = sphi 0, %s116
    %s119 = sphi 0, %s118
    %s133 = sphi 0, %s119
    %s137 = sphi 0, %s137
    %s139 = sphi 0, %s137
    %s140 = sphi 0, %s139
    %s154 = sphi 0, %s140
    %s158 = sphi 0, %s158
    %s160 = sphi 0, %s158
    %s161 = sphi 0, %s160
    %s175 = sphi 0, %s161
    %s179 = sphi 0, %s179
    %s181 = sphi 0, %s179
    %s182 = sphi 0, %s181
    %s196 = sphi 0, %s182
    %s202 = sphi 0, %s204
    %s205 = sphi 0, %s202
    %s206 = sphi 0, %s205
    %s222 = sphi 0, %s206
  $region4: #{_lambda_.9} parent=0 // loop_header_branch
    %17 = sbr.rel (%p15) target = $region8
  $region5: #{_lambda_.9} parent=0 // loop_body
    %s19 = ssub.s32 %s14, 1
    %s20 = ssub.s32 %s14, 2
    %s21 = sadd.s32 %s14, 1
    %s22 = ssub.s32 %s14, %s21
    %p23 = scmp.eq.s32.totalorder %s22, 0
    %s25 = sadd.s32 %s24, 1
    %s26 = scalar_select %p23, %s24, %s25
    %p29 = pneg %p23
    %p30 = scmp.eq.s32.totalorder %s14, 1
    %p31 = por %p29, %p30
    %p32 = scmp.ne.s32.totalorder %s24, %s27
    %p33 = scmp.eq.s32.totalorder %s14, 0
    %p34 = por %p32, %p33
    %p35 = scmp.ne.s32.totalorder %s24, %s27
    %p36 = scmp.eq.s32.totalorder %s19, 1
    %p37 = por %p35, %p36
    %p38 = scmp.ne.s32.totalorder %s27, %s28
    %p39 = scmp.eq.s32.totalorder %s19, 0
    %p40 = por %p38, %p39
    %p41 = scmp.ne.s32.totalorder %s27, %s28
    %p42 = scmp.eq.s32.totalorder %s20, 1
    %p43 = por %p41, %p42
    %p45 = scmp.ne.s32.totalorder %s28, %s44
    %p46 = scmp.eq.s32.totalorder %s20, 0
    %p47 = por %p45, %p46
    %s48 = ssub.s32 %s14, %s21
    %p49 = scmp.eq.s32.totalorder %s48, 0
    %s51 = sadd.s32 %s50, 1
    %s52 = scalar_select %p49, %s50, %s51
    %p55 = pneg %p49
    %p56 = scmp.eq.s32.totalorder %s14, 1
    %p57 = por %p55, %p56
    %p58 = scmp.ne.s32.totalorder %s50, %s53
    %p59 = scmp.eq.s32.totalorder %s14, 0
    %p60 = por %p58, %p59
    %p61 = scmp.ne.s32.totalorder %s50, %s53
    %p62 = scmp.eq.s32.totalorder %s19, 1
    %p63 = por %p61, %p62
    %p64 = scmp.ne.s32.totalorder %s53, %s54
    %p65 = scmp.eq.s32.totalorder %s19, 0
    %p66 = por %p64, %p65
    %p67 = scmp.ne.s32.totalorder %s53, %s54
    %p68 = scmp.eq.s32.totalorder %s20, 1
    %p69 = por %p67, %p68
    %p71 = scmp.ne.s32.totalorder %s54, %s70
    %p72 = scmp.eq.s32.totalorder %s20, 0
    %p73 = por %p71, %p72
    %s75 = sadd.s32 %s74, 1
    %p78 = scmp.eq.s32.totalorder %s14, 1
    %p79 = scmp.ne.s32.totalorder %s74, %s76
    %p80 = scmp.eq.s32.totalorder %s14, 0
    %p81 = por %p79, %p80
    %p82 = scmp.ne.s32.totalorder %s74, %s76
    %p83 = scmp.eq.s32.totalorder %s19, 1
    %p84 = por %p82, %p83
    %p85 = scmp.ne.s32.totalorder %s76, %s77
    %p86 = scmp.eq.s32.totalorder %s19, 0
    %p87 = por %p85, %p86
    %p88 = scmp.ne.s32.totalorder %s76, %s77
    %p89 = scmp.eq.s32.totalorder %s20, 1
    %p90 = por %p88, %p89
    %p92 = scmp.ne.s32.totalorder %s77, %s91
    %p93 = scmp.eq.s32.totalorder %s20, 0
    %p94 = por %p92, %p93
    %s96 = sadd.s32 %s95, 1
    %p99 = scmp.eq.s32.totalorder %s14, 1
    %p100 = scmp.ne.s32.totalorder %s95, %s97
    %p101 = scmp.eq.s32.totalorder %s14, 0
    %p102 = por %p100, %p101
    %p103 = scmp.ne.s32.totalorder %s95, %s97
    %p104 = scmp.eq.s32.totalorder %s19, 1
    %p105 = por %p103, %p104
    %p106 = scmp.ne.s32.totalorder %s97, %s98
    %p107 = scmp.eq.s32.totalorder %s19, 0
    %p108 = por %p106, %p107
    %p109 = scmp.ne.s32.totalorder %s97, %s98
    %p110 = scmp.eq.s32.totalorder %s20, 1
    %p111 = por %p109, %p110
    %p113 = scmp.ne.s32.totalorder %s98, %s112
    %p114 = scmp.eq.s32.totalorder %s20, 0
    %p115 = por %p113, %p114
    %s117 = sadd.s32 %s116, 1
    %p120 = scmp.eq.s32.totalorder %s14, 1
    %p121 = scmp.ne.s32.totalorder %s116, %s118
    %p122 = scmp.eq.s32.totalorder %s14, 0
    %p123 = por %p121, %p122
    %p124 = scmp.ne.s32.totalorder %s116, %s118
    %p125 = scmp.eq.s32.totalorder %s19, 1
    %p126 = por %p124, %p125
    %p127 = scmp.ne.s32.totalorder %s118, %s119
    %p128 = scmp.eq.s32.totalorder %s19, 0
    %p129 = por %p127, %p128
    %p130 = scmp.ne.s32.totalorder %s118, %s119
    %p131 = scmp.eq.s32.totalorder %s20, 1
    %p132 = por %p130, %p131
    %p134 = scmp.ne.s32.totalorder %s119, %s133
    %p135 = scmp.eq.s32.totalorder %s20, 0
    %p136 = por %p134, %p135
    %s138 = sadd.s32 %s137, 1
    %p141 = scmp.eq.s32.totalorder %s14, 1
    %p142 = scmp.ne.s32.totalorder %s137, %s139
    %p143 = scmp.eq.s32.totalorder %s14, 0
    %p144 = por %p142, %p143
    %p145 = scmp.ne.s32.totalorder %s137, %s139
    %p146 = scmp.eq.s32.totalorder %s19, 1
    %p147 = por %p145, %p146
    %p148 = scmp.ne.s32.totalorder %s139, %s140
    %p149 = scmp.eq.s32.totalorder %s19, 0
    %p150 = por %p148, %p149
    %p151 = scmp.ne.s32.totalorder %s139, %s140
    %p152 = scmp.eq.s32.totalorder %s20, 1
    %p153 = por %p151, %p152
    %p155 = scmp.ne.s32.totalorder %s140, %s154
    %p156 = scmp.eq.s32.totalorder %s20, 0
    %p157 = por %p155, %p156
    %s159 = sadd.s32 %s158, 1
    %p162 = scmp.eq.s32.totalorder %s14, 1
    %p163 = scmp.ne.s32.totalorder %s158, %s160
    %p164 = scmp.eq.s32.totalorder %s14, 0
    %p165 = por %p163, %p164
    %p166 = scmp.ne.s32.totalorder %s158, %s160
    %p167 = scmp.eq.s32.totalorder %s19, 1
    %p168 = por %p166, %p167
    %p169 = scmp.ne.s32.totalorder %s160, %s161
    %p170 = scmp.eq.s32.totalorder %s19, 0
    %p171 = por %p169, %p170
    %p172 = scmp.ne.s32.totalorder %s160, %s161
    %p173 = scmp.eq.s32.totalorder %s20, 1
    %p174 = por %p172, %p173
    %p176 = scmp.ne.s32.totalorder %s161, %s175
    %p177 = scmp.eq.s32.totalorder %s20, 0
    %p178 = por %p176, %p177
    %s180 = sadd.s32 %s179, 1
    %p183 = scmp.eq.s32.totalorder %s14, 1
    %p184 = scmp.ne.s32.totalorder %s179, %s181
    %p185 = scmp.eq.s32.totalorder %s14, 0
    %p186 = por %p184, %p185
    %p187 = scmp.ne.s32.totalorder %s179, %s181
    %p188 = scmp.eq.s32.totalorder %s19, 1
    %p189 = por %p187, %p188
    %p190 = scmp.ne.s32.totalorder %s181, %s182
    %p191 = scmp.eq.s32.totalorder %s19, 0
    %p192 = por %p190, %p191
    %p193 = scmp.ne.s32.totalorder %s181, %s182
    %p194 = scmp.eq.s32.totalorder %s20, 1
    %p195 = por %p193, %p194
    %p197 = scmp.ne.s32.totalorder %s182, %s196
    %p198 = scmp.eq.s32.totalorder %s20, 0
    %p199 = por %p197, %p198
    %s200 = ssub.s32 %s14, %s21
    %p201 = scmp.eq.s32.totalorder %s200, 0
    %s203 = sadd.s32 %s202, 1
    %s204 = scalar_select %p201, %s202, %s203
    %p207 = pneg %p201
    %p208 = scmp.eq.s32.totalorder %s14, 1
    %p209 = por %p207, %p208
    %p210 = scmp.ne.s32.totalorder %s202, %s205
    %p211 = scmp.eq.s32.totalorder %s14, 0
    %p212 = por %p210, %p211
    %p213 = scmp.ne.s32.totalorder %s202, %s205
    %p214 = scmp.eq.s32.totalorder %s19, 1
    %p215 = por %p213, %p214
    %p216 = scmp.ne.s32.totalorder %s205, %s206
    %p217 = scmp.eq.s32.totalorder %s19, 0
    %p218 = por %p216, %p217
    %p219 = scmp.ne.s32.totalorder %s205, %s206
    %p220 = scmp.eq.s32.totalorder %s20, 1
    %p221 = por %p219, %p220
    %p223 = scmp.ne.s32.totalorder %s206, %s222
    %p224 = scmp.eq.s32.totalorder %s20, 0
    %p225 = por %p223, %p224
    %p226 = scmp.le.s32.totalorder 1, %s14
    %p227 = scmp.lt.s32.totalorder %s14, 3
    %p228 = pnand %p226, %p227
    %p229 = pneg %p228
    // Predicated region
    $region9: #{_lambda_.9} parent=5 // pred_check
      _
    $region10: #{_lambda_.9} parent=5 // pred_check_branch
      %231 = sbr.rel (%p228) target = $region12
    $region11: #{_lambda_.9} parent=5 // pred_region
      %s232 = ssub.s32 %s14, 1
      // Predicated region
      $region13: #{_lambda_.9} parent=11 // pred_check
        %p233 = pneg %p87
      $region14: #{_lambda_.9} parent=11 // pred_check_branch
        %235 = sbr.rel (%p233) target = $region16
      $region15: #{_lambda_.9} parent=11 // pred_region
        _
      $region16: #{_lambda_.9} parent=11 // pred_fallthru
        _
      // Predicated region
      $region17: #{_lambda_.9} parent=11 // pred_check
        %p236 = pneg %p108
      $region18: #{_lambda_.9} parent=11 // pred_check_branch
        %238 = sbr.rel (%p236) target = $region20
      $region19: #{_lambda_.9} parent=11 // pred_region
        _
      $region20: #{_lambda_.9} parent=11 // pred_fallthru
        _
      // Predicated region
      $region21: #{_lambda_.9} parent=11 // pred_check
        %p239 = pneg %p129
      $region22: #{_lambda_.9} parent=11 // pred_check_branch
        %241 = sbr.rel (%p239) target = $region24
      $region23: #{_lambda_.9} parent=11 // pred_region
        _
      $region24: #{_lambda_.9} parent=11 // pred_fallthru
        _
      // Predicated region
      $region25: #{_lambda_.9} parent=11 // pred_check
        %p242 = pneg %p150
      $region26: #{_lambda_.9} parent=11 // pred_check_branch
        %244 = sbr.rel (%p242) target = $region28
      $region27: #{_lambda_.9} parent=11 // pred_region
        _
      $region28: #{_lambda_.9} parent=11 // pred_fallthru
        _
      // Predicated region
      $region29: #{_lambda_.9} parent=11 // pred_check
        %p245 = pneg %p171
      $region30: #{_lambda_.9} parent=11 // pred_check_branch
        %247 = sbr.rel (%p245) target = $region32
      $region31: #{_lambda_.9} parent=11 // pred_region
        _
      $region32: #{_lambda_.9} parent=11 // pred_fallthru
        _
      // Predicated region
      $region33: #{_lambda_.9} parent=11 // pred_check
        %p248 = pneg %p192
      $region34: #{_lambda_.9} parent=11 // pred_check_branch
        %250 = sbr.rel (%p248) target = $region36
      $region35: #{_lambda_.9} parent=11 // pred_region
        _
      $region36: #{_lambda_.9} parent=11 // pred_fallthru
        _
    $region12: #{_lambda_.9} parent=5 // pred_fallthru
      _
    %p251 = scmp.lt.s32.totalorder %s14, 2
    // Predicated region
    $region37: #{_lambda_.9} parent=5 // pred_check
      %p252 = pneg %p251
    $region38: #{_lambda_.9} parent=5 // pred_check_branch
      %254 = sbr.rel (%p252) target = $region40
    $region39: #{_lambda_.9} parent=5 // pred_region
      // Predicated region
      $region41: #{_lambda_.9} parent=39 // pred_check
        %p255 = pneg %p34
      $region42: #{_lambda_.9} parent=39 // pred_check_branch
        %257 = sbr.rel (%p255) target = $region44
      $region43: #{_lambda_.9} parent=39 // pred_region
        %p258 = scmp.lt.s32.totalorder %s14, 1
        %s259 = scalar_select %p258, %s14, 1
        %s260 = smul.addr %s259, 8
        %s261 = scalar_lea.vmem %s0, %s260
      $region44: #{_lambda_.9} parent=39 // pred_fallthru
        _
      // Predicated region
      $region45: #{_lambda_.9} parent=39 // pred_check
        %p262 = pneg %p60
      $region46: #{_lambda_.9} parent=39 // pred_check_branch
        %264 = sbr.rel (%p262) target = $region48
      $region47: #{_lambda_.9} parent=39 // pred_region
        %p265 = scmp.lt.s32.totalorder %s14, 1
        %s266 = scalar_select %p265, %s14, 1
        %s267 = smul.addr %s266, 4
        %s268 = smul.addr %s267, 4
        %s269 = scalar_lea.vmem %s1, %s268
      $region48: #{_lambda_.9} parent=39 // pred_fallthru
        _
    $region40: #{_lambda_.9} parent=5 // pred_fallthru
      _
    %p270 = scmp.le.s32.totalorder 1, %s14
    %p271 = scmp.lt.s32.totalorder %s14, 3
    %p272 = pnand %p270, %p271
    %p273 = pneg %p272
    // Predicated region
    $region49: #{_lambda_.9} parent=5 // pred_check
      _
    $region50: #{_lambda_.9} parent=5 // pred_check_branch
      %275 = sbr.rel (%p272) target = $region52
    $region51: #{_lambda_.9} parent=5 // pred_region
      %s276 = ssub.s32 %s14, 1
      %p277 = scmp.lt.s32.totalorder %s19, 1
      %s278 = scalar_select %p277, %s19, 1
      %s279 = smul.addr %s278, 8
      %s280 = scalar_lea.vmem %s0, %s279
      %p281 = pneg %p40
      %p282 = pneg %p37
      %p283 = scmp.lt.s32.totalorder %s19, 1
      %s284 = scalar_select %p283, %s19, 1
      %s285 = smul.addr %s284, 4
      %s286 = smul.addr %s285, 4
      %s287 = scalar_lea.vmem %s1, %s286
      %p288 = pneg %p66
      %p289 = pneg %p63
      %p290 = pneg %p87
      %p291 = pneg %p84
      %p292 = pneg %p108
      %p293 = pneg %p105
      %p294 = pneg %p129
      %p295 = pneg %p126
      %p296 = pneg %p150
      %p297 = pneg %p147
      %p298 = pneg %p171
      %p299 = pneg %p168
      %p300 = pneg %p192
      %p301 = pneg %p189
      %p302 = pneg %p218
      %p303 = pneg %p215
      %p304 = scmp.lt.s32.totalorder %s19, 1
      %s305 = scalar_select %p304, %s19, 1
      %s306 = smul.addr %s305, 8
      %s307 = scalar_lea.vmem %s8, %s306
      %p308 = scmp.lt.s32.totalorder %s19, 1
      %s309 = scalar_select %p308, %s19, 1
      %s310 = smul.addr %s309, 8
      %s311 = scalar_lea.vmem %s0, %s310
      %p312 = scmp.lt.s32.totalorder %s19, 1
      %s313 = scalar_select %p312, %s19, 1
      %s314 = smul.addr %s313, 4
      %s315 = smul.addr %s314, 4
      %s316 = scalar_lea.vmem %s1, %s315
      %p317 = scmp.lt.s32.totalorder %s19, 1
      %s318 = scalar_select %p317, %s19, 1
      %s319 = smul.addr %s318, 8
      %s320 = scalar_lea.vmem %s8, %s319
      %v322 = vld [vmem:[%s311] sm:$0xff]
      %v323 = vpack.c.bf16 %v322, %v322
      %v324 = vld [vmem:[%s2] sm:$0xf]
      %v325 = vld [vmem:[%s2 + $0x4] sm:$0xf]
      %v326 = vld [vmem:[%s2 + $0x8] sm:$0xf]
      %v327 = vld [vmem:[%s2 + $0xc] sm:$0xf]
      %v328 = vld [vmem:[%s2 + $0x10] sm:$0xf]
      %v329 = vld [vmem:[%s2 + $0x14] sm:$0xf]
      %v330 = vld [vmem:[%s2 + $0x18] sm:$0xf]
      %v331 = vld [vmem:[%s2 + $0x1c] sm:$0xf]
      %v332 = vld [vmem:[%s2 + $0x20] sm:$0xf]
      %v333 = vld [vmem:[%s2 + $0x24] sm:$0xf]
      %v334 = vld [vmem:[%s2 + $0x28] sm:$0xf]
      %v335 = vld [vmem:[%s2 + $0x2c] sm:$0xf]
      %v336 = vld [vmem:[%s2 + $0x30] sm:$0xf]
      %v337 = vld [vmem:[%s2 + $0x34] sm:$0xf]
      %v338 = vld [vmem:[%s2 + $0x38] sm:$0xf]
      %v339 = vld [vmem:[%s2 + $0x3c] sm:$0xf]
      %v340 = vld [vmem:[%s3] sm:$0x1]
      %v342 = vlaneseq
      %v343 = vshrl.u32 %v342, 7
      %v344 = vsub.s32 0, %v343
      %v345 = vrot.slane %v340, %v344
      %v363 = vunpack.c.l.b16 %v324
      %v364 = vunpack.c.l.b16 %v325
      %v365 = vunpack.c.l.b16 %v326
      %v366 = vunpack.c.l.b16 %v327
      %v367 = vunpack.c.l.b16 %v328
      %v368 = vunpack.c.l.b16 %v329
      %v369 = vunpack.c.l.b16 %v330
      %v370 = vunpack.c.l.b16 %v331
      %v371 = vunpack.c.l.b16 %v332
      %v372 = vunpack.c.l.b16 %v333
      %v373 = vunpack.c.l.b16 %v334
      %v374 = vunpack.c.l.b16 %v335
      %v375 = vunpack.c.l.b16 %v336
      %v376 = vunpack.c.l.b16 %v337
      %v377 = vunpack.c.l.b16 %v338
      %v378 = vunpack.c.l.b16 %v339
      %v379 = vpack.c.b16 %v364, %v363
      %v380 = vpack.c.b16 %v366, %v365
      %v381 = vpack.c.b16 %v368, %v367
      %v382 = vpack.c.b16 %v370, %v369
      %v383 = vpack.c.b16 %v372, %v371
      %v384 = vpack.c.b16 %v374, %v373
      %v385 = vpack.c.b16 %v376, %v375
      %v386 = vpack.c.b16 %v378, %v377
      %395 = vmatprep.subr.bf16.mxu0 0
      %396 = vmatpush1.bf16.msra.mxu0 %v379
      %397 = vmatprep.subr.bf16.mxu0 0
      %398 = vmatpush1.bf16.msra.mxu0 %v380
      %399 = vmatprep.subr.bf16.mxu0 0
      %400 = vmatpush1.bf16.msra.mxu0 %v381
      %401 = vmatprep.subr.bf16.mxu0 0
      %402 = vmatpush1.bf16.msra.mxu0 %v382
      %403 = vmatprep.subr.bf16.mxu0 0
      %404 = vmatpush1.bf16.msra.mxu0 %v383
      %405 = vmatprep.subr.bf16.mxu0 0
      %406 = vmatpush1.bf16.msra.mxu0 %v384
      %407 = vmatprep.subr.bf16.mxu0 0
      %408 = vmatpush1.bf16.msra.mxu0 %v385
      %409 = vmatprep.subr.bf16.mxu0 0
      %410 = vmatpush1.bf16.msra.mxu0 %v386
      %411 = vmatprep.subr.bf16.mxu0 0
      %412 = vmatpush1.bf16.msra.mxu0 0
      %413 = vmatprep.subr.bf16.mxu0 0
      %414 = vmatpush1.bf16.msra.mxu0 0
      %415 = vmatprep.subr.bf16.mxu0 0
      %416 = vmatpush1.bf16.msra.mxu0 0
      %417 = vmatprep.subr.bf16.mxu0 0
      %418 = vmatpush1.bf16.msra.mxu0 0
      %419 = vmatprep.subr.bf16.mxu0 0
      %420 = vmatpush1.bf16.msra.mxu0 0
      %421 = vmatprep.subr.bf16.mxu0 0
      %422 = vmatpush1.bf16.msra.mxu0 0
      %423 = vmatprep.subr.bf16.mxu0 0
      %424 = vmatpush1.bf16.msra.mxu0 0
      %425 = vmatprep.subr.bf16.mxu0 0
      %426 = vmatpush1.bf16.msra.mxu0 0
      %427 = vmatprep.mubr.bf16.mxu0 0
      %428 = vmatmul.mubr.bf16.gmra.mrb[0].mxu0 %v323
      %v429 = vpop.f32.mrb[0].mxu0
      %v430 = vadd.f32 %v345, %v429
      %v431 = vpop.f32.mrb[0].mxu0
      %v432 = vpop.f32.mrb[0].mxu0
      %v433 = vpop.f32.mrb[0].mxu0
      %434 = vdwg.mxu0
      %v435 = vpack.c.bf16 %v430, %v430
      %v436 = vld [vmem:[%s316] sm:$0xff]
      %v437 = vld [vmem:[%s316 + $0x8] sm:$0xff]
      %v438 = vld [vmem:[%s4] sm:$0xf]
      %v439 = vld [vmem:[%s4 + $0x4] sm:$0xf]
      %v440 = vld [vmem:[%s4 + $0x8] sm:$0xf]
      %v441 = vld [vmem:[%s4 + $0xc] sm:$0xf]
      %v442 = vld [vmem:[%s4 + $0x10] sm:$0xf]
      %v443 = vld [vmem:[%s4 + $0x14] sm:$0xf]
      %v444 = vld [vmem:[%s4 + $0x18] sm:$0xf]
      %v445 = vld [vmem:[%s4 + $0x1c] sm:$0xf]
      %v446 = vld [vmem:[%s4 + $0x20] sm:$0xf]
      %v447 = vld [vmem:[%s4 + $0x24] sm:$0xf]
      %v448 = vld [vmem:[%s4 + $0x28] sm:$0xf]
      %v449 = vld [vmem:[%s4 + $0x2c] sm:$0xf]
      %v450 = vld [vmem:[%s4 + $0x30] sm:$0xf]
      %v451 = vld [vmem:[%s4 + $0x34] sm:$0xf]
      %v452 = vld [vmem:[%s4 + $0x38] sm:$0xf]
      %v453 = vld [vmem:[%s4 + $0x3c] sm:$0xf]
      %v456 = vunpack.c.l.b16 %v436
      %v457 = vunpack.c.l.b16 %v437
      %v458 = vpack.c.b16 %v457, %v456
      %vm459 = vcmask 261120
      %v461 = vsel %vm459, %v435, 0
      %v464 = vsel %vm459, %v458, 0
      %466 = vmatprep.subr.bf16.mxu0 0
      %467 = vmatpush1.bf16.xpose.msra.mxu0 %v464
      %468 = vmatprep.subr.bf16.mxu0 0
      %469 = vmatpush1.bf16.xpose.msra.mxu0 0
      %470 = vmatprep.subr.bf16.mxu0 0
      %471 = vmatpush1.bf16.xpose.msra.mxu0 0
      %472 = vmatprep.subr.bf16.mxu0 0
      %473 = vmatpush1.bf16.xpose.msra.mxu0 0
      %474 = vmatprep.subr.bf16.mxu0 0
      %475 = vmatpush1.bf16.xpose.msra.mxu0 0
      %476 = vmatprep.subr.bf16.mxu0 0
      %477 = vmatpush1.bf16.xpose.msra.mxu0 0
      %478 = vmatprep.subr.bf16.mxu0 0
      %479 = vmatpush1.bf16.xpose.msra.mxu0 0
      %480 = vmatprep.subr.bf16.mxu0 0
      %481 = vmatpush1.bf16.xpose.msra.mxu0 0
      %482 = vmatprep.subr.bf16.mxu0 0
      %483 = vmatpush1.bf16.xpose.msra.mxu0 0
      %484 = vmatprep.subr.bf16.mxu0 0
      %485 = vmatpush1.bf16.xpose.msra.mxu0 0
      %486 = vmatprep.subr.bf16.mxu0 0
      %487 = vmatpush1.bf16.xpose.msra.mxu0 0
      %488 = vmatprep.subr.bf16.mxu0 0
      %489 = vmatpush1.bf16.xpose.msra.mxu0 0
      %490 = vmatprep.subr.bf16.mxu0 0
      %491 = vmatpush1.bf16.xpose.msra.mxu0 0
      %492 = vmatprep.subr.bf16.mxu0 0
      %493 = vmatpush1.bf16.xpose.msra.mxu0 0
      %494 = vmatprep.subr.bf16.mxu0 0
      %495 = vmatpush1.bf16.xpose.msra.mxu0 0
      %496 = vmatprep.subr.bf16.mxu0 0
      %497 = vmatpush1.bf16.xpose.msra.mxu0 0
      %498 = vmatprep.mubr.bf16.mxu0 0
      %499 = vmatmul.mubr.bf16.gmra.mrb[0].mxu0 %v461
      %v500 = vpop.f32.mrb[0].mxu0
      %v501 = vadd.f32 0.0, %v500
      %v502 = vpop.f32.mrb[0].mxu0
      %v503 = vpop.f32.mrb[0].mxu0
      %v504 = vpop.f32.mrb[0].mxu0
      %505 = vdwg.mxu0
      %v506 = vmul.f32 %v501, 0.17677669
      %vm507 = vcmask 130048
      %v508 = vsel %vm507, %v506, -inf
      %509 = vmax.xlane.f32.xlu0 %v508
      %v510 = vpop.xlane.xlu0 %509
      %v511 = vsub.f32 %v506, %v510
      %v512 = vmul.f32 %v511, 1.442695
      %v513 = vpow.pop %v512
      %v514 = vsel %vm507, %v513, 0.0
      %515 = vadd.xlane.f32.xlu0 %v514
      %v516 = vpop.xlane.xlu0 %515
      %v517 = vrcp.pop %v516
      %v518 = vmul.f32 %v513, %v517
      %v519 = vpack.c.bf16 %v518, %v518
      %v520 = vunpack.c.h.b16 %v436
      %v521 = vunpack.c.h.b16 %v437
      %v522 = vpack.c.b16 %v521, %v520
      %v525 = vsel %vm507, %v519, 0
      %527 = vmatprep.subr.bf16.mxu0 0
      %528 = vmatpush1.bf16.msra.mxu0 %v522
      %529 = vmatprep.subr.bf16.mxu0 0
      %530 = vmatpush1.bf16.msra.mxu0 0
      %531 = vmatprep.subr.bf16.mxu0 0
      %532 = vmatpush1.bf16.msra.mxu0 0
      %533 = vmatprep.subr.bf16.mxu0 0
      %534 = vmatpush1.bf16.msra.mxu0 0
      %535 = vmatprep.subr.bf16.mxu0 0
      %536 = vmatpush1.bf16.msra.mxu0 0
      %537 = vmatprep.subr.bf16.mxu0 0
      %538 = vmatpush1.bf16.msra.mxu0 0
      %539 = vmatprep.subr.bf16.mxu0 0
      %540 = vmatpush1.bf16.msra.mxu0 0
      %541 = vmatprep.subr.bf16.mxu0 0
      %542 = vmatpush1.bf16.msra.mxu0 0
      %543 = vmatprep.subr.bf16.mxu0 0
      %544 = vmatpush1.bf16.msra.mxu0 0
      %545 = vmatprep.subr.bf16.mxu0 0
      %546 = vmatpush1.bf16.msra.mxu0 0
      %547 = vmatprep.subr.bf16.mxu0 0
      %548 = vmatpush1.bf16.msra.mxu0 0
      %549 = vmatprep.subr.bf16.mxu0 0
      %550 = vmatpush1.bf16.msra.mxu0 0
      %551 = vmatprep.subr.bf16.mxu0 0
      %552 = vmatpush1.bf16.msra.mxu0 0
      %553 = vmatprep.subr.bf16.mxu0 0
      %554 = vmatpush1.bf16.msra.mxu0 0
      %555 = vmatprep.subr.bf16.mxu0 0
      %556 = vmatpush1.bf16.msra.mxu0 0
      %557 = vmatprep.subr.bf16.mxu0 0
      %558 = vmatpush1.bf16.msra.mxu0 0
      %559 = vmatprep.mubr.bf16.mxu0 0
      %560 = vmatmul.mubr.bf16.gmra.mrb[0].mxu0 %v525
      %v561 = vpop.f32.mrb[0].mxu0
      %v562 = vadd.f32 0.0, %v561
      %v563 = vpop.f32.mrb[0].mxu0
      %v564 = vpop.f32.mrb[0].mxu0
      %v565 = vpop.f32.mrb[0].mxu0
      %566 = vdwg.mxu0
      %v567 = vpack.c.bf16 %v562, %v562
      %569 = vrot.lane.b32.xlu0 %v435, 96
      %v570 = vpop.permute.xlu0 %569
      %571 = vrot.lane.b32.xlu0 %v458, 96
      %v572 = vpop.permute.xlu0 %571
      %v574 = vsel %vm459, %v570, 0
      %v577 = vsel %vm459, %v572, 0
      %579 = vmatprep.subr.bf16.mxu0 0
      %580 = vmatpush1.bf16.xpose.msra.mxu0 %v577
      %581 = vmatprep.subr.bf16.mxu0 0
      %582 = vmatpush1.bf16.xpose.msra.mxu0 0
      %583 = vmatprep.subr.bf16.mxu0 0
      %584 = vmatpush1.bf16.xpose.msra.mxu0 0
      %585 = vmatprep.subr.bf16.mxu0 0
      %586 = vmatpush1.bf16.xpose.msra.mxu0 0
      %587 = vmatprep.subr.bf16.mxu0 0
      %588 = vmatpush1.bf16.xpose.msra.mxu0 0
      %589 = vmatprep.subr.bf16.mxu0 0
      %590 = vmatpush1.bf16.xpose.msra.mxu0 0
      %591 = vmatprep.subr.bf16.mxu0 0
      %592 = vmatpush1.bf16.xpose.msra.mxu0 0
      %593 = vmatprep.subr.bf16.mxu0 0
      %594 = vmatpush1.bf16.xpose.msra.mxu0 0
      %595 = vmatprep.subr.bf16.mxu0 0
      %596 = vmatpush1.bf16.xpose.msra.mxu0 0
      %597 = vmatprep.subr.bf16.mxu0 0
      %598 = vmatpush1.bf16.xpose.msra.mxu0 0
      %599 = vmatprep.subr.bf16.mxu0 0
      %600 = vmatpush1.bf16.xpose.msra.mxu0 0
      %601 = vmatprep.subr.bf16.mxu0 0
      %602 = vmatpush1.bf16.xpose.msra.mxu0 0
      %603 = vmatprep.subr.bf16.mxu0 0
      %604 = vmatpush1.bf16.xpose.msra.mxu0 0
      %605 = vmatprep.subr.bf16.mxu0 0
      %606 = vmatpush1.bf16.xpose.msra.mxu0 0
      %607 = vmatprep.subr.bf16.mxu0 0
      %608 = vmatpush1.bf16.xpose.msra.mxu0 0
      %609 = vmatprep.subr.bf16.mxu0 0
      %610 = vmatpush1.bf16.xpose.msra.mxu0 0
      %611 = vmatprep.mubr.bf16.mxu0 0
      %612 = vmatmul.mubr.bf16.gmra.mrb[0].mxu0 %v574
      %v613 = vpop.f32.mrb[0].mxu0
      %v614 = vadd.f32 0.0, %v613
      %v615 = vpop.f32.mrb[0].mxu0
      %v616 = vpop.f32.mrb[0].mxu0
      %v617 = vpop.f32.mrb[0].mxu0
      %618 = vdwg.mxu0
      %v619 = vmul.f32 %v614, 0.17677669
      %v620 = vsel %vm507, %v619, -inf
      %621 = vmax.xlane.f32.xlu0 %v620
      %v622 = vpop.xlane.xlu0 %621
      %v623 = vsub.f32 %v619, %v622
      %v624 = vmul.f32 %v623, 1.442695
      %v625 = vpow.pop %v624
      %v626 = vsel %vm507, %v625, 0.0
      %627 = vadd.xlane.f32.xlu0 %v626
      %v628 = vpop.xlane.xlu0 %627
      %v629 = vrcp.pop %v628
      %v630 = vmul.f32 %v625, %v629
      %v631 = vpack.c.bf16 %v630, %v630
      %632 = vrot.lane.b32.xlu0 %v522, 96
      %v633 = vpop.permute.xlu0 %632
      %v636 = vsel %vm507, %v631, 0
      %638 = vmatprep.subr.bf16.mxu0 0
      %639 = vmatpush1.bf16.msra.mxu0 %v633
      %640 = vmatprep.subr.bf16.mxu0 0
      %641 = vmatpush1.bf16.msra.mxu0 0
      %642 = vmatprep.subr.bf16.mxu0 0
      %643 = vmatpush1.bf16.msra.mxu0 0
      %644 = vmatprep.subr.bf16.mxu0 0
      %645 = vmatpush1.bf16.msra.mxu0 0
      %646 = vmatprep.subr.bf16.mxu0 0
      %647 = vmatpush1.bf16.msra.mxu0 0
      %648 = vmatprep.subr.bf16.mxu0 0
      %649 = vmatpush1.bf16.msra.mxu0 0
      %650 = vmatprep.subr.bf16.mxu0 0
      %651 = vmatpush1.bf16.msra.mxu0 0
      %652 = vmatprep.subr.bf16.mxu0 0
      %653 = vmatpush1.bf16.msra.mxu0 0
      %654 = vmatprep.subr.bf16.mxu0 0
      %655 = vmatpush1.bf16.msra.mxu0 0
      %656 = vmatprep.subr.bf16.mxu0 0
      %657 = vmatpush1.bf16.msra.mxu0 0
      %658 = vmatprep.subr.bf16.mxu0 0
      %659 = vmatpush1.bf16.msra.mxu0 0
      %660 = vmatprep.subr.bf16.mxu0 0
      %661 = vmatpush1.bf16.msra.mxu0 0
      %662 = vmatprep.subr.bf16.mxu0 0
      %663 = vmatpush1.bf16.msra.mxu0 0
      %664 = vmatprep.subr.bf16.mxu0 0
      %665 = vmatpush1.bf16.msra.mxu0 0
      %666 = vmatprep.subr.bf16.mxu0 0
      %667 = vmatpush1.bf16.msra.mxu0 0
      %668 = vmatprep.subr.bf16.mxu0 0
      %669 = vmatpush1.bf16.msra.mxu0 0
      %670 = vmatprep.mubr.bf16.mxu0 0
      %671 = vmatmul.mubr.bf16.gmra.mrb[0].mxu0 %v636
      %v672 = vpop.f32.mrb[0].mxu0
      %v673 = vadd.f32 0.0, %v672
      %v674 = vpop.f32.mrb[0].mxu0
      %v675 = vpop.f32.mrb[0].mxu0
      %v676 = vpop.f32.mrb[0].mxu0
      %677 = vdwg.mxu0
      %v678 = vpack.c.bf16 %v673, %v673
      %v683 = vunpack.c.l.b16 %v442
      %v684 = vunpack.c.l.b16 %v443
      %v685 = vunpack.c.l.b16 %v444
      %v686 = vunpack.c.l.b16 %v445
      %v687 = vpack.c.b16 %v684, %v683
      %v688 = vpack.c.b16 %v686, %v685
      %v692 = vsel %vm459, %v678, 0
      %694 = vmatprep.subr.bf16.mxu0 0
      %695 = vmatpush1.bf16.msra.mxu0 %v687
      %696 = vmatprep.subr.bf16.mxu0 0
      %697 = vmatpush1.bf16.msra.mxu0 %v688
      %698 = vmatprep.subr.bf16.mxu0 0
      %699 = vmatpush1.bf16.msra.mxu0 0
      %700 = vmatprep.subr.bf16.mxu0 0
      %701 = vmatpush1.bf16.msra.mxu0 0
      %702 = vmatprep.subr.bf16.mxu0 0
      %703 = vmatpush1.bf16.msra.mxu0 0
      %704 = vmatprep.subr.bf16.mxu0 0
      %705 = vmatpush1.bf16.msra.mxu0 0
      %706 = vmatprep.subr.bf16.mxu0 0
      %707 = vmatpush1.bf16.msra.mxu0 0
      %708 = vmatprep.subr.bf16.mxu0 0
      %709 = vmatpush1.bf16.msra.mxu0 0
      %710 = vmatprep.subr.bf16.mxu0 0
      %711 = vmatpush1.bf16.msra.mxu0 0
      %712 = vmatprep.subr.bf16.mxu0 0
      %713 = vmatpush1.bf16.msra.mxu0 0
      %714 = vmatprep.subr.bf16.mxu0 0
      %715 = vmatpush1.bf16.msra.mxu0 0
      %716 = vmatprep.subr.bf16.mxu0 0
      %717 = vmatpush1.bf16.msra.mxu0 0
      %718 = vmatprep.subr.bf16.mxu0 0
      %719 = vmatpush1.bf16.msra.mxu0 0
      %720 = vmatprep.subr.bf16.mxu0 0
      %721 = vmatpush1.bf16.msra.mxu0 0
      %722 = vmatprep.subr.bf16.mxu0 0
      %723 = vmatpush1.bf16.msra.mxu0 0
      %724 = vmatprep.subr.bf16.mxu0 0
      %725 = vmatpush1.bf16.msra.mxu0 0
      %726 = vmatprep.mubr.bf16.mxu0 0
      %727 = vmatmul.mubr.bf16.gmra.mrb[0].mxu0 %v692
      %v728 = vpop.f32.mrb[0].mxu0
      %v729 = vadd.f32 0.0, %v728
      %v730 = vpop.f32.mrb[0].mxu0
      %v731 = vpop.f32.mrb[0].mxu0
      %v732 = vpop.f32.mrb[0].mxu0
      %733 = vdwg.mxu0
      %v738 = vunpack.c.l.b16 %v438
      %v739 = vunpack.c.l.b16 %v439
      %v740 = vunpack.c.l.b16 %v440
      %v741 = vunpack.c.l.b16 %v441
      %v742 = vpack.c.b16 %v739, %v738
      %v743 = vpack.c.b16 %v741, %v740
      %v747 = vsel %vm459, %v567, 0
      %749 = vmatprep.subr.bf16.mxu0 0
      %750 = vmatpush1.bf16.msra.mxu0 %v742
      %751 = vmatprep.subr.bf16.mxu0 0
      %752 = vmatpush1.bf16.msra.mxu0 %v743
      %753 = vmatprep.subr.bf16.mxu0 0
      %754 = vmatpush1.bf16.msra.mxu0 0
      %755 = vmatprep.subr.bf16.mxu0 0
      %756 = vmatpush1.bf16.msra.mxu0 0
      %757 = vmatprep.subr.bf16.mxu0 0
      %758 = vmatpush1.bf16.msra.mxu0 0
      %759 = vmatprep.subr.bf16.mxu0 0
      %760 = vmatpush1.bf16.msra.mxu0 0
      %761 = vmatprep.subr.bf16.mxu0 0
      %762 = vmatpush1.bf16.msra.mxu0 0
      %763 = vmatprep.subr.bf16.mxu0 0
      %764 = vmatpush1.bf16.msra.mxu0 0
      %765 = vmatprep.subr.bf16.mxu0 0
      %766 = vmatpush1.bf16.msra.mxu0 0
      %767 = vmatprep.subr.bf16.mxu0 0
      %768 = vmatpush1.bf16.msra.mxu0 0
      %769 = vmatprep.subr.bf16.mxu0 0
      %770 = vmatpush1.bf16.msra.mxu0 0
      %771 = vmatprep.subr.bf16.mxu0 0
      %772 = vmatpush1.bf16.msra.mxu0 0
      %773 = vmatprep.subr.bf16.mxu0 0
      %774 = vmatpush1.bf16.msra.mxu0 0
      %775 = vmatprep.subr.bf16.mxu0 0
      %776 = vmatpush1.bf16.msra.mxu0 0
      %777 = vmatprep.subr.bf16.mxu0 0
      %778 = vmatpush1.bf16.msra.mxu0 0
      %779 = vmatprep.subr.bf16.mxu0 0
      %780 = vmatpush1.bf16.msra.mxu0 0
      %781 = vmatprep.mubr.bf16.mxu0 0
      %782 = vmatmul.mubr.bf16.gmra.mrb[0].mxu0 %v747
      %v783 = vpop.f32.mrb[0].mxu0
      %v784 = vadd.f32 %v729, %v783
      %v785 = vpop.f32.mrb[0].mxu0
      %v786 = vpop.f32.mrb[0].mxu0
      %v787 = vpop.f32.mrb[0].mxu0
      %788 = vdwg.mxu0
      %789 = vrot.lane.b32.xlu0 %v435, 64
      %v790 = vpop.permute.xlu0 %789
      %791 = vrot.lane.b32.xlu0 %v458, 64
      %v792 = vpop.permute.xlu0 %791
      %v794 = vsel %vm459, %v790, 0
      %v797 = vsel %vm459, %v792, 0
      %799 = vmatprep.subr.bf16.mxu0 0
      %800 = vmatpush1.bf16.xpose.msra.mxu0 %v797
      %801 = vmatprep.subr.bf16.mxu0 0
      %802 = vmatpush1.bf16.xpose.msra.mxu0 0
      %803 = vmatprep.subr.bf16.mxu0 0
      %804 = vmatpush1.bf16.xpose.msra.mxu0 0
      %805 = vmatprep.subr.bf16.mxu0 0
      %806 = vmatpush1.bf16.xpose.msra.mxu0 0
      %807 = vmatprep.subr.bf16.mxu0 0
      %808 = vmatpush1.bf16.xpose.msra.mxu0 0
      %809 = vmatprep.subr.bf16.mxu0 0
      %810 = vmatpush1.bf16.xpose.msra.mxu0 0
      %811 = vmatprep.subr.bf16.mxu0 0
      %812 = vmatpush1.bf16.xpose.msra.mxu0 0
      %813 = vmatprep.subr.bf16.mxu0 0
      %814 = vmatpush1.bf16.xpose.msra.mxu0 0
      %815 = vmatprep.subr.bf16.mxu0 0
      %816 = vmatpush1.bf16.xpose.msra.mxu0 0
      %817 = vmatprep.subr.bf16.mxu0 0
      %818 = vmatpush1.bf16.xpose.msra.mxu0 0
      %819 = vmatprep.subr.bf16.mxu0 0
      %820 = vmatpush1.bf16.xpose.msra.mxu0 0
      %821 = vmatprep.subr.bf16.mxu0 0
      %822 = vmatpush1.bf16.xpose.msra.mxu0 0
      %823 = vmatprep.subr.bf16.mxu0 0
      %824 = vmatpush1.bf16.xpose.msra.mxu0 0
      %825 = vmatprep.subr.bf16.mxu0 0
      %826 = vmatpush1.bf16.xpose.msra.mxu0 0
      %827 = vmatprep.subr.bf16.mxu0 0
      %828 = vmatpush1.bf16.xpose.msra.mxu0 0
      %829 = vmatprep.subr.bf16.mxu0 0
      %830 = vmatpush1.bf16.xpose.msra.mxu0 0
      %831 = vmatprep.mubr.bf16.mxu0 0
      %832 = vmatmul.mubr.bf16.gmra.mrb[0].mxu0 %v794
      %v833 = vpop.f32.mrb[0].mxu0
      %v834 = vadd.f32 0.0, %v833
      %v835 = vpop.f32.mrb[0].mxu0
      %v836 = vpop.f32.mrb[0].mxu0
      %v837 = vpop.f32.mrb[0].mxu0
      %838 = vdwg.mxu0
      %v839 = vmul.f32 %v834, 0.17677669
      %v840 = vsel %vm507, %v839, -inf
      %841 = vmax.xlane.f32.xlu0 %v840
      %v842 = vpop.xlane.xlu0 %841
      %v843 = vsub.f32 %v839, %v842
      %v844 = vmul.f32 %v843, 1.442695
      %v845 = vpow.pop %v844
      %v846 = vsel %vm507, %v845, 0.0
      %847 = vadd.xlane.f32.xlu0 %v846
      %v848 = vpop.xlane.xlu0 %847
      %v849 = vrcp.pop %v848
      %v850 = vmul.f32 %v845, %v849
      %v851 = vpack.c.bf16 %v850, %v850
      %852 = vrot.lane.b32.xlu0 %v522, 64
      %v853 = vpop.permute.xlu0 %852
      %v856 = vsel %vm507, %v851, 0
      %858 = vmatprep.subr.bf16.mxu0 0
      %859 = vmatpush1.bf16.msra.mxu0 %v853
      %860 = vmatprep.subr.bf16.mxu0 0
      %861 = vmatpush1.bf16.msra.mxu0 0
      %862 = vmatprep.subr.bf16.mxu0 0
      %863 = vmatpush1.bf16.msra.mxu0 0
      %864 = vmatprep.subr.bf16.mxu0 0
      %865 = vmatpush1.bf16.msra.mxu0 0
      %866 = vmatprep.subr.bf16.mxu0 0
      %867 = vmatpush1.bf16.msra.mxu0 0
      %868 = vmatprep.subr.bf16.mxu0 0
      %869 = vmatpush1.bf16.msra.mxu0 0
      %870 = vmatprep.subr.bf16.mxu0 0
      %871 = vmatpush1.bf16.msra.mxu0 0
      %872 = vmatprep.subr.bf16.mxu0 0
      %873 = vmatpush1.bf16.msra.mxu0 0
      %874 = vmatprep.subr.bf16.mxu0 0
      %875 = vmatpush1.bf16.msra.mxu0 0
      %876 = vmatprep.subr.bf16.mxu0 0
      %877 = vmatpush1.bf16.msra.mxu0 0
      %878 = vmatprep.subr.bf16.mxu0 0
      %879 = vmatpush1.bf16.msra.mxu0 0
      %880 = vmatprep.subr.bf16.mxu0 0
      %881 = vmatpush1.bf16.msra.mxu0 0
      %882 = vmatprep.subr.bf16.mxu0 0
      %883 = vmatpush1.bf16.msra.mxu0 0
      %884 = vmatprep.subr.bf16.mxu0 0
      %885 = vmatpush1.bf16.msra.mxu0 0
      %886 = vmatprep.subr.bf16.mxu0 0
      %887 = vmatpush1.bf16.msra.mxu0 0
      %888 = vmatprep.subr.bf16.mxu0 0
      %889 = vmatpush1.bf16.msra.mxu0 0
      %890 = vmatprep.mubr.bf16.mxu0 0
      %891 = vmatmul.mubr.bf16.gmra.mrb[0].mxu0 %v856
      %v892 = vpop.f32.mrb[0].mxu0
      %v893 = vadd.f32 0.0, %v892
      %v894 = vpop.f32.mrb[0].mxu0
      %v895 = vpop.f32.mrb[0].mxu0
      %v896 = vpop.f32.mrb[0].mxu0
      %897 = vdwg.mxu0
      %v898 = vpack.c.bf16 %v893, %v893
      %v903 = vunpack.c.l.b16 %v446
      %v904 = vunpack.c.l.b16 %v447
      %v905 = vunpack.c.l.b16 %v448
      %v906 = vunpack.c.l.b16 %v449
      %v907 = vpack.c.b16 %v904, %v903
      %v908 = vpack.c.b16 %v906, %v905
      %v912 = vsel %vm459, %v898, 0
      %914 = vmatprep.subr.bf16.mxu0 0
      %915 = vmatpush1.bf16.msra.mxu0 %v907
      %916 = vmatprep.subr.bf16.mxu0 0
      %917 = vmatpush1.bf16.msra.mxu0 %v908
      %918 = vmatprep.subr.bf16.mxu0 0
      %919 = vmatpush1.bf16.msra.mxu0 0
      %920 = vmatprep.subr.bf16.mxu0 0
      %921 = vmatpush1.bf16.msra.mxu0 0
      %922 = vmatprep.subr.bf16.mxu0 0
      %923 = vmatpush1.bf16.msra.mxu0 0
      %924 = vmatprep.subr.bf16.mxu0 0
      %925 = vmatpush1.bf16.msra.mxu0 0
      %926 = vmatprep.subr.bf16.mxu0 0
      %927 = vmatpush1.bf16.msra.mxu0 0
      %928 = vmatprep.subr.bf16.mxu0 0
      %929 = vmatpush1.bf16.msra.mxu0 0
      %930 = vmatprep.subr.bf16.mxu0 0
      %931 = vmatpush1.bf16.msra.mxu0 0
      %932 = vmatprep.subr.bf16.mxu0 0
      %933 = vmatpush1.bf16.msra.mxu0 0
      %934 = vmatprep.subr.bf16.mxu0 0
      %935 = vmatpush1.bf16.msra.mxu0 0
      %936 = vmatprep.subr.bf16.mxu0 0
      %937 = vmatpush1.bf16.msra.mxu0 0
      %938 = vmatprep.subr.bf16.mxu0 0
      %939 = vmatpush1.bf16.msra.mxu0 0
      %940 = vmatprep.subr.bf16.mxu0 0
      %941 = vmatpush1.bf16.msra.mxu0 0
      %942 = vmatprep.subr.bf16.mxu0 0
      %943 = vmatpush1.bf16.msra.mxu0 0
      %944 = vmatprep.subr.bf16.mxu0 0
      %945 = vmatpush1.bf16.msra.mxu0 0
      %946 = vmatprep.mubr.bf16.mxu0 0
      %947 = vmatmul.mubr.bf16.gmra.mrb[0].mxu0 %v912
      %v948 = vpop.f32.mrb[0].mxu0
      %v949 = vadd.f32 0.0, %v948
      %v950 = vpop.f32.mrb[0].mxu0
      %v951 = vpop.f32.mrb[0].mxu0
      %v952 = vpop.f32.mrb[0].mxu0
      %953 = vdwg.mxu0
      %v954 = vadd.f32 %v784, %v949
      %955 = vrot.lane.b32.xlu0 %v435, 32
      %v956 = vpop.permute.xlu0 %955
      %957 = vrot.lane.b32.xlu0 %v458, 32
      %v958 = vpop.permute.xlu0 %957
      %v960 = vsel %vm459, %v956, 0
      %v963 = vsel %vm459, %v958, 0
      %965 = vmatprep.subr.bf16.mxu0 0
      %966 = vmatpush1.bf16.xpose.msra.mxu0 %v963
      %967 = vmatprep.subr.bf16.mxu0 0
      %968 = vmatpush1.bf16.xpose.msra.mxu0 0
      %969 = vmatprep.subr.bf16.mxu0 0
      %970 = vmatpush1.bf16.xpose.msra.mxu0 0
      %971 = vmatprep.subr.bf16.mxu0 0
      %972 = vmatpush1.bf16.xpose.msra.mxu0 0
      %973 = vmatprep.subr.bf16.mxu0 0
      %974 = vmatpush1.bf16.xpose.msra.mxu0 0
      %975 = vmatprep.subr.bf16.mxu0 0
      %976 = vmatpush1.bf16.xpose.msra.mxu0 0
      %977 = vmatprep.subr.bf16.mxu0 0
      %978 = vmatpush1.bf16.xpose.msra.mxu0 0
      %979 = vmatprep.subr.bf16.mxu0 0
      %980 = vmatpush1.bf16.xpose.msra.mxu0 0
      %981 = vmatprep.subr.bf16.mxu0 0
      %982 = vmatpush1.bf16.xpose.msra.mxu0 0
      %983 = vmatprep.subr.bf16.mxu0 0
      %984 = vmatpush1.bf16.xpose.msra.mxu0 0
      %985 = vmatprep.subr.bf16.mxu0 0
      %986 = vmatpush1.bf16.xpose.msra.mxu0 0
      %987 = vmatprep.subr.bf16.mxu0 0
      %988 = vmatpush1.bf16.xpose.msra.mxu0 0
      %989 = vmatprep.subr.bf16.mxu0 0
      %990 = vmatpush1.bf16.xpose.msra.mxu0 0
      %991 = vmatprep.subr.bf16.mxu0 0
      %992 = vmatpush1.bf16.xpose.msra.mxu0 0
      %993 = vmatprep.subr.bf16.mxu0 0
      %994 = vmatpush1.bf16.xpose.msra.mxu0 0
      %995 = vmatprep.subr.bf16.mxu0 0
      %996 = vmatpush1.bf16.xpose.msra.mxu0 0
      %997 = vmatprep.mubr.bf16.mxu0 0
      %998 = vmatmul.mubr.bf16.gmra.mrb[0].mxu0 %v960
      %v999 = vpop.f32.mrb[0].mxu0
      %v1000 = vadd.f32 0.0, %v999
      %v1001 = vpop.f32.mrb[0].mxu0
      %v1002 = vpop.f32.mrb[0].mxu0
      %v1003 = vpop.f32.mrb[0].mxu0
      %1004 = vdwg.mxu0
      %v1005 = vmul.f32 %v1000, 0.17677669
      %v1006 = vsel %vm507, %v1005, -inf
      %1007 = vmax.xlane.f32.xlu0 %v1006
      %v1008 = vpop.xlane.xlu0 %1007
      %v1009 = vsub.f32 %v1005, %v1008
      %v1010 = vmul.f32 %v1009, 1.442695
      %v1011 = vpow.pop %v1010
      %v1012 = vsel %vm507, %v1011, 0.0
      %1013 = vadd.xlane.f32.xlu0 %v1012
      %v1014 = vpop.xlane.xlu0 %1013
      %v1015 = vrcp.pop %v1014
      %v1016 = vmul.f32 %v1011, %v1015
      %v1017 = vpack.c.bf16 %v1016, %v1016
      %1018 = vrot.lane.b32.xlu0 %v522, 32
      %v1019 = vpop.permute.xlu0 %1018
      %v1022 = vsel %vm507, %v1017, 0
      %1024 = vmatprep.subr.bf16.mxu0 0
      %1025 = vmatpush1.bf16.msra.mxu0 %v1019
      %1026 = vmatprep.subr.bf16.mxu0 0
      %1027 = vmatpush1.bf16.msra.mxu0 0
      %1028 = vmatprep.subr.bf16.mxu0 0
      %1029 = vmatpush1.bf16.msra.mxu0 0
      %1030 = vmatprep.subr.bf16.mxu0 0
      %1031 = vmatpush1.bf16.msra.mxu0 0
      %1032 = vmatprep.subr.bf16.mxu0 0
      %1033 = vmatpush1.bf16.msra.mxu0 0
      %1034 = vmatprep.subr.bf16.mxu0 0
      %1035 = vmatpush1.bf16.msra.mxu0 0
      %1036 = vmatprep.subr.bf16.mxu0 0
      %1037 = vmatpush1.bf16.msra.mxu0 0
      %1038 = vmatprep.subr.bf16.mxu0 0
      %1039 = vmatpush1.bf16.msra.mxu0 0
      %1040 = vmatprep.subr.bf16.mxu0 0
      %1041 = vmatpush1.bf16.msra.mxu0 0
      %1042 = vmatprep.subr.bf16.mxu0 0
      %1043 = vmatpush1.bf16.msra.mxu0 0
      %1044 = vmatprep.subr.bf16.mxu0 0
      %1045 = vmatpush1.bf16.msra.mxu0 0
      %1046 = vmatprep.subr.bf16.mxu0 0
      %1047 = vmatpush1.bf16.msra.mxu0 0
      %1048 = vmatprep.subr.bf16.mxu0 0
      %1049 = vmatpush1.bf16.msra.mxu0 0
      %1050 = vmatprep.subr.bf16.mxu0 0
      %1051 = vmatpush1.bf16.msra.mxu0 0
      %1052 = vmatprep.subr.bf16.mxu0 0
      %1053 = vmatpush1.bf16.msra.mxu0 0
      %1054 = vmatprep.subr.bf16.mxu0 0
      %1055 = vmatpush1.bf16.msra.mxu0 0
      %1056 = vmatprep.mubr.bf16.mxu0 0
      %1057 = vmatmul.mubr.bf16.gmra.mrb[0].mxu0 %v1022
      %v1058 = vpop.f32.mrb[0].mxu0
      %v1059 = vadd.f32 0.0, %v1058
      %v1060 = vpop.f32.mrb[0].mxu0
      %v1061 = vpop.f32.mrb[0].mxu0
      %v1062 = vpop.f32.mrb[0].mxu0
      %1063 = vdwg.mxu0
      %v1064 = vpack.c.bf16 %v1059, %v1059
      %v1069 = vunpack.c.l.b16 %v450
      %v1070 = vunpack.c.l.b16 %v451
      %v1071 = vunpack.c.l.b16 %v452
      %v1072 = vunpack.c.l.b16 %v453
      %v1073 = vpack.c.b16 %v1070, %v1069
      %v1074 = vpack.c.b16 %v1072, %v1071
      %v1078 = vsel %vm459, %v1064, 0
      %1080 = vmatprep.subr.bf16.mxu0 0
      %1081 = vmatpush1.bf16.msra.mxu0 %v1073
      %1082 = vmatprep.subr.bf16.mxu0 0
      %1083 = vmatpush1.bf16.msra.mxu0 %v1074
      %1084 = vmatprep.subr.bf16.mxu0 0
      %1085 = vmatpush1.bf16.msra.mxu0 0
      %1086 = vmatprep.subr.bf16.mxu0 0
      %1087 = vmatpush1.bf16.msra.mxu0 0
      %1088 = vmatprep.subr.bf16.mxu0 0
      %1089 = vmatpush1.bf16.msra.mxu0 0
      %1090 = vmatprep.subr.bf16.mxu0 0
      %1091 = vmatpush1.bf16.msra.mxu0 0
      %1092 = vmatprep.subr.bf16.mxu0 0
      %1093 = vmatpush1.bf16.msra.mxu0 0
      %1094 = vmatprep.subr.bf16.mxu0 0
      %1095 = vmatpush1.bf16.msra.mxu0 0
      %1096 = vmatprep.subr.bf16.mxu0 0
      %1097 = vmatpush1.bf16.msra.mxu0 0
      %1098 = vmatprep.subr.bf16.mxu0 0
      %1099 = vmatpush1.bf16.msra.mxu0 0
      %1100 = vmatprep.subr.bf16.mxu0 0
      %1101 = vmatpush1.bf16.msra.mxu0 0
      %1102 = vmatprep.subr.bf16.mxu0 0
      %1103 = vmatpush1.bf16.msra.mxu0 0
      %1104 = vmatprep.subr.bf16.mxu0 0
      %1105 = vmatpush1.bf16.msra.mxu0 0
      %1106 = vmatprep.subr.bf16.mxu0 0
      %1107 = vmatpush1.bf16.msra.mxu0 0
      %1108 = vmatprep.subr.bf16.mxu0 0
      %1109 = vmatpush1.bf16.msra.mxu0 0
      %1110 = vmatprep.subr.bf16.mxu0 0
      %1111 = vmatpush1.bf16.msra.mxu0 0
      %1112 = vmatprep.mubr.bf16.mxu0 0
      %1113 = vmatmul.mubr.bf16.gmra.mrb[0].mxu0 %v1078
      %v1114 = vpop.f32.mrb[0].mxu0
      %v1115 = vadd.f32 0.0, %v1114
      %v1116 = vpop.f32.mrb[0].mxu0
      %v1117 = vpop.f32.mrb[0].mxu0
      %v1118 = vpop.f32.mrb[0].mxu0
      %1119 = vdwg.mxu0
      %v1120 = vadd.f32 %v954, %v1115
      %v1121 = vld [vmem:[%s5] sm:$0x1]
      %v1123 = vlaneseq
      %v1124 = vshrl.u32 %v1123, 7
      %v1125 = vsub.s32 0, %v1124
      %v1126 = vrot.slane %v1121, %v1125
      %v1128 = vadd.f32 %v1120, %v1126
      %v1129 = vadd.f32 %v322, %v1128
      %v1130 = vld [vmem:[%s6] sm:$0x1]
      %v1131 = vld [vmem:[%s7] sm:$0x1]
      %1132 = vadd.xlane.f32.xlu0 %v1129
      %v1133 = vpop.xlane.xlu0 %1132
      %v1134 = vrcp.pop 128.0
      %v1135 = vmul.f32 %v1133, %v1134
      %v1136 = vsub.f32 %v1129, %v1135
      %v1137 = vmul.f32 %v1136, %v1136
      %1138 = vadd.xlane.f32.xlu0 %v1137
      %v1139 = vpop.xlane.xlu0 %1138
      %v1140 = vmul.f32 %v1139, %v1134
      %v1141 = vadd.f32 %v1140, 1e-05
      %v1142 = vrsqrt.pop %v1141
      %v1143 = vmul.f32 %v1136, %v1142
      %v1145 = vlaneseq
      %v1146 = vshrl.u32 %v1145, 7
      %v1147 = vsub.s32 0, %v1146
      %v1148 = vrot.slane %v1130, %v1147
      %v1150 = vmul.f32 %v1143, %v1148
      %v1152 = vlaneseq
      %v1153 = vshrl.u32 %v1152, 7
      %v1154 = vsub.s32 0, %v1153
      %v1155 = vrot.slane %v1131, %v1154
      %v1157 = vadd.f32 %v1150, %v1155
      %1158 = vst [vmem:[%s320] sm:$0xff] %v1157
      %p1159 = scmp.lt.s32.totalorder %s19, 1
      %s1160 = scalar_select %p1159, %s19, 1
      %s1161 = smul.addr %s1160, 8
      %s1162 = scalar_lea.vmem %s8, %s1161
      // Predicated region
      $region53: #{_lambda_.9} parent=51 // pred_check
        %p1163 = pneg %p215
      $region54: #{_lambda_.9} parent=51 // pred_check_branch
        %1165 = sbr.rel (%p1163) target = $region56
      $region55: #{_lambda_.9} parent=51 // pred_region
        _
      $region56: #{_lambda_.9} parent=51 // pred_fallthru
        _
    $region52: #{_lambda_.9} parent=5 // pred_fallthru
      _
    %p1166 = scmp.le.s32.totalorder 2, %s14
    // Predicated region
    $region57: #{_lambda_.9} parent=5 // pred_check
      %p1167 = pneg %p1166
    $region58: #{_lambda_.9} parent=5 // pred_check_branch
      %1169 = sbr.rel (%p1167) target = $region60
    $region59: #{_lambda_.9} parent=5 // pred_region
      %s1170 = ssub.s32 %s14, 2
      // Predicated region
      $region61: #{_lambda_.9} parent=59 // pred_check
        %p1171 = pneg %p221
      $region62: #{_lambda_.9} parent=59 // pred_check_branch
        %1173 = sbr.rel (%p1171) target = $region64
      $region63: #{_lambda_.9} parent=59 // pred_region
        %p1174 = scmp.lt.s32.totalorder %s20, 1
        %s1175 = scalar_select %p1174, %s20, 1
        %s1176 = smul.addr %s1175, 8
        %s1177 = scalar_lea.vmem %s8, %s1176
      $region64: #{_lambda_.9} parent=59 // pred_fallthru
        _
    $region60: #{_lambda_.9} parent=5 // pred_fallthru
      _
  $region6: #{_lambda_.9} parent=0 // loop_footer
    %s18 = sadd.s32 1, %s14
  $region7: #{_lambda_.9} parent=0 // loop_footer_branch
    %13 = sbr.rel target = $region3
  $region8: #{_lambda_.9} parent=0 // loop_exit
    _

// kernel: _lambda_.8
$region0: #{_lambda_.8}
  #allocation0 [shape = 'u32[]', space=smem, size = 0x4, offset = 0x4, fixed_abs, tag = 'smem constant byte address 0x4 - core index']
  #allocation1 [shape = 'u32[144,128]{1,0:T(1,128)}', space=vmem, size = 0x12000, scoped, tag = 'internal scratch']
  %s0 = inlined_call_operand.vmem [shape: f32[2,8,128], index: 0, kind: input, shape index: {}]
  %s1 = inlined_call_operand.vmem [shape: bf16[128,384], index: 1, kind: input, shape index: {}]
  %s2 = inlined_call_operand.vmem [shape: f32[1,384], index: 2, kind: input, shape index: {}]
  %s3 = inlined_call_operand.vmem [shape: bf16[128,128], index: 3, kind: input, shape index: {}]
  %s4 = inlined_call_operand.vmem [shape: f32[1,128], index: 4, kind: input, shape index: {}, may-alias: {4,6}]
  %s5 = inlined_call_operand.vmem [shape: f32[1,128], index: 5, kind: input, shape index: {}]
  %s6 = inlined_call_operand.vmem [shape: f32[1,128], index: 6, kind: input, shape index: {}, may-alias: {4,6}]
  %s7 = inlined_call_operand.vmem [shape: f32[2,8,128], index: 7, kind: output, shape index: {}]
  %s8 = sld [smem:[#allocation0]]
  $region61: #{_lambda_.8} parent=0
    _
  %s10 = ssub.s32 1, %s8
  %s11 = scalar_select 0, %s10, %s8
  loop: start=0, step=1, limit=4
  $region2: #{_lambda_.8} parent=0 // loop_pre_header
    _
  $region3: #{_lambda_.8} parent=0 // loop_header
    %s13 = sphi 0, %s17
    %p14 = scmp.ge.s32.totalorder %s13, 4
    %s23 = sphi 0, %s25
    %s26 = sphi 0, %s23
    %s27 = sphi 0, %s26
    %s43 = sphi 0, %s27
    %s47 = sphi 0, %s47
    %s49 = sphi 0, %s47
    %s50 = sphi 0, %s49
    %s64 = sphi 0, %s50
    %s68 = sphi 0, %s68
    %s70 = sphi 0, %s68
    %s71 = sphi 0, %s70
    %s85 = sphi 0, %s71
    %s89 = sphi 0, %s89
    %s91 = sphi 0, %s89
    %s92 = sphi 0, %s91
    %s106 = sphi 0, %s92
    %s110 = sphi 0, %s110
    %s112 = sphi 0, %s110
    %s113 = sphi 0, %s112
    %s127 = sphi 0, %s113
    %s131 = sphi 0, %s131
    %s133 = sphi 0, %s131
    %s134 = sphi 0, %s133
    %s148 = sphi 0, %s134
    %s152 = sphi 0, %s152
    %s154 = sphi 0, %s152
    %s155 = sphi 0, %s154
    %s169 = sphi 0, %s155
    %s175 = sphi 0, %s177
    %s178 = sphi 0, %s175
    %s179 = sphi 0, %s178
    %s195 = sphi 0, %s179
  $region4: #{_lambda_.8} parent=0 // loop_header_branch
    %16 = sbr.rel (%p14) target = $region8
  $region5: #{_lambda_.8} parent=0 // loop_body
    %s18 = ssub.s32 %s13, 1
    %s19 = ssub.s32 %s13, 2
    %s20 = sadd.s32 %s13, 1
    %s21 = ssub.s32 %s13, %s20
    %p22 = scmp.eq.s32.totalorder %s21, 0
    %s24 = sadd.s32 %s23, 1
    %s25 = scalar_select %p22, %s23, %s24
    %p28 = pneg %p22
    %p29 = scmp.eq.s32.totalorder %s13, 1
    %p30 = por %p28, %p29
    %p31 = scmp.ne.s32.totalorder %s23, %s26
    %p32 = scmp.eq.s32.totalorder %s13, 0
    %p33 = por %p31, %p32
    %p34 = scmp.ne.s32.totalorder %s23, %s26
    %p35 = scmp.eq.s32.totalorder %s18, 1
    %p36 = por %p34, %p35
    %p37 = scmp.ne.s32.totalorder %s26, %s27
    %p38 = scmp.eq.s32.totalorder %s18, 0
    %p39 = por %p37, %p38
    %p40 = scmp.ne.s32.totalorder %s26, %s27
    %p41 = scmp.eq.s32.totalorder %s19, 1
    %p42 = por %p40, %p41
    %p44 = scmp.ne.s32.totalorder %s27, %s43
    %p45 = scmp.eq.s32.totalorder %s19, 0
    %p46 = por %p44, %p45
    %s48 = sadd.s32 %s47, 1
    %p51 = scmp.eq.s32.totalorder %s13, 1
    %p52 = scmp.ne.s32.totalorder %s47, %s49
    %p53 = scmp.eq.s32.totalorder %s13, 0
    %p54 = por %p52, %p53
    %p55 = scmp.ne.s32.totalorder %s47, %s49
    %p56 = scmp.eq.s32.totalorder %s18, 1
    %p57 = por %p55, %p56
    %p58 = scmp.ne.s32.totalorder %s49, %s50
    %p59 = scmp.eq.s32.totalorder %s18, 0
    %p60 = por %p58, %p59
    %p61 = scmp.ne.s32.totalorder %s49, %s50
    %p62 = scmp.eq.s32.totalorder %s19, 1
    %p63 = por %p61, %p62
    %p65 = scmp.ne.s32.totalorder %s50, %s64
    %p66 = scmp.eq.s32.totalorder %s19, 0
    %p67 = por %p65, %p66
    %s69 = sadd.s32 %s68, 1
    %p72 = scmp.eq.s32.totalorder %s13, 1
    %p73 = scmp.ne.s32.totalorder %s68, %s70
    %p74 = scmp.eq.s32.totalorder %s13, 0
    %p75 = por %p73, %p74
    %p76 = scmp.ne.s32.totalorder %s68, %s70
    %p77 = scmp.eq.s32.totalorder %s18, 1
    %p78 = por %p76, %p77
    %p79 = scmp.ne.s32.totalorder %s70, %s71
    %p80 = scmp.eq.s32.totalorder %s18, 0
    %p81 = por %p79, %p80
    %p82 = scmp.ne.s32.totalorder %s70, %s71
    %p83 = scmp.eq.s32.totalorder %s19, 1
    %p84 = por %p82, %p83
    %p86 = scmp.ne.s32.totalorder %s71, %s85
    %p87 = scmp.eq.s32.totalorder %s19, 0
    %p88 = por %p86, %p87
    %s90 = sadd.s32 %s89, 1
    %p93 = scmp.eq.s32.totalorder %s13, 1
    %p94 = scmp.ne.s32.totalorder %s89, %s91
    %p95 = scmp.eq.s32.totalorder %s13, 0
    %p96 = por %p94, %p95
    %p97 = scmp.ne.s32.totalorder %s89, %s91
    %p98 = scmp.eq.s32.totalorder %s18, 1
    %p99 = por %p97, %p98
    %p100 = scmp.ne.s32.totalorder %s91, %s92
    %p101 = scmp.eq.s32.totalorder %s18, 0
    %p102 = por %p100, %p101
    %p103 = scmp.ne.s32.totalorder %s91, %s92
    %p104 = scmp.eq.s32.totalorder %s19, 1
    %p105 = por %p103, %p104
    %p107 = scmp.ne.s32.totalorder %s92, %s106
    %p108 = scmp.eq.s32.totalorder %s19, 0
    %p109 = por %p107, %p108
    %s111 = sadd.s32 %s110, 1
    %p114 = scmp.eq.s32.totalorder %s13, 1
    %p115 = scmp.ne.s32.totalorder %s110, %s112
    %p116 = scmp.eq.s32.totalorder %s13, 0
    %p117 = por %p115, %p116
    %p118 = scmp.ne.s32.totalorder %s110, %s112
    %p119 = scmp.eq.s32.totalorder %s18, 1
    %p120 = por %p118, %p119
    %p121 = scmp.ne.s32.totalorder %s112, %s113
    %p122 = scmp.eq.s32.totalorder %s18, 0
    %p123 = por %p121, %p122
    %p124 = scmp.ne.s32.totalorder %s112, %s113
    %p125 = scmp.eq.s32.totalorder %s19, 1
    %p126 = por %p124, %p125
    %p128 = scmp.ne.s32.totalorder %s113, %s127
    %p129 = scmp.eq.s32.totalorder %s19, 0
    %p130 = por %p128, %p129
    %s132 = sadd.s32 %s131, 1
    %p135 = scmp.eq.s32.totalorder %s13, 1
    %p136 = scmp.ne.s32.totalorder %s131, %s133
    %p137 = scmp.eq.s32.totalorder %s13, 0
    %p138 = por %p136, %p137
    %p139 = scmp.ne.s32.totalorder %s131, %s133
    %p140 = scmp.eq.s32.totalorder %s18, 1
    %p141 = por %p139, %p140
    %p142 = scmp.ne.s32.totalorder %s133, %s134
    %p143 = scmp.eq.s32.totalorder %s18, 0
    %p144 = por %p142, %p143
    %p145 = scmp.ne.s32.totalorder %s133, %s134
    %p146 = scmp.eq.s32.totalorder %s19, 1
    %p147 = por %p145, %p146
    %p149 = scmp.ne.s32.totalorder %s134, %s148
    %p150 = scmp.eq.s32.totalorder %s19, 0
    %p151 = por %p149, %p150
    %s153 = sadd.s32 %s152, 1
    %p156 = scmp.eq.s32.totalorder %s13, 1
    %p157 = scmp.ne.s32.totalorder %s152, %s154
    %p158 = scmp.eq.s32.totalorder %s13, 0
    %p159 = por %p157, %p158
    %p160 = scmp.ne.s32.totalorder %s152, %s154
    %p161 = scmp.eq.s32.totalorder %s18, 1
    %p162 = por %p160, %p161
    %p163 = scmp.ne.s32.totalorder %s154, %s155
    %p164 = scmp.eq.s32.totalorder %s18, 0
    %p165 = por %p163, %p164
    %p166 = scmp.ne.s32.totalorder %s154, %s155
    %p167 = scmp.eq.s32.totalorder %s19, 1
    %p168 = por %p166, %p167
    %p170 = scmp.ne.s32.totalorder %s155, %s169
    %p171 = scmp.eq.s32.totalorder %s19, 0
    %p172 = por %p170, %p171
    %s173 = ssub.s32 %s13, %s20
    %p174 = scmp.eq.s32.totalorder %s173, 0
    %s176 = sadd.s32 %s175, 1
    %s177 = scalar_select %p174, %s175, %s176
    %p180 = pneg %p174
    %p181 = scmp.eq.s32.totalorder %s13, 1
    %p182 = por %p180, %p181
    %p183 = scmp.ne.s32.totalorder %s175, %s178
    %p184 = scmp.eq.s32.totalorder %s13, 0
    %p185 = por %p183, %p184
    %p186 = scmp.ne.s32.totalorder %s175, %s178
    %p187 = scmp.eq.s32.totalorder %s18, 1
    %p188 = por %p186, %p187
    %p189 = scmp.ne.s32.totalorder %s178, %s179
    %p190 = scmp.eq.s32.totalorder %s18, 0
    %p191 = por %p189, %p190
    %p192 = scmp.ne.s32.totalorder %s178, %s179
    %p193 = scmp.eq.s32.totalorder %s19, 1
    %p194 = por %p192, %p193
    %p196 = scmp.ne.s32.totalorder %s179, %s195
    %p197 = scmp.eq.s32.totalorder %s19, 0
    %p198 = por %p196, %p197
    %p199 = scmp.le.s32.totalorder 1, %s13
    %p200 = scmp.lt.s32.totalorder %s13, 3
    %p201 = pnand %p199, %p200
    %p202 = pneg %p201
    // Predicated region
    $region9: #{_lambda_.8} parent=5 // pred_check
      _
    $region10: #{_lambda_.8} parent=5 // pred_check_branch
      %204 = sbr.rel (%p201) target = $region12
    $region11: #{_lambda_.8} parent=5 // pred_region
      %s205 = ssub.s32 %s13, 1
      // Predicated region
      $region13: #{_lambda_.8} parent=11 // pred_check
        %p206 = pneg %p60
      $region14: #{_lambda_.8} parent=11 // pred_check_branch
        %208 = sbr.rel (%p206) target = $region16
      $region15: #{_lambda_.8} parent=11 // pred_region
        _
      $region16: #{_lambda_.8} parent=11 // pred_fallthru
        _
      // Predicated region
      $region17: #{_lambda_.8} parent=11 // pred_check
        %p209 = pneg %p81
      $region18: #{_lambda_.8} parent=11 // pred_check_branch
        %211 = sbr.rel (%p209) target = $region20
      $region19: #{_lambda_.8} parent=11 // pred_region
        _
      $region20: #{_lambda_.8} parent=11 // pred_fallthru
        _
      // Predicated region
      $region21: #{_lambda_.8} parent=11 // pred_check
        %p212 = pneg %p102
      $region22: #{_lambda_.8} parent=11 // pred_check_branch
        %214 = sbr.rel (%p212) target = $region24
      $region23: #{_lambda_.8} parent=11 // pred_region
        _
      $region24: #{_lambda_.8} parent=11 // pred_fallthru
        _
      // Predicated region
      $region25: #{_lambda_.8} parent=11 // pred_check
        %p215 = pneg %p123
      $region26: #{_lambda_.8} parent=11 // pred_check_branch
        %217 = sbr.rel (%p215) target = $region28
      $region27: #{_lambda_.8} parent=11 // pred_region
        _
      $region28: #{_lambda_.8} parent=11 // pred_fallthru
        _
      // Predicated region
      $region29: #{_lambda_.8} parent=11 // pred_check
        %p218 = pneg %p144
      $region30: #{_lambda_.8} parent=11 // pred_check_branch
        %220 = sbr.rel (%p218) target = $region32
      $region31: #{_lambda_.8} parent=11 // pred_region
        _
      $region32: #{_lambda_.8} parent=11 // pred_fallthru
        _
      // Predicated region
      $region33: #{_lambda_.8} parent=11 // pred_check
        %p221 = pneg %p165
      $region34: #{_lambda_.8} parent=11 // pred_check_branch
        %223 = sbr.rel (%p221) target = $region36
      $region35: #{_lambda_.8} parent=11 // pred_region
        _
      $region36: #{_lambda_.8} parent=11 // pred_fallthru
        _
    $region12: #{_lambda_.8} parent=5 // pred_fallthru
      _
    %p224 = scmp.lt.s32.totalorder %s13, 2
    // Predicated region
    $region37: #{_lambda_.8} parent=5 // pred_check
      %p225 = pneg %p224
    $region38: #{_lambda_.8} parent=5 // pred_check_branch
      %227 = sbr.rel (%p225) target = $region40
    $region39: #{_lambda_.8} parent=5 // pred_region
      // Predicated region
      $region41: #{_lambda_.8} parent=39 // pred_check
        %p228 = pneg %p33
      $region42: #{_lambda_.8} parent=39 // pred_check_branch
        %230 = sbr.rel (%p228) target = $region44
      $region43: #{_lambda_.8} parent=39 // pred_region
        %p231 = scmp.lt.s32.totalorder %s13, 1
        %s232 = scalar_select %p231, %s13, 1
        %s233 = smul.addr %s232, 8
        %s234 = scalar_lea.vmem %s0, %s233
      $region44: #{_lambda_.8} parent=39 // pred_fallthru
        _
    $region40: #{_lambda_.8} parent=5 // pred_fallthru
      _
    %p235 = scmp.le.s32.totalorder 1, %s13
    %p236 = scmp.lt.s32.totalorder %s13, 3
    %p237 = pnand %p235, %p236
    %p238 = pneg %p237
    // Predicated region
    $region45: #{_lambda_.8} parent=5 // pred_check
      _
    $region46: #{_lambda_.8} parent=5 // pred_check_branch
      %240 = sbr.rel (%p237) target = $region48
    $region47: #{_lambda_.8} parent=5 // pred_region
      %s241 = ssub.s32 %s13, 1
      %p242 = scmp.lt.s32.totalorder %s18, 1
      %s243 = scalar_select %p242, %s18, 1
      %s244 = smul.addr %s243, 8
      %s245 = scalar_lea.vmem %s0, %s244
      %p246 = pneg %p39
      %p247 = pneg %p36
      %p248 = pneg %p60
      %p249 = pneg %p57
      %p250 = pneg %p81
      %p251 = pneg %p78
      %p252 = pneg %p102
      %p253 = pneg %p99
      %p254 = pneg %p123
      %p255 = pneg %p120
      %p256 = pneg %p144
      %p257 = pneg %p141
      %p258 = pneg %p165
      %p259 = pneg %p162
      %p260 = pneg %p191
      %p261 = pneg %p188
      %p262 = scmp.lt.s32.totalorder %s18, 1
      %s263 = scalar_select %p262, %s18, 1
      %s264 = smul.addr %s263, 8
      %s265 = scalar_lea.vmem %s7, %s264
      %p266 = scmp.lt.s32.totalorder %s18, 1
      %s267 = scalar_select %p266, %s18, 1
      %s268 = smul.addr %s267, 8
      %s269 = scalar_lea.vmem %s0, %s268
      %p270 = scmp.lt.s32.totalorder %s18, 1
      %s271 = scalar_select %p270, %s18, 1
      %s272 = smul.addr %s271, 8
      %s273 = scalar_lea.vmem %s7, %s272
      %v275 = vld [vmem:[%s269] sm:$0xff]
      %v276 = vpack.c.bf16 %v275, %v275
      %v277 = vld [vmem:[%s1] sm:$0xff]
      %v278 = vld [vmem:[%s1 + $0x8] sm:$0xf]
      %v279 = vld [vmem:[%s1 + $0xc] sm:$0xff]
      %v280 = vld [vmem:[%s1 + $0x14] sm:$0xf]
      %v281 = vld [vmem:[%s1 + $0x18] sm:$0xff]
      %v282 = vld [vmem:[%s1 + $0x20] sm:$0xf]
      %v283 = vld [vmem:[%s1 + $0x24] sm:$0xff]
      %v284 = vld [vmem:[%s1 + $0x2c] sm:$0xf]
      %v285 = vld [vmem:[%s1 + $0x30] sm:$0xff]
      %v286 = vld [vmem:[%s1 + $0x38] sm:$0xf]
      %v287 = vld [vmem:[%s1 + $0x3c] sm:$0xff]
      %v288 = vld [vmem:[%s1 + $0x44] sm:$0xf]
      %v289 = vld [vmem:[%s1 + $0x48] sm:$0xff]
      %v290 = vld [vmem:[%s1 + $0x50] sm:$0xf]
      %v291 = vld [vmem:[%s1 + $0x54] sm:$0xff]
      %v292 = vld [vmem:[%s1 + $0x5c] sm:$0xf]
      %v293 = vld [vmem:[%s1 + $0x60] sm:$0xff]
      %v294 = vld [vmem:[%s1 + $0x68] sm:$0xf]
      %v295 = vld [vmem:[%s1 + $0x6c] sm:$0xff]
      %v296 = vld [vmem:[%s1 + $0x74] sm:$0xf]
      %v297 = vld [vmem:[%s1 + $0x78] sm:$0xff]
      %v298 = vld [vmem:[%s1 + $0x80] sm:$0xf]
      %v299 = vld [vmem:[%s1 + $0x84] sm:$0xff]
      %v300 = vld [vmem:[%s1 + $0x8c] sm:$0xf]
      %v301 = vld [vmem:[%s1 + $0x90] sm:$0xff]
      %v302 = vld [vmem:[%s1 + $0x98] sm:$0xf]
      %v303 = vld [vmem:[%s1 + $0x9c] sm:$0xff]
      %v304 = vld [vmem:[%s1 + $0xa4] sm:$0xf]
      %v305 = vld [vmem:[%s1 + $0xa8] sm:$0xff]
      %v306 = vld [vmem:[%s1 + $0xb0] sm:$0xf]
      %v307 = vld [vmem:[%s1 + $0xb4] sm:$0xff]
      %v308 = vld [vmem:[%s1 + $0xbc] sm:$0xf]
      %v309 = vld [vmem:[%s2] sm:$0x7]
      %v311 = vlaneseq
      %v312 = vshrl.u32 %v311, 7
      %v313 = vsub.s32 0, %v312
      %v314 = vrot.slane %v309, %v313
      %v315 = vlaneseq
      %v316 = vshrl.u32 %v315, 7
      %v317 = vsub.s32 1, %v316
      %v318 = vrot.slane %v309, %v317
      %v319 = vlaneseq
      %v320 = vshrl.u32 %v319, 7
      %v321 = vsub.s32 2, %v320
      %v322 = vrot.slane %v309, %v321
      %v358 = vunpack.c.l.b16 %v277
      %v359 = vunpack.c.h.b16 %v277
      %v360 = vunpack.c.l.b16 %v278
      %v361 = vunpack.c.l.b16 %v279
      %v362 = vunpack.c.h.b16 %v279
      %v363 = vunpack.c.l.b16 %v280
      %v364 = vunpack.c.l.b16 %v281
      %v365 = vunpack.c.h.b16 %v281
      %v366 = vunpack.c.l.b16 %v282
      %v367 = vunpack.c.l.b16 %v283
      %v368 = vunpack.c.h.b16 %v283
      %v369 = vunpack.c.l.b16 %v284
      %v370 = vunpack.c.l.b16 %v285
      %v371 = vunpack.c.h.b16 %v285
      %v372 = vunpack.c.l.b16 %v286
      %v373 = vunpack.c.l.b16 %v287
      %v374 = vunpack.c.h.b16 %v287
      %v375 = vunpack.c.l.b16 %v288
      %v376 = vunpack.c.l.b16 %v289
      %v377 = vunpack.c.h.b16 %v289
      %v378 = vunpack.c.l.b16 %v290
      %v379 = vunpack.c.l.b16 %v291
      %v380 = vunpack.c.h.b16 %v291
      %v381 = vunpack.c.l.b16 %v292
      %v382 = vunpack.c.l.b16 %v293
      %v383 = vunpack.c.h.b16 %v293
      %v384 = vunpack.c.l.b16 %v294
      %v385 = vunpack.c.l.b16 %v295
      %v386 = vunpack.c.h.b16 %v295
      %v387 = vunpack.c.l.b16 %v296
      %v388 = vunpack.c.l.b16 %v297
      %v389 = vunpack.c.h.b16 %v297
      %v390 = vunpack.c.l.b16 %v298
      %v391 = vunpack.c.l.b16 %v299
      %v392 = vunpack.c.h.b16 %v299
      %v393 = vunpack.c.l.b16 %v300
      %v394 = vunpack.c.l.b16 %v301
      %v395 = vunpack.c.h.b16 %v301
      %v396 = vunpack.c.l.b16 %v302
      %v397 = vunpack.c.l.b16 %v303
      %v398 = vunpack.c.h.b16 %v303
      %v399 = vunpack.c.l.b16 %v304
      %v400 = vunpack.c.l.b16 %v305
      %v401 = vunpack.c.h.b16 %v305
      %v402 = vunpack.c.l.b16 %v306
      %v403 = vunpack.c.l.b16 %v307
      %v404 = vunpack.c.h.b16 %v307
      %v405 = vunpack.c.l.b16 %v308
      %v406 = vpack.c.b16 %v361, %v358
      %v407 = vpack.c.b16 %v362, %v359
      %v408 = vpack.c.b16 %v363, %v360
      %v409 = vpack.c.b16 %v367, %v364
      %v410 = vpack.c.b16 %v368, %v365
      %v411 = vpack.c.b16 %v369, %v366
      %v412 = vpack.c.b16 %v373, %v370
      %v413 = vpack.c.b16 %v374, %v371
      %v414 = vpack.c.b16 %v375, %v372
      %v415 = vpack.c.b16 %v379, %v376
      %v416 = vpack.c.b16 %v380, %v377
      %v417 = vpack.c.b16 %v381, %v378
      %v418 = vpack.c.b16 %v385, %v382
      %v419 = vpack.c.b16 %v386, %v383
      %v420 = vpack.c.b16 %v387, %v384
      %v421 = vpack.c.b16 %v391, %v388
      %v422 = vpack.c.b16 %v392, %v389
      %v423 = vpack.c.b16 %v393, %v390
      %v424 = vpack.c.b16 %v397, %v394
      %v425 = vpack.c.b16 %v398, %v395
      %v426 = vpack.c.b16 %v399, %v396
      %v427 = vpack.c.b16 %v403, %v400
      %v428 = vpack.c.b16 %v404, %v401
      %v429 = vpack.c.b16 %v405, %v402
      %454 = vmatprep.subr.bf16.mxu0 %v407
      %455 = vmatpush1.bf16.msra.mxu0 %v406
      %456 = vmatprep.subr.bf16.mxu0 %v410
      %457 = vmatpush1.bf16.msra.mxu0 %v409
      %458 = vmatprep.subr.bf16.mxu0 %v413
      %459 = vmatpush1.bf16.msra.mxu0 %v412
      %460 = vmatprep.subr.bf16.mxu0 %v416
      %461 = vmatpush1.bf16.msra.mxu0 %v415
      %462 = vmatprep.subr.bf16.mxu0 %v419
      %463 = vmatpush1.bf16.msra.mxu0 %v418
      %464 = vmatprep.subr.bf16.mxu0 %v422
      %465 = vmatpush1.bf16.msra.mxu0 %v421
      %466 = vmatprep.subr.bf16.mxu0 %v425
      %467 = vmatpush1.bf16.msra.mxu0 %v424
      %468 = vmatprep.subr.bf16.mxu0 %v428
      %469 = vmatpush1.bf16.msra.mxu0 %v427
      %470 = vmatprep.subr.bf16.mxu0 0
      %471 = vmatpush1.bf16.msra.mxu0 0
      %472 = vmatprep.subr.bf16.mxu0 0
      %473 = vmatpush1.bf16.msra.mxu0 0
      %474 = vmatprep.subr.bf16.mxu0 0
      %475 = vmatpush1.bf16.msra.mxu0 0
      %476 = vmatprep.subr.bf16.mxu0 0
      %477 = vmatpush1.bf16.msra.mxu0 0
      %478 = vmatprep.subr.bf16.mxu0 0
      %479 = vmatpush1.bf16.msra.mxu0 0
      %480 = vmatprep.subr.bf16.mxu0 0
      %481 = vmatpush1.bf16.msra.mxu0 0
      %482 = vmatprep.subr.bf16.mxu0 0
      %483 = vmatpush1.bf16.msra.mxu0 0
      %484 = vmatprep.subr.bf16.mxu0 0
      %485 = vmatpush1.bf16.msra.mxu0 0
      %486 = vmatprep.mubr.bf16.mxu0 0
      %487 = vmatmul.mubr.bf16.gmra.mrb[0].mxu0 %v276
      %v488 = vpop.f32.mrb[0].mxu0
      %v489 = vadd.f32 %v314, %v488
      %v490 = vpop.f32.mrb[0].mxu0
      %v491 = vadd.f32 %v318, %v490
      %v492 = vpop.f32.mrb[0].mxu0
      %v493 = vpop.f32.mrb[0].mxu0
      %494 = vdwg.mxu0
      %495 = vmatprep.subr.bf16.mxu0 0
      %496 = vmatpush1.bf16.msra.mxu0 %v408
      %497 = vmatprep.subr.bf16.mxu0 0
      %498 = vmatpush1.bf16.msra.mxu0 %v411
      %499 = vmatprep.subr.bf16.mxu0 0
      %500 = vmatpush1.bf16.msra.mxu0 %v414
      %501 = vmatprep.subr.bf16.mxu0 0
      %502 = vmatpush1.bf16.msra.mxu0 %v417
      %503 = vmatprep.subr.bf16.mxu0 0
      %504 = vmatpush1.bf16.msra.mxu0 %v420
      %505 = vmatprep.subr.bf16.mxu0 0
      %506 = vmatpush1.bf16.msra.mxu0 %v423
      %507 = vmatprep.subr.bf16.mxu0 0
      %508 = vmatpush1.bf16.msra.mxu0 %v426
      %509 = vmatprep.subr.bf16.mxu0 0
      %510 = vmatpush1.bf16.msra.mxu0 %v429
      %511 = vmatprep.subr.bf16.mxu0 0
      %512 = vmatpush1.bf16.msra.mxu0 0
      %513 = vmatprep.subr.bf16.mxu0 0
      %514 = vmatpush1.bf16.msra.mxu0 0
      %515 = vmatprep.subr.bf16.mxu0 0
      %516 = vmatpush1.bf16.msra.mxu0 0
      %517 = vmatprep.subr.bf16.mxu0 0
      %518 = vmatpush1.bf16.msra.mxu0 0
      %519 = vmatprep.subr.bf16.mxu0 0
      %520 = vmatpush1.bf16.msra.mxu0 0
      %521 = vmatprep.subr.bf16.mxu0 0
      %522 = vmatpush1.bf16.msra.mxu0 0
      %523 = vmatprep.subr.bf16.mxu0 0
      %524 = vmatpush1.bf16.msra.mxu0 0
      %525 = vmatprep.subr.bf16.mxu0 0
      %526 = vmatpush1.bf16.msra.mxu0 0
      %527 = vmatprep.mubr.bf16.mxu0 0
      %528 = vmatmul.mubr.bf16.gmra.mrb[0].mxu0 %v276
      %v529 = vpop.f32.mrb[0].mxu0
      %v530 = vadd.f32 %v322, %v529
      %v531 = vpop.f32.mrb[0].mxu0
      %v532 = vpop.f32.mrb[0].mxu0
      %v533 = vpop.f32.mrb[0].mxu0
      %534 = vdwg.mxu0
      %v535 = vpack.c.bf16 %v489, %v489
      %v536 = vpack.c.bf16 %v491, %v491
      %v537 = vpack.c.bf16 %v530, %v530
      %v538 = vld [vmem:[%s3] sm:$0xf]
      %v539 = vld [vmem:[%s3 + $0x4] sm:$0xf]
      %v540 = vld [vmem:[%s3 + $0x8] sm:$0xf]
      %v541 = vld [vmem:[%s3 + $0xc] sm:$0xf]
      %v542 = vld [vmem:[%s3 + $0x10] sm:$0xf]
      %v543 = vld [vmem:[%s3 + $0x14] sm:$0xf]
      %v544 = vld [vmem:[%s3 + $0x18] sm:$0xf]
      %v545 = vld [vmem:[%s3 + $0x1c] sm:$0xf]
      %v546 = vld [vmem:[%s3 + $0x20] sm:$0xf]
      %v547 = vld [vmem:[%s3 + $0x24] sm:$0xf]
      %v548 = vld [vmem:[%s3 + $0x28] sm:$0xf]
      %v549 = vld [vmem:[%s3 + $0x2c] sm:$0xf]
      %v550 = vld [vmem:[%s3 + $0x30] sm:$0xf]
      %v551 = vld [vmem:[%s3 + $0x34] sm:$0xf]
      %v552 = vld [vmem:[%s3 + $0x38] sm:$0xf]
      %v553 = vld [vmem:[%s3 + $0x3c] sm:$0xf]
      %vm554 = vcmask 261120
      %v556 = vsel %vm554, %v535, 0
      %v559 = vsel %vm554, %v536, 0
      %561 = vmatprep.subr.bf16.mxu0 0
      %562 = vmatpush1.bf16.xpose.msra.mxu0 %v559
      %563 = vmatprep.subr.bf16.mxu0 0
      %564 = vmatpush1.bf16.xpose.msra.mxu0 0
      %565 = vmatprep.subr.bf16.mxu0 0
      %566 = vmatpush1.bf16.xpose.msra.mxu0 0
      %567 = vmatprep.subr.bf16.mxu0 0
      %568 = vmatpush1.bf16.xpose.msra.mxu0 0
      %569 = vmatprep.subr.bf16.mxu0 0
      %570 = vmatpush1.bf16.xpose.msra.mxu0 0
      %571 = vmatprep.subr.bf16.mxu0 0
      %572 = vmatpush1.bf16.xpose.msra.mxu0 0
      %573 = vmatprep.subr.bf16.mxu0 0
      %574 = vmatpush1.bf16.xpose.msra.mxu0 0
      %575 = vmatprep.subr.bf16.mxu0 0
      %576 = vmatpush1.bf16.xpose.msra.mxu0 0
      %577 = vmatprep.subr.bf16.mxu0 0
      %578 = vmatpush1.bf16.xpose.msra.mxu0 0
      %579 = vmatprep.subr.bf16.mxu0 0
      %580 = vmatpush1.bf16.xpose.msra.mxu0 0
      %581 = vmatprep.subr.bf16.mxu0 0
      %582 = vmatpush1.bf16.xpose.msra.mxu0 0
      %583 = vmatprep.subr.bf16.mxu0 0
      %584 = vmatpush1.bf16.xpose.msra.mxu0 0
      %585 = vmatprep.subr.bf16.mxu0 0
      %586 = vmatpush1.bf16.xpose.msra.mxu0 0
      %587 = vmatprep.subr.bf16.mxu0 0
      %588 = vmatpush1.bf16.xpose.msra.mxu0 0
      %589 = vmatprep.subr.bf16.mxu0 0
      %590 = vmatpush1.bf16.xpose.msra.mxu0 0
      %591 = vmatprep.subr.bf16.mxu0 0
      %592 = vmatpush1.bf16.xpose.msra.mxu0 0
      %593 = vmatprep.mubr.bf16.mxu0 0
      %594 = vmatmul.mubr.bf16.gmra.mrb[0].mxu0 %v556
      %v595 = vpop.f32.mrb[0].mxu0
      %v596 = vadd.f32 0.0, %v595
      %v597 = vpop.f32.mrb[0].mxu0
      %v598 = vpop.f32.mrb[0].mxu0
      %v599 = vpop.f32.mrb[0].mxu0
      %600 = vdwg.mxu0
      %v601 = vmul.f32 %v596, 0.17677669
      %vm602 = vcmask 64512
      %v603 = vsel %vm602, %v601, -inf
      %604 = vmax.xlane.f32.xlu0 %v603
      %v605 = vpop.xlane.xlu0 %604
      %v606 = vsub.f32 %v601, %v605
      %v607 = vmul.f32 %v606, 1.442695
      %v608 = vpow.pop %v607
      %v609 = vsel %vm602, %v608, 0.0
      %610 = vadd.xlane.f32.xlu0 %v609
      %v611 = vpop.xlane.xlu0 %610
      %v612 = vrcp.pop %v611
      %v613 = vmul.f32 %v608, %v612
      %v614 = vpack.c.bf16 %v613, %v613
      %v616 = vsel %vm602, %v614, 0
      %vm618 = vcmask 1043456
      %v620 = vsel %vm618, %v537, 0
      %622 = vmatprep.subr.bf16.mxu0 0
      %623 = vmatpush1.bf16.msra.mxu0 %v620
      %624 = vmatprep.subr.bf16.mxu0 0
      %625 = vmatpush1.bf16.msra.mxu0 0
      %626 = vmatprep.subr.bf16.mxu0 0
      %627 = vmatpush1.bf16.msra.mxu0 0
      %628 = vmatprep.subr.bf16.mxu0 0
      %629 = vmatpush1.bf16.msra.mxu0 0
      %630 = vmatprep.subr.bf16.mxu0 0
      %631 = vmatpush1.bf16.msra.mxu0 0
      %632 = vmatprep.subr.bf16.mxu0 0
      %633 = vmatpush1.bf16.msra.mxu0 0
      %634 = vmatprep.subr.bf16.mxu0 0
      %635 = vmatpush1.bf16.msra.mxu0 0
      %636 = vmatprep.subr.bf16.mxu0 0
      %637 = vmatpush1.bf16.msra.mxu0 0
      %638 = vmatprep.subr.bf16.mxu0 0
      %639 = vmatpush1.bf16.msra.mxu0 0
      %640 = vmatprep.subr.bf16.mxu0 0
      %641 = vmatpush1.bf16.msra.mxu0 0
      %642 = vmatprep.subr.bf16.mxu0 0
      %643 = vmatpush1.bf16.msra.mxu0 0
      %644 = vmatprep.subr.bf16.mxu0 0
      %645 = vmatpush1.bf16.msra.mxu0 0
      %646 = vmatprep.subr.bf16.mxu0 0
      %647 = vmatpush1.bf16.msra.mxu0 0
      %648 = vmatprep.subr.bf16.mxu0 0
      %649 = vmatpush1.bf16.msra.mxu0 0
      %650 = vmatprep.subr.bf16.mxu0 0
      %651 = vmatpush1.bf16.msra.mxu0 0
      %652 = vmatprep.subr.bf16.mxu0 0
      %653 = vmatpush1.bf16.msra.mxu0 0
      %654 = vmatprep.mubr.bf16.mxu0 0
      %655 = vmatmul.mubr.bf16.gmra.mrb[0].mxu0 %v616
      %v656 = vpop.f32.mrb[0].mxu0
      %v657 = vadd.f32 0.0, %v656
      %v658 = vpop.f32.mrb[0].mxu0
      %v659 = vpop.f32.mrb[0].mxu0
      %v660 = vpop.f32.mrb[0].mxu0
      %661 = vdwg.mxu0
      %v662 = vpack.c.bf16 %v657, %v657
      %664 = vrot.lane.b32.xlu0 %v535, 96
      %v665 = vpop.permute.xlu0 %664
      %667 = vrot.lane.b32.xlu0 %v536, 96
      %v668 = vpop.permute.xlu0 %667
      %v670 = vsel %vm554, %v665, 0
      %v673 = vsel %vm554, %v668, 0
      %675 = vmatprep.subr.bf16.mxu0 0
      %676 = vmatpush1.bf16.xpose.msra.mxu0 %v673
      %677 = vmatprep.subr.bf16.mxu0 0
      %678 = vmatpush1.bf16.xpose.msra.mxu0 0
      %679 = vmatprep.subr.bf16.mxu0 0
      %680 = vmatpush1.bf16.xpose.msra.mxu0 0
      %681 = vmatprep.subr.bf16.mxu0 0
      %682 = vmatpush1.bf16.xpose.msra.mxu0 0
      %683 = vmatprep.subr.bf16.mxu0 0
      %684 = vmatpush1.bf16.xpose.msra.mxu0 0
      %685 = vmatprep.subr.bf16.mxu0 0
      %686 = vmatpush1.bf16.xpose.msra.mxu0 0
      %687 = vmatprep.subr.bf16.mxu0 0
      %688 = vmatpush1.bf16.xpose.msra.mxu0 0
      %689 = vmatprep.subr.bf16.mxu0 0
      %690 = vmatpush1.bf16.xpose.msra.mxu0 0
      %691 = vmatprep.subr.bf16.mxu0 0
      %692 = vmatpush1.bf16.xpose.msra.mxu0 0
      %693 = vmatprep.subr.bf16.mxu0 0
      %694 = vmatpush1.bf16.xpose.msra.mxu0 0
      %695 = vmatprep.subr.bf16.mxu0 0
      %696 = vmatpush1.bf16.xpose.msra.mxu0 0
      %697 = vmatprep.subr.bf16.mxu0 0
      %698 = vmatpush1.bf16.xpose.msra.mxu0 0
      %699 = vmatprep.subr.bf16.mxu0 0
      %700 = vmatpush1.bf16.xpose.msra.mxu0 0
      %701 = vmatprep.subr.bf16.mxu0 0
      %702 = vmatpush1.bf16.xpose.msra.mxu0 0
      %703 = vmatprep.subr.bf16.mxu0 0
      %704 = vmatpush1.bf16.xpose.msra.mxu0 0
      %705 = vmatprep.subr.bf16.mxu0 0
      %706 = vmatpush1.bf16.xpose.msra.mxu0 0
      %707 = vmatprep.mubr.bf16.mxu0 0
      %708 = vmatmul.mubr.bf16.gmra.mrb[0].mxu0 %v670
      %v709 = vpop.f32.mrb[0].mxu0
      %v710 = vadd.f32 0.0, %v709
      %v711 = vpop.f32.mrb[0].mxu0
      %v712 = vpop.f32.mrb[0].mxu0
      %v713 = vpop.f32.mrb[0].mxu0
      %714 = vdwg.mxu0
      %v715 = vmul.f32 %v710, 0.17677669
      %v716 = vsel %vm602, %v715, -inf
      %717 = vmax.xlane.f32.xlu0 %v716
      %v718 = vpop.xlane.xlu0 %717
      %v719 = vsub.f32 %v715, %v718
      %v720 = vmul.f32 %v719, 1.442695
      %v721 = vpow.pop %v720
      %v722 = vsel %vm602, %v721, 0.0
      %723 = vadd.xlane.f32.xlu0 %v722
      %v724 = vpop.xlane.xlu0 %723
      %v725 = vrcp.pop %v724
      %v726 = vmul.f32 %v721, %v725
      %v727 = vpack.c.bf16 %v726, %v726
      %729 = vrot.lane.b32.xlu0 %v537, 96
      %v730 = vpop.permute.xlu0 %729
      %v732 = vsel %vm602, %v727, 0
      %v735 = vsel %vm618, %v730, 0
      %737 = vmatprep.subr.bf16.mxu0 0
      %738 = vmatpush1.bf16.msra.mxu0 %v735
      %739 = vmatprep.subr.bf16.mxu0 0
      %740 = vmatpush1.bf16.msra.mxu0 0
      %741 = vmatprep.subr.bf16.mxu0 0
      %742 = vmatpush1.bf16.msra.mxu0 0
      %743 = vmatprep.subr.bf16.mxu0 0
      %744 = vmatpush1.bf16.msra.mxu0 0
      %745 = vmatprep.subr.bf16.mxu0 0
      %746 = vmatpush1.bf16.msra.mxu0 0
      %747 = vmatprep.subr.bf16.mxu0 0
      %748 = vmatpush1.bf16.msra.mxu0 0
      %749 = vmatprep.subr.bf16.mxu0 0
      %750 = vmatpush1.bf16.msra.mxu0 0
      %751 = vmatprep.subr.bf16.mxu0 0
      %752 = vmatpush1.bf16.msra.mxu0 0
      %753 = vmatprep.subr.bf16.mxu0 0
      %754 = vmatpush1.bf16.msra.mxu0 0
      %755 = vmatprep.subr.bf16.mxu0 0
      %756 = vmatpush1.bf16.msra.mxu0 0
      %757 = vmatprep.subr.bf16.mxu0 0
      %758 = vmatpush1.bf16.msra.mxu0 0
      %759 = vmatprep.subr.bf16.mxu0 0
      %760 = vmatpush1.bf16.msra.mxu0 0
      %761 = vmatprep.subr.bf16.mxu0 0
      %762 = vmatpush1.bf16.msra.mxu0 0
      %763 = vmatprep.subr.bf16.mxu0 0
      %764 = vmatpush1.bf16.msra.mxu0 0
      %765 = vmatprep.subr.bf16.mxu0 0
      %766 = vmatpush1.bf16.msra.mxu0 0
      %767 = vmatprep.subr.bf16.mxu0 0
      %768 = vmatpush1.bf16.msra.mxu0 0
      %769 = vmatprep.mubr.bf16.mxu0 0
      %770 = vmatmul.mubr.bf16.gmra.mrb[0].mxu0 %v732
      %v771 = vpop.f32.mrb[0].mxu0
      %v772 = vadd.f32 0.0, %v771
      %v773 = vpop.f32.mrb[0].mxu0
      %v774 = vpop.f32.mrb[0].mxu0
      %v775 = vpop.f32.mrb[0].mxu0
      %776 = vdwg.mxu0
      %v777 = vpack.c.bf16 %v772, %v772
      %v782 = vunpack.c.l.b16 %v542
      %v783 = vunpack.c.l.b16 %v543
      %v784 = vunpack.c.l.b16 %v544
      %v785 = vunpack.c.l.b16 %v545
      %v786 = vpack.c.b16 %v783, %v782
      %v787 = vpack.c.b16 %v785, %v784
      %v791 = vsel %vm554, %v777, 0
      %793 = vmatprep.subr.bf16.mxu0 0
      %794 = vmatpush1.bf16.msra.mxu0 %v786
      %795 = vmatprep.subr.bf16.mxu0 0
      %796 = vmatpush1.bf16.msra.mxu0 %v787
      %797 = vmatprep.subr.bf16.mxu0 0
      %798 = vmatpush1.bf16.msra.mxu0 0
      %799 = vmatprep.subr.bf16.mxu0 0
      %800 = vmatpush1.bf16.msra.mxu0 0
      %801 = vmatprep.subr.bf16.mxu0 0
      %802 = vmatpush1.bf16.msra.mxu0 0
      %803 = vmatprep.subr.bf16.mxu0 0
      %804 = vmatpush1.bf16.msra.mxu0 0
      %805 = vmatprep.subr.bf16.mxu0 0
      %806 = vmatpush1.bf16.msra.mxu0 0
      %807 = vmatprep.subr.bf16.mxu0 0
      %808 = vmatpush1.bf16.msra.mxu0 0
      %809 = vmatprep.subr.bf16.mxu0 0
      %810 = vmatpush1.bf16.msra.mxu0 0
      %811 = vmatprep.subr.bf16.mxu0 0
      %812 = vmatpush1.bf16.msra.mxu0 0
      %813 = vmatprep.subr.bf16.mxu0 0
      %814 = vmatpush1.bf16.msra.mxu0 0
      %815 = vmatprep.subr.bf16.mxu0 0
      %816 = vmatpush1.bf16.msra.mxu0 0
      %817 = vmatprep.subr.bf16.mxu0 0
      %818 = vmatpush1.bf16.msra.mxu0 0
      %819 = vmatprep.subr.bf16.mxu0 0
      %820 = vmatpush1.bf16.msra.mxu0 0
      %821 = vmatprep.subr.bf16.mxu0 0
      %822 = vmatpush1.bf16.msra.mxu0 0
      %823 = vmatprep.subr.bf16.mxu0 0
      %824 = vmatpush1.bf16.msra.mxu0 0
      %825 = vmatprep.mubr.bf16.mxu0 0
      %826 = vmatmul.mubr.bf16.gmra.mrb[0].mxu0 %v791
      %v827 = vpop.f32.mrb[0].mxu0
      %v828 = vadd.f32 0.0, %v827
      %v829 = vpop.f32.mrb[0].mxu0
      %v830 = vpop.f32.mrb[0].mxu0
      %v831 = vpop.f32.mrb[0].mxu0
      %832 = vdwg.mxu0
      %v837 = vunpack.c.l.b16 %v538
      %v838 = vunpack.c.l.b16 %v539
      %v839 = vunpack.c.l.b16 %v540
      %v840 = vunpack.c.l.b16 %v541
      %v841 = vpack.c.b16 %v838, %v837
      %v842 = vpack.c.b16 %v840, %v839
      %v846 = vsel %vm554, %v662, 0
      %848 = vmatprep.subr.bf16.mxu0 0
      %849 = vmatpush1.bf16.msra.mxu0 %v841
      %850 = vmatprep.subr.bf16.mxu0 0
      %851 = vmatpush1.bf16.msra.mxu0 %v842
      %852 = vmatprep.subr.bf16.mxu0 0
      %853 = vmatpush1.bf16.msra.mxu0 0
      %854 = vmatprep.subr.bf16.mxu0 0
      %855 = vmatpush1.bf16.msra.mxu0 0
      %856 = vmatprep.subr.bf16.mxu0 0
      %857 = vmatpush1.bf16.msra.mxu0 0
      %858 = vmatprep.subr.bf16.mxu0 0
      %859 = vmatpush1.bf16.msra.mxu0 0
      %860 = vmatprep.subr.bf16.mxu0 0
      %861 = vmatpush1.bf16.msra.mxu0 0
      %862 = vmatprep.subr.bf16.mxu0 0
      %863 = vmatpush1.bf16.msra.mxu0 0
      %864 = vmatprep.subr.bf16.mxu0 0
      %865 = vmatpush1.bf16.msra.mxu0 0
      %866 = vmatprep.subr.bf16.mxu0 0
      %867 = vmatpush1.bf16.msra.mxu0 0
      %868 = vmatprep.subr.bf16.mxu0 0
      %869 = vmatpush1.bf16.msra.mxu0 0
      %870 = vmatprep.subr.bf16.mxu0 0
      %871 = vmatpush1.bf16.msra.mxu0 0
      %872 = vmatprep.subr.bf16.mxu0 0
      %873 = vmatpush1.bf16.msra.mxu0 0
      %874 = vmatprep.subr.bf16.mxu0 0
      %875 = vmatpush1.bf16.msra.mxu0 0
      %876 = vmatprep.subr.bf16.mxu0 0
      %877 = vmatpush1.bf16.msra.mxu0 0
      %878 = vmatprep.subr.bf16.mxu0 0
      %879 = vmatpush1.bf16.msra.mxu0 0
      %880 = vmatprep.mubr.bf16.mxu0 0
      %881 = vmatmul.mubr.bf16.gmra.mrb[0].mxu0 %v846
      %v882 = vpop.f32.mrb[0].mxu0
      %v883 = vadd.f32 %v828, %v882
      %v884 = vpop.f32.mrb[0].mxu0
      %v885 = vpop.f32.mrb[0].mxu0
      %v886 = vpop.f32.mrb[0].mxu0
      %887 = vdwg.mxu0
      %888 = vrot.lane.b32.xlu0 %v535, 64
      %v889 = vpop.permute.xlu0 %888
      %890 = vrot.lane.b32.xlu0 %v536, 64
      %v891 = vpop.permute.xlu0 %890
      %v893 = vsel %vm554, %v889, 0
      %v896 = vsel %vm554, %v891, 0
      %898 = vmatprep.subr.bf16.mxu0 0
      %899 = vmatpush1.bf16.xpose.msra.mxu0 %v896
      %900 = vmatprep.subr.bf16.mxu0 0
      %901 = vmatpush1.bf16.xpose.msra.mxu0 0
      %902 = vmatprep.subr.bf16.mxu0 0
      %903 = vmatpush1.bf16.xpose.msra.mxu0 0
      %904 = vmatprep.subr.bf16.mxu0 0
      %905 = vmatpush1.bf16.xpose.msra.mxu0 0
      %906 = vmatprep.subr.bf16.mxu0 0
      %907 = vmatpush1.bf16.xpose.msra.mxu0 0
      %908 = vmatprep.subr.bf16.mxu0 0
      %909 = vmatpush1.bf16.xpose.msra.mxu0 0
      %910 = vmatprep.subr.bf16.mxu0 0
      %911 = vmatpush1.bf16.xpose.msra.mxu0 0
      %912 = vmatprep.subr.bf16.mxu0 0
      %913 = vmatpush1.bf16.xpose.msra.mxu0 0
      %914 = vmatprep.subr.bf16.mxu0 0
      %915 = vmatpush1.bf16.xpose.msra.mxu0 0
      %916 = vmatprep.subr.bf16.mxu0 0
      %917 = vmatpush1.bf16.xpose.msra.mxu0 0
      %918 = vmatprep.subr.bf16.mxu0 0
      %919 = vmatpush1.bf16.xpose.msra.mxu0 0
      %920 = vmatprep.subr.bf16.mxu0 0
      %921 = vmatpush1.bf16.xpose.msra.mxu0 0
      %922 = vmatprep.subr.bf16.mxu0 0
      %923 = vmatpush1.bf16.xpose.msra.mxu0 0
      %924 = vmatprep.subr.bf16.mxu0 0
      %925 = vmatpush1.bf16.xpose.msra.mxu0 0
      %926 = vmatprep.subr.bf16.mxu0 0
      %927 = vmatpush1.bf16.xpose.msra.mxu0 0
      %928 = vmatprep.subr.bf16.mxu0 0
      %929 = vmatpush1.bf16.xpose.msra.mxu0 0
      %930 = vmatprep.mubr.bf16.mxu0 0
      %931 = vmatmul.mubr.bf16.gmra.mrb[0].mxu0 %v893
      %v932 = vpop.f32.mrb[0].mxu0
      %v933 = vadd.f32 0.0, %v932
      %v934 = vpop.f32.mrb[0].mxu0
      %v935 = vpop.f32.mrb[0].mxu0
      %v936 = vpop.f32.mrb[0].mxu0
      %937 = vdwg.mxu0
      %v938 = vmul.f32 %v933, 0.17677669
      %v939 = vsel %vm602, %v938, -inf
      %940 = vmax.xlane.f32.xlu0 %v939
      %v941 = vpop.xlane.xlu0 %940
      %v942 = vsub.f32 %v938, %v941
      %v943 = vmul.f32 %v942, 1.442695
      %v944 = vpow.pop %v943
      %v945 = vsel %vm602, %v944, 0.0
      %946 = vadd.xlane.f32.xlu0 %v945
      %v947 = vpop.xlane.xlu0 %946
      %v948 = vrcp.pop %v947
      %v949 = vmul.f32 %v944, %v948
      %v950 = vpack.c.bf16 %v949, %v949
      %951 = vrot.lane.b32.xlu0 %v537, 64
      %v952 = vpop.permute.xlu0 %951
      %v954 = vsel %vm602, %v950, 0
      %v957 = vsel %vm618, %v952, 0
      %959 = vmatprep.subr.bf16.mxu0 0
      %960 = vmatpush1.bf16.msra.mxu0 %v957
      %961 = vmatprep.subr.bf16.mxu0 0
      %962 = vmatpush1.bf16.msra.mxu0 0
      %963 = vmatprep.subr.bf16.mxu0 0
      %964 = vmatpush1.bf16.msra.mxu0 0
      %965 = vmatprep.subr.bf16.mxu0 0
      %966 = vmatpush1.bf16.msra.mxu0 0
      %967 = vmatprep.subr.bf16.mxu0 0
      %968 = vmatpush1.bf16.msra.mxu0 0
      %969 = vmatprep.subr.bf16.mxu0 0
      %970 = vmatpush1.bf16.msra.mxu0 0
      %971 = vmatprep.subr.bf16.mxu0 0
      %972 = vmatpush1.bf16.msra.mxu0 0
      %973 = vmatprep.subr.bf16.mxu0 0
      %974 = vmatpush1.bf16.msra.mxu0 0
      %975 = vmatprep.subr.bf16.mxu0 0
      %976 = vmatpush1.bf16.msra.mxu0 0
      %977 = vmatprep.subr.bf16.mxu0 0
      %978 = vmatpush1.bf16.msra.mxu0 0
      %979 = vmatprep.subr.bf16.mxu0 0
      %980 = vmatpush1.bf16.msra.mxu0 0
      %981 = vmatprep.subr.bf16.mxu0 0
      %982 = vmatpush1.bf16.msra.mxu0 0
      %983 = vmatprep.subr.bf16.mxu0 0
      %984 = vmatpush1.bf16.msra.mxu0 0
      %985 = vmatprep.subr.bf16.mxu0 0
      %986 = vmatpush1.bf16.msra.mxu0 0
      %987 = vmatprep.subr.bf16.mxu0 0
      %988 = vmatpush1.bf16.msra.mxu0 0
      %989 = vmatprep.subr.bf16.mxu0 0
      %990 = vmatpush1.bf16.msra.mxu0 0
      %991 = vmatprep.mubr.bf16.mxu0 0
      %992 = vmatmul.mubr.bf16.gmra.mrb[0].mxu0 %v954
      %v993 = vpop.f32.mrb[0].mxu0
      %v994 = vadd.f32 0.0, %v993
      %v995 = vpop.f32.mrb[0].mxu0
      %v996 = vpop.f32.mrb[0].mxu0
      %v997 = vpop.f32.mrb[0].mxu0
      %998 = vdwg.mxu0
      %v999 = vpack.c.bf16 %v994, %v994
      %v1004 = vunpack.c.l.b16 %v546
      %v1005 = vunpack.c.l.b16 %v547
      %v1006 = vunpack.c.l.b16 %v548
      %v1007 = vunpack.c.l.b16 %v549
      %v1008 = vpack.c.b16 %v1005, %v1004
      %v1009 = vpack.c.b16 %v1007, %v1006
      %v1013 = vsel %vm554, %v999, 0
      %1015 = vmatprep.subr.bf16.mxu0 0
      %1016 = vmatpush1.bf16.msra.mxu0 %v1008
      %1017 = vmatprep.subr.bf16.mxu0 0
      %1018 = vmatpush1.bf16.msra.mxu0 %v1009
      %1019 = vmatprep.subr.bf16.mxu0 0
      %1020 = vmatpush1.bf16.msra.mxu0 0
      %1021 = vmatprep.subr.bf16.mxu0 0
      %1022 = vmatpush1.bf16.msra.mxu0 0
      %1023 = vmatprep.subr.bf16.mxu0 0
      %1024 = vmatpush1.bf16.msra.mxu0 0
      %1025 = vmatprep.subr.bf16.mxu0 0
      %1026 = vmatpush1.bf16.msra.mxu0 0
      %1027 = vmatprep.subr.bf16.mxu0 0
      %1028 = vmatpush1.bf16.msra.mxu0 0
      %1029 = vmatprep.subr.bf16.mxu0 0
      %1030 = vmatpush1.bf16.msra.mxu0 0
      %1031 = vmatprep.subr.bf16.mxu0 0
      %1032 = vmatpush1.bf16.msra.mxu0 0
      %1033 = vmatprep.subr.bf16.mxu0 0
      %1034 = vmatpush1.bf16.msra.mxu0 0
      %1035 = vmatprep.subr.bf16.mxu0 0
      %1036 = vmatpush1.bf16.msra.mxu0 0
      %1037 = vmatprep.subr.bf16.mxu0 0
      %1038 = vmatpush1.bf16.msra.mxu0 0
      %1039 = vmatprep.subr.bf16.mxu0 0
      %1040 = vmatpush1.bf16.msra.mxu0 0
      %1041 = vmatprep.subr.bf16.mxu0 0
      %1042 = vmatpush1.bf16.msra.mxu0 0
      %1043 = vmatprep.subr.bf16.mxu0 0
      %1044 = vmatpush1.bf16.msra.mxu0 0
      %1045 = vmatprep.subr.bf16.mxu0 0
      %1046 = vmatpush1.bf16.msra.mxu0 0
      %1047 = vmatprep.mubr.bf16.mxu0 0
      %1048 = vmatmul.mubr.bf16.gmra.mrb[0].mxu0 %v1013
      %v1049 = vpop.f32.mrb[0].mxu0
      %v1050 = vadd.f32 0.0, %v1049
      %v1051 = vpop.f32.mrb[0].mxu0
      %v1052 = vpop.f32.mrb[0].mxu0
      %v1053 = vpop.f32.mrb[0].mxu0
      %1054 = vdwg.mxu0
      %v1055 = vadd.f32 %v883, %v1050
      %1056 = vrot.lane.b32.xlu0 %v535, 32
      %v1057 = vpop.permute.xlu0 %1056
      %1058 = vrot.lane.b32.xlu0 %v536, 32
      %v1059 = vpop.permute.xlu0 %1058
      %v1061 = vsel %vm554, %v1057, 0
      %v1064 = vsel %vm554, %v1059, 0
      %1066 = vmatprep.subr.bf16.mxu0 0
      %1067 = vmatpush1.bf16.xpose.msra.mxu0 %v1064
      %1068 = vmatprep.subr.bf16.mxu0 0
      %1069 = vmatpush1.bf16.xpose.msra.mxu0 0
      %1070 = vmatprep.subr.bf16.mxu0 0
      %1071 = vmatpush1.bf16.xpose.msra.mxu0 0
      %1072 = vmatprep.subr.bf16.mxu0 0
      %1073 = vmatpush1.bf16.xpose.msra.mxu0 0
      %1074 = vmatprep.subr.bf16.mxu0 0
      %1075 = vmatpush1.bf16.xpose.msra.mxu0 0
      %1076 = vmatprep.subr.bf16.mxu0 0
      %1077 = vmatpush1.bf16.xpose.msra.mxu0 0
      %1078 = vmatprep.subr.bf16.mxu0 0
      %1079 = vmatpush1.bf16.xpose.msra.mxu0 0
      %1080 = vmatprep.subr.bf16.mxu0 0
      %1081 = vmatpush1.bf16.xpose.msra.mxu0 0
      %1082 = vmatprep.subr.bf16.mxu0 0
      %1083 = vmatpush1.bf16.xpose.msra.mxu0 0
      %1084 = vmatprep.subr.bf16.mxu0 0
      %1085 = vmatpush1.bf16.xpose.msra.mxu0 0
      %1086 = vmatprep.subr.bf16.mxu0 0
      %1087 = vmatpush1.bf16.xpose.msra.mxu0 0
      %1088 = vmatprep.subr.bf16.mxu0 0
      %1089 = vmatpush1.bf16.xpose.msra.mxu0 0
      %1090 = vmatprep.subr.bf16.mxu0 0
      %1091 = vmatpush1.bf16.xpose.msra.mxu0 0
      %1092 = vmatprep.subr.bf16.mxu0 0
      %1093 = vmatpush1.bf16.xpose.msra.mxu0 0
      %1094 = vmatprep.subr.bf16.mxu0 0
      %1095 = vmatpush1.bf16.xpose.msra.mxu0 0
      %1096 = vmatprep.subr.bf16.mxu0 0
      %1097 = vmatpush1.bf16.xpose.msra.mxu0 0
      %1098 = vmatprep.mubr.bf16.mxu0 0
      %1099 = vmatmul.mubr.bf16.gmra.mrb[0].mxu0 %v1061
      %v1100 = vpop.f32.mrb[0].mxu0
      %v1101 = vadd.f32 0.0, %v1100
      %v1102 = vpop.f32.mrb[0].mxu0
      %v1103 = vpop.f32.mrb[0].mxu0
      %v1104 = vpop.f32.mrb[0].mxu0
      %1105 = vdwg.mxu0
      %v1106 = vmul.f32 %v1101, 0.17677669
      %v1107 = vsel %vm602, %v1106, -inf
      %1108 = vmax.xlane.f32.xlu0 %v1107
      %v1109 = vpop.xlane.xlu0 %1108
      %v1110 = vsub.f32 %v1106, %v1109
      %v1111 = vmul.f32 %v1110, 1.442695
      %v1112 = vpow.pop %v1111
      %v1113 = vsel %vm602, %v1112, 0.0
      %1114 = vadd.xlane.f32.xlu0 %v1113
      %v1115 = vpop.xlane.xlu0 %1114
      %v1116 = vrcp.pop %v1115
      %v1117 = vmul.f32 %v1112, %v1116
      %v1118 = vpack.c.bf16 %v1117, %v1117
      %1119 = vrot.lane.b32.xlu0 %v537, 32
      %v1120 = vpop.permute.xlu0 %1119
      %v1122 = vsel %vm602, %v1118, 0
      %v1125 = vsel %vm618, %v1120, 0
      %1127 = vmatprep.subr.bf16.mxu0 0
      %1128 = vmatpush1.bf16.msra.mxu0 %v1125
      %1129 = vmatprep.subr.bf16.mxu0 0
      %1130 = vmatpush1.bf16.msra.mxu0 0
      %1131 = vmatprep.subr.bf16.mxu0 0
      %1132 = vmatpush1.bf16.msra.mxu0 0
      %1133 = vmatprep.subr.bf16.mxu0 0
      %1134 = vmatpush1.bf16.msra.mxu0 0
      %1135 = vmatprep.subr.bf16.mxu0 0
      %1136 = vmatpush1.bf16.msra.mxu0 0
      %1137 = vmatprep.subr.bf16.mxu0 0
      %1138 = vmatpush1.bf16.msra.mxu0 0
      %1139 = vmatprep.subr.bf16.mxu0 0
      %1140 = vmatpush1.bf16.msra.mxu0 0
      %1141 = vmatprep.subr.bf16.mxu0 0
      %1142 = vmatpush1.bf16.msra.mxu0 0
      %1143 = vmatprep.subr.bf16.mxu0 0
      %1144 = vmatpush1.bf16.msra.mxu0 0
      %1145 = vmatprep.subr.bf16.mxu0 0
      %1146 = vmatpush1.bf16.msra.mxu0 0
      %1147 = vmatprep.subr.bf16.mxu0 0
      %1148 = vmatpush1.bf16.msra.mxu0 0
      %1149 = vmatprep.subr.bf16.mxu0 0
      %1150 = vmatpush1.bf16.msra.mxu0 0
      %1151 = vmatprep.subr.bf16.mxu0 0
      %1152 = vmatpush1.bf16.msra.mxu0 0
      %1153 = vmatprep.subr.bf16.mxu0 0
      %1154 = vmatpush1.bf16.msra.mxu0 0
      %1155 = vmatprep.subr.bf16.mxu0 0
      %1156 = vmatpush1.bf16.msra.mxu0 0
      %1157 = vmatprep.subr.bf16.mxu0 0
      %1158 = vmatpush1.bf16.msra.mxu0 0
      %1159 = vmatprep.mubr.bf16.mxu0 0
      %1160 = vmatmul.mubr.bf16.gmra.mrb[0].mxu0 %v1122
      %v1161 = vpop.f32.mrb[0].mxu0
      %v1162 = vadd.f32 0.0, %v1161
      %v1163 = vpop.f32.mrb[0].mxu0
      %v1164 = vpop.f32.mrb[0].mxu0
      %v1165 = vpop.f32.mrb[0].mxu0
      %1166 = vdwg.mxu0
      %v1167 = vpack.c.bf16 %v1162, %v1162
      %v1172 = vunpack.c.l.b16 %v550
      %v1173 = vunpack.c.l.b16 %v551
      %v1174 = vunpack.c.l.b16 %v552
      %v1175 = vunpack.c.l.b16 %v553
      %v1176 = vpack.c.b16 %v1173, %v1172
      %v1177 = vpack.c.b16 %v1175, %v1174
      %v1181 = vsel %vm554, %v1167, 0
      %1183 = vmatprep.subr.bf16.mxu0 0
      %1184 = vmatpush1.bf16.msra.mxu0 %v1176
      %1185 = vmatprep.subr.bf16.mxu0 0
      %1186 = vmatpush1.bf16.msra.mxu0 %v1177
      %1187 = vmatprep.subr.bf16.mxu0 0
      %1188 = vmatpush1.bf16.msra.mxu0 0
      %1189 = vmatprep.subr.bf16.mxu0 0
      %1190 = vmatpush1.bf16.msra.mxu0 0
      %1191 = vmatprep.subr.bf16.mxu0 0
      %1192 = vmatpush1.bf16.msra.mxu0 0
      %1193 = vmatprep.subr.bf16.mxu0 0
      %1194 = vmatpush1.bf16.msra.mxu0 0
      %1195 = vmatprep.subr.bf16.mxu0 0
      %1196 = vmatpush1.bf16.msra.mxu0 0
      %1197 = vmatprep.subr.bf16.mxu0 0
      %1198 = vmatpush1.bf16.msra.mxu0 0
      %1199 = vmatprep.subr.bf16.mxu0 0
      %1200 = vmatpush1.bf16.msra.mxu0 0
      %1201 = vmatprep.subr.bf16.mxu0 0
      %1202 = vmatpush1.bf16.msra.mxu0 0
      %1203 = vmatprep.subr.bf16.mxu0 0
      %1204 = vmatpush1.bf16.msra.mxu0 0
      %1205 = vmatprep.subr.bf16.mxu0 0
      %1206 = vmatpush1.bf16.msra.mxu0 0
      %1207 = vmatprep.subr.bf16.mxu0 0
      %1208 = vmatpush1.bf16.msra.mxu0 0
      %1209 = vmatprep.subr.bf16.mxu0 0
      %1210 = vmatpush1.bf16.msra.mxu0 0
      %1211 = vmatprep.subr.bf16.mxu0 0
      %1212 = vmatpush1.bf16.msra.mxu0 0
      %1213 = vmatprep.subr.bf16.mxu0 0
      %1214 = vmatpush1.bf16.msra.mxu0 0
      %1215 = vmatprep.mubr.bf16.mxu0 0
      %1216 = vmatmul.mubr.bf16.gmra.mrb[0].mxu0 %v1181
      %v1217 = vpop.f32.mrb[0].mxu0
      %v1218 = vadd.f32 0.0, %v1217
      %v1219 = vpop.f32.mrb[0].mxu0
      %v1220 = vpop.f32.mrb[0].mxu0
      %v1221 = vpop.f32.mrb[0].mxu0
      %1222 = vdwg.mxu0
      %v1223 = vadd.f32 %v1055, %v1218
      %v1224 = vld [vmem:[%s4] sm:$0x1]
      %v1226 = vlaneseq
      %v1227 = vshrl.u32 %v1226, 7
      %v1228 = vsub.s32 0, %v1227
      %v1229 = vrot.slane %v1224, %v1228
      %v1231 = vadd.f32 %v1223, %v1229
      %v1232 = vadd.f32 %v275, %v1231
      %v1233 = vld [vmem:[%s5] sm:$0x1]
      %v1234 = vld [vmem:[%s6] sm:$0x1]
      %1235 = vadd.xlane.f32.xlu0 %v1232
      %v1236 = vpop.xlane.xlu0 %1235
      %v1237 = vrcp.pop 128.0
      %v1238 = vmul.f32 %v1236, %v1237
      %v1239 = vsub.f32 %v1232, %v1238
      %v1240 = vmul.f32 %v1239, %v1239
      %1241 = vadd.xlane.f32.xlu0 %v1240
      %v1242 = vpop.xlane.xlu0 %1241
      %v1243 = vmul.f32 %v1242, %v1237
      %v1244 = vadd.f32 %v1243, 1e-05
      %v1245 = vrsqrt.pop %v1244
      %v1246 = vmul.f32 %v1239, %v1245
      %v1248 = vlaneseq
      %v1249 = vshrl.u32 %v1248, 7
      %v1250 = vsub.s32 0, %v1249
      %v1251 = vrot.slane %v1233, %v1250
      %v1253 = vmul.f32 %v1246, %v1251
      %v1255 = vlaneseq
      %v1256 = vshrl.u32 %v1255, 7
      %v1257 = vsub.s32 0, %v1256
      %v1258 = vrot.slane %v1234, %v1257
      %v1260 = vadd.f32 %v1253, %v1258
      %1261 = vst [vmem:[%s273] sm:$0xff] %v1260
      %p1262 = scmp.lt.s32.totalorder %s18, 1
      %s1263 = scalar_select %p1262, %s18, 1
      %s1264 = smul.addr %s1263, 8
      %s1265 = scalar_lea.vmem %s7, %s1264
      // Predicated region
      $region49: #{_lambda_.8} parent=47 // pred_check
        %p1266 = pneg %p188
      $region50: #{_lambda_.8} parent=47 // pred_check_branch
        %1268 = sbr.rel (%p1266) target = $region52
      $region51: #{_lambda_.8} parent=47 // pred_region
        _
      $region52: #{_lambda_.8} parent=47 // pred_fallthru
        _
    $region48: #{_lambda_.8} parent=5 // pred_fallthru
      _
    %p1269 = scmp.le.s32.totalorder 2, %s13
    // Predicated region
    $region53: #{_lambda_.8} parent=5 // pred_check
      %p1270 = pneg %p1269
    $region54: #{_lambda_.8} parent=5 // pred_check_branch
      %1272 = sbr.rel (%p1270) target = $region56
    $region55: #{_lambda_.8} parent=5 // pred_region
      %s1273 = ssub.s32 %s13, 2
      // Predicated region
      $region57: #{_lambda_.8} parent=55 // pred_check
        %p1274 = pneg %p194
      $region58: #{_lambda_.8} parent=55 // pred_check_branch
        %1276 = sbr.rel (%p1274) target = $region60
      $region59: #{_lambda_.8} parent=55 // pred_region
        %p1277 = scmp.lt.s32.totalorder %s19, 1
        %s1278 = scalar_select %p1277, %s19, 1
        %s1279 = smul.addr %s1278, 8
        %s1280 = scalar_lea.vmem %s7, %s1279
      $region60: #{_lambda_.8} parent=55 // pred_fallthru
        _
    $region56: #{_lambda_.8} parent=5 // pred_fallthru
      _
  $region6: #{_lambda_.8} parent=0 // loop_footer
    %s17 = sadd.s32 1, %s13
  $region7: #{_lambda_.8} parent=0 // loop_footer_branch
    %12 = sbr.rel target = $region3
  $region8: #{_lambda_.8} parent=0 // loop_exit
    _

</llo_original>
